<compile_context>
chip_gen: v7x
topology: tpu7x:2x2x1
jax: 0.10.0
libtpu: 0.0.40
codegen_flags: <defaults>
</compile_context>

<pallas_src>
import functools
import math

import jax
import jax.numpy as jnp
import numpy as np
from jax import lax
from jax.experimental import pallas as pl
from jax.experimental.pallas import tpu as pltpu

NEG_SLOPE = 0.01  # PyTorch LeakyReLU default negative_slope


def _res_conv_block_kernel(x_ref, w1_ref, b1_ref, w2_ref, b2_ref, o_ref,
                           xpad_ref, ypad_ref, *, k, neg_slope):
    """Fused y = lrelu(conv2(lrelu(conv1(x))) + x) for n_blk lane-packed images.

    x_ref    : (n_blk, Cin, H, W)   VMEM input block
    w1_ref   : (Cout*Cin*k*k,)      SMEM conv1 weights, (co, ci, kh, kw) flat
    b1_ref   : (Cout,)              SMEM
    w2_ref   : (Cout*Cout*k*k,)     SMEM conv2 weights
    b2_ref   : (Cout,)              SMEM
    o_ref    : (n_blk, Cout, H, W)  VMEM output block
    xpad_ref : (Cin,  Hp, L + 2p)   VMEM scratch, images packed on lanes
    ypad_ref : (Cout, Hp, L + 2p)   VMEM scratch, padded intermediate

    Packed coords: packed output column c in [0, L), L = n_blk*Wp; image n's
    valid pixels live at c in [n*Wp + p, n*Wp + p + W); scratch column =
    packed column + p, so every (kh, kw) window is the single uniform slice
    src[ci, kh:kh+H, kw:kw+L] (per-image zero borders handle all edges).
    """
    n_blk, cin, H, W = x_ref.shape
    cout = o_ref.shape[1]
    p = k // 2
    Hp = H + 2 * p
    Wp = W + 2 * p
    L = n_blk * Wp

    # Image-interior column mask over packed coords (iota-built, hoisted once).
    col = lax.broadcasted_iota(jnp.int32, (1, L), 1)
    inside = (col >= p) & (col < p + W)
    for n in range(1, n_blk):
        lo = n * Wp + p
        inside = inside | ((col >= lo) & (col < lo + W))

    # Stage input: wide zero-fill of both scratches, then write each image into
    # its own padded lane segment (interiors written exactly once).
    xpad_ref[...] = jnp.zeros(xpad_ref.shape, jnp.float32)
    ypad_ref[...] = jnp.zeros(ypad_ref.shape, jnp.float32)
    for n in range(n_blk):
        c0 = n * Wp + 2 * p
        xpad_ref[:, p:p + H, c0:c0 + W] = x_ref[n]

    def conv(src_ref, w_ref, n_in, n_out):
        # (ci, kh, kw) outer / co inner: each shifted window is loaded once and
        # reused across n_out independent accumulator chains.
        accs = [jnp.zeros((H, L), jnp.float32) for _ in range(n_out)]
        for ci in range(n_in):
            for kh in range(k):
                for kw in range(k):
                    win = src_ref[ci, kh:kh + H, kw:kw + L]
                    base = (ci * k + kh) * k + kw
                    for co in range(n_out):
                        accs[co] = accs[co] + w_ref[co * n_in * k * k + base] * win
        return accs

    # ---- conv1 + bias + leaky relu -> masked padded intermediate -----------
    # (mask keeps inter-image pad columns exactly zero for conv2's windows)
    accs1 = conv(xpad_ref, w1_ref, cin, cout)
    for co in range(cout):
        y = accs1[co] + b1_ref[co]
        y = jnp.where(y >= 0, y, neg_slope * y)
        ypad_ref[co, p:p + H, p:p + L] = jnp.where(inside, y, 0.0)

    # ---- conv2 + bias + residual + leaky relu -> NCHW output block ----------
    accs2 = conv(ypad_ref, w2_ref, cout, cout)
    for co in range(cout):
        resid = xpad_ref[co, p:p + H, p:p + L]          # residual (Cin == Cout)
        y2 = accs2[co] + b2_ref[co] + resid
        y2 = jnp.where(y2 >= 0, y2, neg_slope * y2)
        for n in range(n_blk):
            c0 = n * Wp + p
            o_ref[n, co, :, :] = y2[:, c0:c0 + W]


def res_convolution_block(x_nchw, w1_oihw, b1, w2_oihw, b2, *, neg_slope=NEG_SLOPE):
    """x_nchw: (N, Cin, H, W) f32; weights in PyTorch OIHW layout.

    Returns (N, Cout, H, W) f32. Works directly in NCHW; no host-side pads or
    transposes.
    """
    N, Cin, H, W = x_nchw.shape
    Cout, Cin_w, k, k2 = w1_oihw.shape
    assert Cin_w == Cin and k == k2 and k % 2 == 1
    assert Cout == Cin, "residual add requires ch_in == ch_out"
    p = k // 2
    Hp = H + 2 * p
    Wp = W + 2 * p

    # Pack as many images as possible onto the 128-lane axis per grid step
    # (largest divisor of N not exceeding the lane budget), amortizing the
    # per-grid-step pipeline overhead and raising lane occupancy.
    cap = max(1, 128 // Wp)
    n_blk = 1
    for d in range(1, min(N, cap) + 1):
        if N % d == 0:
            n_blk = d
    L = n_blk * Wp

    # flatten weights in (co, ci, kh, kw) order -> plain 1-D SMEM scalar tables
    w1_flat = w1_oihw.reshape(-1)
    w2_flat = w2_oihw.reshape(-1)

    kernel = functools.partial(_res_conv_block_kernel, k=k, neg_slope=neg_slope)

    return pl.pallas_call(
        kernel,
        out_shape=jax.ShapeDtypeStruct((N, Cout, H, W), jnp.float32),
        grid=(N // n_blk,),
        in_specs=[
            pl.BlockSpec((n_blk, Cin, H, W), lambda n: (n, 0, 0, 0)),      # x
            pl.BlockSpec(memory_space=pltpu.MemorySpace.SMEM),             # w1
            pl.BlockSpec(memory_space=pltpu.MemorySpace.SMEM),             # b1
            pl.BlockSpec(memory_space=pltpu.MemorySpace.SMEM),             # w2
            pl.BlockSpec(memory_space=pltpu.MemorySpace.SMEM),             # b2
        ],
        out_specs=pl.BlockSpec((n_blk, Cout, H, W), lambda n: (n, 0, 0, 0)),
        scratch_shapes=[
            pltpu.VMEM((Cin, Hp, L + 2 * p), jnp.float32),    # packed padded input
            pltpu.VMEM((Cout, Hp, L + 2 * p), jnp.float32),   # packed padded interm.
        ],
        compiler_params=pltpu.CompilerParams(
            dimension_semantics=("parallel",),   # v7x: shard image blocks over TCs
        ),
    )(x_nchw, w1_flat, b1, w2_flat, b2)


def _reference_nchw(x_nchw, w1_oihw, b1, w2_oihw, b2, neg_slope=NEG_SLOPE):
    """Pure-JAX reference mirroring the PyTorch forward (NCHW, 'same' padding)."""
    dn = ("NCHW", "OIHW", "NCHW")
    y = lax.conv_general_dilated(x_nchw, w1_oihw, (1, 1), "SAME",
                                 dimension_numbers=dn) + b1[None, :, None, None]
    y = jnp.where(y >= 0, y, neg_slope * y)
    y = lax.conv_general_dilated(y, w2_oihw, (1, 1), "SAME",
                                 dimension_numbers=dn) + b2[None, :, None, None]
    y = y + x_nchw
    return jnp.where(y >= 0, y, neg_slope * y)


if __name__ == "__main__":
    # Small shapes consistent with the module (residual requires ch_in == ch_out).
    N, C_IN, C_OUT, H, W, K = 2, 4, 4, 16, 16, 3

    key = jax.random.PRNGKey(0)
    kx, kw1, kb1, kw2, kb2 = jax.random.split(key, 5)

    x_nchw = jax.random.normal(kx, (N, C_IN, H, W), jnp.float32)

    # Deterministic parameter init (same shapes / fan-in bounds as torch Conv2d).
    bound1 = 1.0 / math.sqrt(C_IN * K * K)
    w1_oihw = jax.random.uniform(kw1, (C_OUT, C_IN, K, K), jnp.float32, -bound1, bound1)
    b1 = jax.random.uniform(kb1, (C_OUT,), jnp.float32, -bound1, bound1)
    bound2 = 1.0 / math.sqrt(C_OUT * K * K)
    w2_oihw = jax.random.uniform(kw2, (C_OUT, C_OUT, K, K), jnp.float32, -bound2, bound2)
    b2 = jax.random.uniform(kb2, (C_OUT,), jnp.float32, -bound2, bound2)

    out_nchw = res_convolution_block(x_nchw, w1_oihw, b1, w2_oihw, b2)
    out_nchw = jax.block_until_ready(out_nchw)

    ref_nchw = jax.block_until_ready(_reference_nchw(x_nchw, w1_oihw, b1, w2_oihw, b2))

    if not np.allclose(np.asarray(out_nchw), np.asarray(ref_nchw), rtol=1e-4, atol=1e-5):
        raise AssertionError("Pallas kernel does not match reference")
    print("KERNEL_OK")
</pallas_src>

<mosaic_0001>
module attributes {stable_mosaic.version = 11 : i64} {
  func.func @_res_conv_block_kernel(%arg0: i32, %arg1: memref<2x4x16x16xf32, #tpu.memory_space<vmem>>, %arg2: memref<144xf32, #tpu.memory_space<smem>>, %arg3: memref<4xf32, #tpu.memory_space<smem>>, %arg4: memref<144xf32, #tpu.memory_space<smem>>, %arg5: memref<4xf32, #tpu.memory_space<smem>>, %arg6: memref<2x4x16x16xf32, #tpu.memory_space<vmem>>, %arg7: memref<4x18x38xf32, #tpu.memory_space<vmem>>, %arg8: memref<4x18x38xf32, #tpu.memory_space<vmem>>) attributes {dimension_semantics = [#tpu.dimension_semantics<parallel>], iteration_bounds = array<i64: 1>, scalar_prefetch = 0 : i64, scratch_operands = 2 : i64, tpu.core_type = #tpu.core_type<tc>, window_params = [{transform_indices = @transform_0, window_bounds = array<i64: 2, 4, 16, 16>}, {transform_indices = @transform_1, window_bounds = array<i64: 144>}, {transform_indices = @transform_2, window_bounds = array<i64: 4>}, {transform_indices = @transform_3, window_bounds = array<i64: 144>}, {transform_indices = @transform_4, window_bounds = array<i64: 4>}, {transform_indices = @transform_5, window_bounds = array<i64: 2, 4, 16, 16>}]} {
    %0 = tpu.iota {dimensions = array<i32: 1>} : vector<1x36xi32>
    %c1_i32 = arith.constant 1 : i32
    %1 = vector.broadcast %c1_i32 : i32 to vector<1x36xi32>
    %2 = arith.cmpi sge, %0, %1 : vector<1x36xi32>
    %c17_i32 = arith.constant 17 : i32
    %3 = vector.broadcast %c17_i32 : i32 to vector<1x36xi32>
    %4 = arith.cmpi slt, %0, %3 : vector<1x36xi32>
    %5 = arith.andi %2, %4 : vector<1x36xi1>
    %c19_i32 = arith.constant 19 : i32
    %6 = vector.broadcast %c19_i32 : i32 to vector<1x36xi32>
    %7 = arith.cmpi sge, %0, %6 : vector<1x36xi32>
    %c35_i32 = arith.constant 35 : i32
    %8 = vector.broadcast %c35_i32 : i32 to vector<1x36xi32>
    %9 = arith.cmpi slt, %0, %8 : vector<1x36xi32>
    %10 = arith.andi %7, %9 : vector<1x36xi1>
    %11 = arith.ori %5, %10 : vector<1x36xi1>
    %cst = arith.constant 0.000000e+00 : f32
    %12 = vector.broadcast %cst : f32 to vector<4x18x38xf32>
    %c0 = arith.constant 0 : index
    %c0_0 = arith.constant 0 : index
    %c0_1 = arith.constant 0 : index
    %13 = vector.load %arg7[%c0, %c0_0, %c0_1] : memref<4x18x38xf32, #tpu.memory_space<vmem>>, vector<4x18x38xf32>
    tpu.vector_store %arg7[%c0, %c0_0, %c0_1], %12 {strides = array<i32>} : memref<4x18x38xf32, #tpu.memory_space<vmem>>, vector<4x18x38xf32>,
    %cst_2 = arith.constant 0.000000e+00 : f32
    %14 = vector.broadcast %cst_2 : f32 to vector<4x18x38xf32>
    %c0_3 = arith.constant 0 : index
    %c0_4 = arith.constant 0 : index
    %c0_5 = arith.constant 0 : index
    %15 = vector.load %arg8[%c0_3, %c0_4, %c0_5] : memref<4x18x38xf32, #tpu.memory_space<vmem>>, vector<4x18x38xf32>
    tpu.vector_store %arg8[%c0_3, %c0_4, %c0_5], %14 {strides = array<i32>} : memref<4x18x38xf32, #tpu.memory_space<vmem>>, vector<4x18x38xf32>,
    %c0_6 = arith.constant 0 : index
    %c0_7 = arith.constant 0 : index
    %c0_8 = arith.constant 0 : index
    %c0_9 = arith.constant 0 : index
    %16 = vector.load %arg1[%c0_6, %c0_7, %c0_8, %c0_9] : memref<2x4x16x16xf32, #tpu.memory_space<vmem>>, vector<1x4x16x16xf32>
    %17 = vector.shape_cast %16 : vector<1x4x16x16xf32> to vector<4x16x16xf32>
    %c0_10 = arith.constant 0 : index
    %c1 = arith.constant 1 : index
    %c2 = arith.constant 2 : index
    %18 = vector.load %arg7[%c0_10, %c1, %c2] : memref<4x18x38xf32, #tpu.memory_space<vmem>>, vector<4x16x16xf32>
    tpu.vector_store %arg7[%c0_10, %c1, %c2], %17 {strides = array<i32>} : memref<4x18x38xf32, #tpu.memory_space<vmem>>, vector<4x16x16xf32>,
    %c1_11 = arith.constant 1 : index
    %c0_12 = arith.constant 0 : index
    %c0_13 = arith.constant 0 : index
    %c0_14 = arith.constant 0 : index
    %19 = vector.load %arg1[%c1_11, %c0_12, %c0_13, %c0_14] : memref<2x4x16x16xf32, #tpu.memory_space<vmem>>, vector<1x4x16x16xf32>
    %20 = vector.shape_cast %19 : vector<1x4x16x16xf32> to vector<4x16x16xf32>
    %c0_15 = arith.constant 0 : index
    %c1_16 = arith.constant 1 : index
    %c20 = arith.constant 20 : index
    %21 = vector.load %arg7[%c0_15, %c1_16, %c20] : memref<4x18x38xf32, #tpu.memory_space<vmem>>, vector<4x16x16xf32>
    tpu.vector_store %arg7[%c0_15, %c1_16, %c20], %20 {strides = array<i32>} : memref<4x18x38xf32, #tpu.memory_space<vmem>>, vector<4x16x16xf32>,
    %cst_17 = arith.constant 0.000000e+00 : f32
    %22 = vector.broadcast %cst_17 : f32 to vector<16x36xf32>
    %cst_18 = arith.constant 0.000000e+00 : f32
    %23 = vector.broadcast %cst_18 : f32 to vector<16x36xf32>
    %cst_19 = arith.constant 0.000000e+00 : f32
    %24 = vector.broadcast %cst_19 : f32 to vector<16x36xf32>
    %cst_20 = arith.constant 0.000000e+00 : f32
    %25 = vector.broadcast %cst_20 : f32 to vector<16x36xf32>
    %c0_21 = arith.constant 0 : index
    %c0_22 = arith.constant 0 : index
    %c0_23 = arith.constant 0 : index
    %26 = vector.load %arg7[%c0_21, %c0_22, %c0_23] : memref<4x18x38xf32, #tpu.memory_space<vmem>>, vector<1x16x36xf32>
    %27 = vector.shape_cast %26 : vector<1x16x36xf32> to vector<16x36xf32>
    %c0_24 = arith.constant 0 : index
    %28 = memref.load %arg2[%c0_24] : memref<144xf32, #tpu.memory_space<smem>>
    %29 = vector.broadcast %28 : f32 to vector<16x36xf32>
    %30 = arith.mulf %29, %27 : vector<16x36xf32>
    %31 = arith.addf %22, %30 : vector<16x36xf32>
    %c36 = arith.constant 36 : index
    %32 = memref.load %arg2[%c36] : memref<144xf32, #tpu.memory_space<smem>>
    %33 = vector.broadcast %32 : f32 to vector<16x36xf32>
    %34 = arith.mulf %33, %27 : vector<16x36xf32>
    %35 = arith.addf %23, %34 : vector<16x36xf32>
    %c72 = arith.constant 72 : index
    %36 = memref.load %arg2[%c72] : memref<144xf32, #tpu.memory_space<smem>>
    %37 = vector.broadcast %36 : f32 to vector<16x36xf32>
    %38 = arith.mulf %37, %27 : vector<16x36xf32>
    %39 = arith.addf %24, %38 : vector<16x36xf32>
    %c108 = arith.constant 108 : index
    %40 = memref.load %arg2[%c108] : memref<144xf32, #tpu.memory_space<smem>>
    %41 = vector.broadcast %40 : f32 to vector<16x36xf32>
    %42 = arith.mulf %41, %27 : vector<16x36xf32>
    %43 = arith.addf %25, %42 : vector<16x36xf32>
    %c0_25 = arith.constant 0 : index
    %c0_26 = arith.constant 0 : index
    %c1_27 = arith.constant 1 : index
    %44 = vector.load %arg7[%c0_25, %c0_26, %c1_27] : memref<4x18x38xf32, #tpu.memory_space<vmem>>, vector<1x16x36xf32>
    %45 = vector.shape_cast %44 : vector<1x16x36xf32> to vector<16x36xf32>
    %c1_28 = arith.constant 1 : index
    %46 = memref.load %arg2[%c1_28] : memref<144xf32, #tpu.memory_space<smem>>
    %47 = vector.broadcast %46 : f32 to vector<16x36xf32>
    %48 = arith.mulf %47, %45 : vector<16x36xf32>
    %49 = arith.addf %31, %48 : vector<16x36xf32>
    %c37 = arith.constant 37 : index
    %50 = memref.load %arg2[%c37] : memref<144xf32, #tpu.memory_space<smem>>
    %51 = vector.broadcast %50 : f32 to vector<16x36xf32>
    %52 = arith.mulf %51, %45 : vector<16x36xf32>
    %53 = arith.addf %35, %52 : vector<16x36xf32>
    %c73 = arith.constant 73 : index
    %54 = memref.load %arg2[%c73] : memref<144xf32, #tpu.memory_space<smem>>
    %55 = vector.broadcast %54 : f32 to vector<16x36xf32>
    %56 = arith.mulf %55, %45 : vector<16x36xf32>
    %57 = arith.addf %39, %56 : vector<16x36xf32>
    %c109 = arith.constant 109 : index
    %58 = memref.load %arg2[%c109] : memref<144xf32, #tpu.memory_space<smem>>
    %59 = vector.broadcast %58 : f32 to vector<16x36xf32>
    %60 = arith.mulf %59, %45 : vector<16x36xf32>
    %61 = arith.addf %43, %60 : vector<16x36xf32>
    %c0_29 = arith.constant 0 : index
    %c0_30 = arith.constant 0 : index
    %c2_31 = arith.constant 2 : index
    %62 = vector.load %arg7[%c0_29, %c0_30, %c2_31] : memref<4x18x38xf32, #tpu.memory_space<vmem>>, vector<1x16x36xf32>
    %63 = vector.shape_cast %62 : vector<1x16x36xf32> to vector<16x36xf32>
    %c2_32 = arith.constant 2 : index
    %64 = memref.load %arg2[%c2_32] : memref<144xf32, #tpu.memory_space<smem>>
    %65 = vector.broadcast %64 : f32 to vector<16x36xf32>
    %66 = arith.mulf %65, %63 : vector<16x36xf32>
    %67 = arith.addf %49, %66 : vector<16x36xf32>
    %c38 = arith.constant 38 : index
    %68 = memref.load %arg2[%c38] : memref<144xf32, #tpu.memory_space<smem>>
    %69 = vector.broadcast %68 : f32 to vector<16x36xf32>
    %70 = arith.mulf %69, %63 : vector<16x36xf32>
    %71 = arith.addf %53, %70 : vector<16x36xf32>
    %c74 = arith.constant 74 : index
    %72 = memref.load %arg2[%c74] : memref<144xf32, #tpu.memory_space<smem>>
    %73 = vector.broadcast %72 : f32 to vector<16x36xf32>
    %74 = arith.mulf %73, %63 : vector<16x36xf32>
    %75 = arith.addf %57, %74 : vector<16x36xf32>
    %c110 = arith.constant 110 : index
    %76 = memref.load %arg2[%c110] : memref<144xf32, #tpu.memory_space<smem>>
    %77 = vector.broadcast %76 : f32 to vector<16x36xf32>
    %78 = arith.mulf %77, %63 : vector<16x36xf32>
    %79 = arith.addf %61, %78 : vector<16x36xf32>
    %c0_33 = arith.constant 0 : index
    %c1_34 = arith.constant 1 : index
    %c0_35 = arith.constant 0 : index
    %80 = vector.load %arg7[%c0_33, %c1_34, %c0_35] : memref<4x18x38xf32, #tpu.memory_space<vmem>>, vector<1x16x36xf32>
    %81 = vector.shape_cast %80 : vector<1x16x36xf32> to vector<16x36xf32>
    %c3 = arith.constant 3 : index
    %82 = memref.load %arg2[%c3] : memref<144xf32, #tpu.memory_space<smem>>
    %83 = vector.broadcast %82 : f32 to vector<16x36xf32>
    %84 = arith.mulf %83, %81 : vector<16x36xf32>
    %85 = arith.addf %67, %84 : vector<16x36xf32>
    %c39 = arith.constant 39 : index
    %86 = memref.load %arg2[%c39] : memref<144xf32, #tpu.memory_space<smem>>
    %87 = vector.broadcast %86 : f32 to vector<16x36xf32>
    %88 = arith.mulf %87, %81 : vector<16x36xf32>
    %89 = arith.addf %71, %88 : vector<16x36xf32>
    %c75 = arith.constant 75 : index
    %90 = memref.load %arg2[%c75] : memref<144xf32, #tpu.memory_space<smem>>
    %91 = vector.broadcast %90 : f32 to vector<16x36xf32>
    %92 = arith.mulf %91, %81 : vector<16x36xf32>
    %93 = arith.addf %75, %92 : vector<16x36xf32>
    %c111 = arith.constant 111 : index
    %94 = memref.load %arg2[%c111] : memref<144xf32, #tpu.memory_space<smem>>
    %95 = vector.broadcast %94 : f32 to vector<16x36xf32>
    %96 = arith.mulf %95, %81 : vector<16x36xf32>
    %97 = arith.addf %79, %96 : vector<16x36xf32>
    %c0_36 = arith.constant 0 : index
    %c1_37 = arith.constant 1 : index
    %c1_38 = arith.constant 1 : index
    %98 = vector.load %arg7[%c0_36, %c1_37, %c1_38] : memref<4x18x38xf32, #tpu.memory_space<vmem>>, vector<1x16x36xf32>
    %99 = vector.shape_cast %98 : vector<1x16x36xf32> to vector<16x36xf32>
    %c4 = arith.constant 4 : index
    %100 = memref.load %arg2[%c4] : memref<144xf32, #tpu.memory_space<smem>>
    %101 = vector.broadcast %100 : f32 to vector<16x36xf32>
    %102 = arith.mulf %101, %99 : vector<16x36xf32>
    %103 = arith.addf %85, %102 : vector<16x36xf32>
    %c40 = arith.constant 40 : index
    %104 = memref.load %arg2[%c40] : memref<144xf32, #tpu.memory_space<smem>>
    %105 = vector.broadcast %104 : f32 to vector<16x36xf32>
    %106 = arith.mulf %105, %99 : vector<16x36xf32>
    %107 = arith.addf %89, %106 : vector<16x36xf32>
    %c76 = arith.constant 76 : index
    %108 = memref.load %arg2[%c76] : memref<144xf32, #tpu.memory_space<smem>>
    %109 = vector.broadcast %108 : f32 to vector<16x36xf32>
    %110 = arith.mulf %109, %99 : vector<16x36xf32>
    %111 = arith.addf %93, %110 : vector<16x36xf32>
    %c112 = arith.constant 112 : index
    %112 = memref.load %arg2[%c112] : memref<144xf32, #tpu.memory_space<smem>>
    %113 = vector.broadcast %112 : f32 to vector<16x36xf32>
    %114 = arith.mulf %113, %99 : vector<16x36xf32>
    %115 = arith.addf %97, %114 : vector<16x36xf32>
    %c0_39 = arith.constant 0 : index
    %c1_40 = arith.constant 1 : index
    %c2_41 = arith.constant 2 : index
    %116 = vector.load %arg7[%c0_39, %c1_40, %c2_41] : memref<4x18x38xf32, #tpu.memory_space<vmem>>, vector<1x16x36xf32>
    %117 = vector.shape_cast %116 : vector<1x16x36xf32> to vector<16x36xf32>
    %c5 = arith.constant 5 : index
    %118 = memref.load %arg2[%c5] : memref<144xf32, #tpu.memory_space<smem>>
    %119 = vector.broadcast %118 : f32 to vector<16x36xf32>
    %120 = arith.mulf %119, %117 : vector<16x36xf32>
    %121 = arith.addf %103, %120 : vector<16x36xf32>
    %c41 = arith.constant 41 : index
    %122 = memref.load %arg2[%c41] : memref<144xf32, #tpu.memory_space<smem>>
    %123 = vector.broadcast %122 : f32 to vector<16x36xf32>
    %124 = arith.mulf %123, %117 : vector<16x36xf32>
    %125 = arith.addf %107, %124 : vector<16x36xf32>
    %c77 = arith.constant 77 : index
    %126 = memref.load %arg2[%c77] : memref<144xf32, #tpu.memory_space<smem>>
    %127 = vector.broadcast %126 : f32 to vector<16x36xf32>
    %128 = arith.mulf %127, %117 : vector<16x36xf32>
    %129 = arith.addf %111, %128 : vector<16x36xf32>
    %c113 = arith.constant 113 : index
    %130 = memref.load %arg2[%c113] : memref<144xf32, #tpu.memory_space<smem>>
    %131 = vector.broadcast %130 : f32 to vector<16x36xf32>
    %132 = arith.mulf %131, %117 : vector<16x36xf32>
    %133 = arith.addf %115, %132 : vector<16x36xf32>
    %c0_42 = arith.constant 0 : index
    %c2_43 = arith.constant 2 : index
    %c0_44 = arith.constant 0 : index
    %134 = vector.load %arg7[%c0_42, %c2_43, %c0_44] : memref<4x18x38xf32, #tpu.memory_space<vmem>>, vector<1x16x36xf32>
    %135 = vector.shape_cast %134 : vector<1x16x36xf32> to vector<16x36xf32>
    %c6 = arith.constant 6 : index
    %136 = memref.load %arg2[%c6] : memref<144xf32, #tpu.memory_space<smem>>
    %137 = vector.broadcast %136 : f32 to vector<16x36xf32>
    %138 = arith.mulf %137, %135 : vector<16x36xf32>
    %139 = arith.addf %121, %138 : vector<16x36xf32>
    %c42 = arith.constant 42 : index
    %140 = memref.load %arg2[%c42] : memref<144xf32, #tpu.memory_space<smem>>
    %141 = vector.broadcast %140 : f32 to vector<16x36xf32>
    %142 = arith.mulf %141, %135 : vector<16x36xf32>
    %143 = arith.addf %125, %142 : vector<16x36xf32>
    %c78 = arith.constant 78 : index
    %144 = memref.load %arg2[%c78] : memref<144xf32, #tpu.memory_space<smem>>
    %145 = vector.broadcast %144 : f32 to vector<16x36xf32>
    %146 = arith.mulf %145, %135 : vector<16x36xf32>
    %147 = arith.addf %129, %146 : vector<16x36xf32>
    %c114 = arith.constant 114 : index
    %148 = memref.load %arg2[%c114] : memref<144xf32, #tpu.memory_space<smem>>
    %149 = vector.broadcast %148 : f32 to vector<16x36xf32>
    %150 = arith.mulf %149, %135 : vector<16x36xf32>
    %151 = arith.addf %133, %150 : vector<16x36xf32>
    %c0_45 = arith.constant 0 : index
    %c2_46 = arith.constant 2 : index
    %c1_47 = arith.constant 1 : index
    %152 = vector.load %arg7[%c0_45, %c2_46, %c1_47] : memref<4x18x38xf32, #tpu.memory_space<vmem>>, vector<1x16x36xf32>
    %153 = vector.shape_cast %152 : vector<1x16x36xf32> to vector<16x36xf32>
    %c7 = arith.constant 7 : index
    %154 = memref.load %arg2[%c7] : memref<144xf32, #tpu.memory_space<smem>>
    %155 = vector.broadcast %154 : f32 to vector<16x36xf32>
    %156 = arith.mulf %155, %153 : vector<16x36xf32>
    %157 = arith.addf %139, %156 : vector<16x36xf32>
    %c43 = arith.constant 43 : index
    %158 = memref.load %arg2[%c43] : memref<144xf32, #tpu.memory_space<smem>>
    %159 = vector.broadcast %158 : f32 to vector<16x36xf32>
    %160 = arith.mulf %159, %153 : vector<16x36xf32>
    %161 = arith.addf %143, %160 : vector<16x36xf32>
    %c79 = arith.constant 79 : index
    %162 = memref.load %arg2[%c79] : memref<144xf32, #tpu.memory_space<smem>>
    %163 = vector.broadcast %162 : f32 to vector<16x36xf32>
    %164 = arith.mulf %163, %153 : vector<16x36xf32>
    %165 = arith.addf %147, %164 : vector<16x36xf32>
    %c115 = arith.constant 115 : index
    %166 = memref.load %arg2[%c115] : memref<144xf32, #tpu.memory_space<smem>>
    %167 = vector.broadcast %166 : f32 to vector<16x36xf32>
    %168 = arith.mulf %167, %153 : vector<16x36xf32>
    %169 = arith.addf %151, %168 : vector<16x36xf32>
    %c0_48 = arith.constant 0 : index
    %c2_49 = arith.constant 2 : index
    %c2_50 = arith.constant 2 : index
    %170 = vector.load %arg7[%c0_48, %c2_49, %c2_50] : memref<4x18x38xf32, #tpu.memory_space<vmem>>, vector<1x16x36xf32>
    %171 = vector.shape_cast %170 : vector<1x16x36xf32> to vector<16x36xf32>
    %c8 = arith.constant 8 : index
    %172 = memref.load %arg2[%c8] : memref<144xf32, #tpu.memory_space<smem>>
    %173 = vector.broadcast %172 : f32 to vector<16x36xf32>
    %174 = arith.mulf %173, %171 : vector<16x36xf32>
    %175 = arith.addf %157, %174 : vector<16x36xf32>
    %c44 = arith.constant 44 : index
    %176 = memref.load %arg2[%c44] : memref<144xf32, #tpu.memory_space<smem>>
    %177 = vector.broadcast %176 : f32 to vector<16x36xf32>
    %178 = arith.mulf %177, %171 : vector<16x36xf32>
    %179 = arith.addf %161, %178 : vector<16x36xf32>
    %c80 = arith.constant 80 : index
    %180 = memref.load %arg2[%c80] : memref<144xf32, #tpu.memory_space<smem>>
    %181 = vector.broadcast %180 : f32 to vector<16x36xf32>
    %182 = arith.mulf %181, %171 : vector<16x36xf32>
    %183 = arith.addf %165, %182 : vector<16x36xf32>
    %c116 = arith.constant 116 : index
    %184 = memref.load %arg2[%c116] : memref<144xf32, #tpu.memory_space<smem>>
    %185 = vector.broadcast %184 : f32 to vector<16x36xf32>
    %186 = arith.mulf %185, %171 : vector<16x36xf32>
    %187 = arith.addf %169, %186 : vector<16x36xf32>
    %c1_51 = arith.constant 1 : index
    %c0_52 = arith.constant 0 : index
    %c0_53 = arith.constant 0 : index
    %188 = vector.load %arg7[%c1_51, %c0_52, %c0_53] : memref<4x18x38xf32, #tpu.memory_space<vmem>>, vector<1x16x36xf32>
    %189 = vector.shape_cast %188 : vector<1x16x36xf32> to vector<16x36xf32>
    %c9 = arith.constant 9 : index
    %190 = memref.load %arg2[%c9] : memref<144xf32, #tpu.memory_space<smem>>
    %191 = vector.broadcast %190 : f32 to vector<16x36xf32>
    %192 = arith.mulf %191, %189 : vector<16x36xf32>
    %193 = arith.addf %175, %192 : vector<16x36xf32>
    %c45 = arith.constant 45 : index
    %194 = memref.load %arg2[%c45] : memref<144xf32, #tpu.memory_space<smem>>
    %195 = vector.broadcast %194 : f32 to vector<16x36xf32>
    %196 = arith.mulf %195, %189 : vector<16x36xf32>
    %197 = arith.addf %179, %196 : vector<16x36xf32>
    %c81 = arith.constant 81 : index
    %198 = memref.load %arg2[%c81] : memref<144xf32, #tpu.memory_space<smem>>
    %199 = vector.broadcast %198 : f32 to vector<16x36xf32>
    %200 = arith.mulf %199, %189 : vector<16x36xf32>
    %201 = arith.addf %183, %200 : vector<16x36xf32>
    %c117 = arith.constant 117 : index
    %202 = memref.load %arg2[%c117] : memref<144xf32, #tpu.memory_space<smem>>
    %203 = vector.broadcast %202 : f32 to vector<16x36xf32>
    %204 = arith.mulf %203, %189 : vector<16x36xf32>
    %205 = arith.addf %187, %204 : vector<16x36xf32>
    %c1_54 = arith.constant 1 : index
    %c0_55 = arith.constant 0 : index
    %c1_56 = arith.constant 1 : index
    %206 = vector.load %arg7[%c1_54, %c0_55, %c1_56] : memref<4x18x38xf32, #tpu.memory_space<vmem>>, vector<1x16x36xf32>
    %207 = vector.shape_cast %206 : vector<1x16x36xf32> to vector<16x36xf32>
    %c10 = arith.constant 10 : index
    %208 = memref.load %arg2[%c10] : memref<144xf32, #tpu.memory_space<smem>>
    %209 = vector.broadcast %208 : f32 to vector<16x36xf32>
    %210 = arith.mulf %209, %207 : vector<16x36xf32>
    %211 = arith.addf %193, %210 : vector<16x36xf32>
    %c46 = arith.constant 46 : index
    %212 = memref.load %arg2[%c46] : memref<144xf32, #tpu.memory_space<smem>>
    %213 = vector.broadcast %212 : f32 to vector<16x36xf32>
    %214 = arith.mulf %213, %207 : vector<16x36xf32>
    %215 = arith.addf %197, %214 : vector<16x36xf32>
    %c82 = arith.constant 82 : index
    %216 = memref.load %arg2[%c82] : memref<144xf32, #tpu.memory_space<smem>>
    %217 = vector.broadcast %216 : f32 to vector<16x36xf32>
    %218 = arith.mulf %217, %207 : vector<16x36xf32>
    %219 = arith.addf %201, %218 : vector<16x36xf32>
    %c118 = arith.constant 118 : index
    %220 = memref.load %arg2[%c118] : memref<144xf32, #tpu.memory_space<smem>>
    %221 = vector.broadcast %220 : f32 to vector<16x36xf32>
    %222 = arith.mulf %221, %207 : vector<16x36xf32>
    %223 = arith.addf %205, %222 : vector<16x36xf32>
    %c1_57 = arith.constant 1 : index
    %c0_58 = arith.constant 0 : index
    %c2_59 = arith.constant 2 : index
    %224 = vector.load %arg7[%c1_57, %c0_58, %c2_59] : memref<4x18x38xf32, #tpu.memory_space<vmem>>, vector<1x16x36xf32>
    %225 = vector.shape_cast %224 : vector<1x16x36xf32> to vector<16x36xf32>
    %c11 = arith.constant 11 : index
    %226 = memref.load %arg2[%c11] : memref<144xf32, #tpu.memory_space<smem>>
    %227 = vector.broadcast %226 : f32 to vector<16x36xf32>
    %228 = arith.mulf %227, %225 : vector<16x36xf32>
    %229 = arith.addf %211, %228 : vector<16x36xf32>
    %c47 = arith.constant 47 : index
    %230 = memref.load %arg2[%c47] : memref<144xf32, #tpu.memory_space<smem>>
    %231 = vector.broadcast %230 : f32 to vector<16x36xf32>
    %232 = arith.mulf %231, %225 : vector<16x36xf32>
    %233 = arith.addf %215, %232 : vector<16x36xf32>
    %c83 = arith.constant 83 : index
    %234 = memref.load %arg2[%c83] : memref<144xf32, #tpu.memory_space<smem>>
    %235 = vector.broadcast %234 : f32 to vector<16x36xf32>
    %236 = arith.mulf %235, %225 : vector<16x36xf32>
    %237 = arith.addf %219, %236 : vector<16x36xf32>
    %c119 = arith.constant 119 : index
    %238 = memref.load %arg2[%c119] : memref<144xf32, #tpu.memory_space<smem>>
    %239 = vector.broadcast %238 : f32 to vector<16x36xf32>
    %240 = arith.mulf %239, %225 : vector<16x36xf32>
    %241 = arith.addf %223, %240 : vector<16x36xf32>
    %c1_60 = arith.constant 1 : index
    %c1_61 = arith.constant 1 : index
    %c0_62 = arith.constant 0 : index
    %242 = vector.load %arg7[%c1_60, %c1_61, %c0_62] : memref<4x18x38xf32, #tpu.memory_space<vmem>>, vector<1x16x36xf32>
    %243 = vector.shape_cast %242 : vector<1x16x36xf32> to vector<16x36xf32>
    %c12 = arith.constant 12 : index
    %244 = memref.load %arg2[%c12] : memref<144xf32, #tpu.memory_space<smem>>
    %245 = vector.broadcast %244 : f32 to vector<16x36xf32>
    %246 = arith.mulf %245, %243 : vector<16x36xf32>
    %247 = arith.addf %229, %246 : vector<16x36xf32>
    %c48 = arith.constant 48 : index
    %248 = memref.load %arg2[%c48] : memref<144xf32, #tpu.memory_space<smem>>
    %249 = vector.broadcast %248 : f32 to vector<16x36xf32>
    %250 = arith.mulf %249, %243 : vector<16x36xf32>
    %251 = arith.addf %233, %250 : vector<16x36xf32>
    %c84 = arith.constant 84 : index
    %252 = memref.load %arg2[%c84] : memref<144xf32, #tpu.memory_space<smem>>
    %253 = vector.broadcast %252 : f32 to vector<16x36xf32>
    %254 = arith.mulf %253, %243 : vector<16x36xf32>
    %255 = arith.addf %237, %254 : vector<16x36xf32>
    %c120 = arith.constant 120 : index
    %256 = memref.load %arg2[%c120] : memref<144xf32, #tpu.memory_space<smem>>
    %257 = vector.broadcast %256 : f32 to vector<16x36xf32>
    %258 = arith.mulf %257, %243 : vector<16x36xf32>
    %259 = arith.addf %241, %258 : vector<16x36xf32>
    %c1_63 = arith.constant 1 : index
    %c1_64 = arith.constant 1 : index
    %c1_65 = arith.constant 1 : index
    %260 = vector.load %arg7[%c1_63, %c1_64, %c1_65] : memref<4x18x38xf32, #tpu.memory_space<vmem>>, vector<1x16x36xf32>
    %261 = vector.shape_cast %260 : vector<1x16x36xf32> to vector<16x36xf32>
    %c13 = arith.constant 13 : index
    %262 = memref.load %arg2[%c13] : memref<144xf32, #tpu.memory_space<smem>>
    %263 = vector.broadcast %262 : f32 to vector<16x36xf32>
    %264 = arith.mulf %263, %261 : vector<16x36xf32>
    %265 = arith.addf %247, %264 : vector<16x36xf32>
    %c49 = arith.constant 49 : index
    %266 = memref.load %arg2[%c49] : memref<144xf32, #tpu.memory_space<smem>>
    %267 = vector.broadcast %266 : f32 to vector<16x36xf32>
    %268 = arith.mulf %267, %261 : vector<16x36xf32>
    %269 = arith.addf %251, %268 : vector<16x36xf32>
    %c85 = arith.constant 85 : index
    %270 = memref.load %arg2[%c85] : memref<144xf32, #tpu.memory_space<smem>>
    %271 = vector.broadcast %270 : f32 to vector<16x36xf32>
    %272 = arith.mulf %271, %261 : vector<16x36xf32>
    %273 = arith.addf %255, %272 : vector<16x36xf32>
    %c121 = arith.constant 121 : index
    %274 = memref.load %arg2[%c121] : memref<144xf32, #tpu.memory_space<smem>>
    %275 = vector.broadcast %274 : f32 to vector<16x36xf32>
    %276 = arith.mulf %275, %261 : vector<16x36xf32>
    %277 = arith.addf %259, %276 : vector<16x36xf32>
    %c1_66 = arith.constant 1 : index
    %c1_67 = arith.constant 1 : index
    %c2_68 = arith.constant 2 : index
    %278 = vector.load %arg7[%c1_66, %c1_67, %c2_68] : memref<4x18x38xf32, #tpu.memory_space<vmem>>, vector<1x16x36xf32>
    %279 = vector.shape_cast %278 : vector<1x16x36xf32> to vector<16x36xf32>
    %c14 = arith.constant 14 : index
    %280 = memref.load %arg2[%c14] : memref<144xf32, #tpu.memory_space<smem>>
    %281 = vector.broadcast %280 : f32 to vector<16x36xf32>
    %282 = arith.mulf %281, %279 : vector<16x36xf32>
    %283 = arith.addf %265, %282 : vector<16x36xf32>
    %c50 = arith.constant 50 : index
    %284 = memref.load %arg2[%c50] : memref<144xf32, #tpu.memory_space<smem>>
    %285 = vector.broadcast %284 : f32 to vector<16x36xf32>
    %286 = arith.mulf %285, %279 : vector<16x36xf32>
    %287 = arith.addf %269, %286 : vector<16x36xf32>
    %c86 = arith.constant 86 : index
    %288 = memref.load %arg2[%c86] : memref<144xf32, #tpu.memory_space<smem>>
    %289 = vector.broadcast %288 : f32 to vector<16x36xf32>
    %290 = arith.mulf %289, %279 : vector<16x36xf32>
    %291 = arith.addf %273, %290 : vector<16x36xf32>
    %c122 = arith.constant 122 : index
    %292 = memref.load %arg2[%c122] : memref<144xf32, #tpu.memory_space<smem>>
    %293 = vector.broadcast %292 : f32 to vector<16x36xf32>
    %294 = arith.mulf %293, %279 : vector<16x36xf32>
    %295 = arith.addf %277, %294 : vector<16x36xf32>
    %c1_69 = arith.constant 1 : index
    %c2_70 = arith.constant 2 : index
    %c0_71 = arith.constant 0 : index
    %296 = vector.load %arg7[%c1_69, %c2_70, %c0_71] : memref<4x18x38xf32, #tpu.memory_space<vmem>>, vector<1x16x36xf32>
    %297 = vector.shape_cast %296 : vector<1x16x36xf32> to vector<16x36xf32>
    %c15 = arith.constant 15 : index
    %298 = memref.load %arg2[%c15] : memref<144xf32, #tpu.memory_space<smem>>
    %299 = vector.broadcast %298 : f32 to vector<16x36xf32>
    %300 = arith.mulf %299, %297 : vector<16x36xf32>
    %301 = arith.addf %283, %300 : vector<16x36xf32>
    %c51 = arith.constant 51 : index
    %302 = memref.load %arg2[%c51] : memref<144xf32, #tpu.memory_space<smem>>
    %303 = vector.broadcast %302 : f32 to vector<16x36xf32>
    %304 = arith.mulf %303, %297 : vector<16x36xf32>
    %305 = arith.addf %287, %304 : vector<16x36xf32>
    %c87 = arith.constant 87 : index
    %306 = memref.load %arg2[%c87] : memref<144xf32, #tpu.memory_space<smem>>
    %307 = vector.broadcast %306 : f32 to vector<16x36xf32>
    %308 = arith.mulf %307, %297 : vector<16x36xf32>
    %309 = arith.addf %291, %308 : vector<16x36xf32>
    %c123 = arith.constant 123 : index
    %310 = memref.load %arg2[%c123] : memref<144xf32, #tpu.memory_space<smem>>
    %311 = vector.broadcast %310 : f32 to vector<16x36xf32>
    %312 = arith.mulf %311, %297 : vector<16x36xf32>
    %313 = arith.addf %295, %312 : vector<16x36xf32>
    %c1_72 = arith.constant 1 : index
    %c2_73 = arith.constant 2 : index
    %c1_74 = arith.constant 1 : index
    %314 = vector.load %arg7[%c1_72, %c2_73, %c1_74] : memref<4x18x38xf32, #tpu.memory_space<vmem>>, vector<1x16x36xf32>
    %315 = vector.shape_cast %314 : vector<1x16x36xf32> to vector<16x36xf32>
    %c16 = arith.constant 16 : index
    %316 = memref.load %arg2[%c16] : memref<144xf32, #tpu.memory_space<smem>>
    %317 = vector.broadcast %316 : f32 to vector<16x36xf32>
    %318 = arith.mulf %317, %315 : vector<16x36xf32>
    %319 = arith.addf %301, %318 : vector<16x36xf32>
    %c52 = arith.constant 52 : index
    %320 = memref.load %arg2[%c52] : memref<144xf32, #tpu.memory_space<smem>>
    %321 = vector.broadcast %320 : f32 to vector<16x36xf32>
    %322 = arith.mulf %321, %315 : vector<16x36xf32>
    %323 = arith.addf %305, %322 : vector<16x36xf32>
    %c88 = arith.constant 88 : index
    %324 = memref.load %arg2[%c88] : memref<144xf32, #tpu.memory_space<smem>>
    %325 = vector.broadcast %324 : f32 to vector<16x36xf32>
    %326 = arith.mulf %325, %315 : vector<16x36xf32>
    %327 = arith.addf %309, %326 : vector<16x36xf32>
    %c124 = arith.constant 124 : index
    %328 = memref.load %arg2[%c124] : memref<144xf32, #tpu.memory_space<smem>>
    %329 = vector.broadcast %328 : f32 to vector<16x36xf32>
    %330 = arith.mulf %329, %315 : vector<16x36xf32>
    %331 = arith.addf %313, %330 : vector<16x36xf32>
    %c1_75 = arith.constant 1 : index
    %c2_76 = arith.constant 2 : index
    %c2_77 = arith.constant 2 : index
    %332 = vector.load %arg7[%c1_75, %c2_76, %c2_77] : memref<4x18x38xf32, #tpu.memory_space<vmem>>, vector<1x16x36xf32>
    %333 = vector.shape_cast %332 : vector<1x16x36xf32> to vector<16x36xf32>
    %c17 = arith.constant 17 : index
    %334 = memref.load %arg2[%c17] : memref<144xf32, #tpu.memory_space<smem>>
    %335 = vector.broadcast %334 : f32 to vector<16x36xf32>
    %336 = arith.mulf %335, %333 : vector<16x36xf32>
    %337 = arith.addf %319, %336 : vector<16x36xf32>
    %c53 = arith.constant 53 : index
    %338 = memref.load %arg2[%c53] : memref<144xf32, #tpu.memory_space<smem>>
    %339 = vector.broadcast %338 : f32 to vector<16x36xf32>
    %340 = arith.mulf %339, %333 : vector<16x36xf32>
    %341 = arith.addf %323, %340 : vector<16x36xf32>
    %c89 = arith.constant 89 : index
    %342 = memref.load %arg2[%c89] : memref<144xf32, #tpu.memory_space<smem>>
    %343 = vector.broadcast %342 : f32 to vector<16x36xf32>
    %344 = arith.mulf %343, %333 : vector<16x36xf32>
    %345 = arith.addf %327, %344 : vector<16x36xf32>
    %c125 = arith.constant 125 : index
    %346 = memref.load %arg2[%c125] : memref<144xf32, #tpu.memory_space<smem>>
    %347 = vector.broadcast %346 : f32 to vector<16x36xf32>
    %348 = arith.mulf %347, %333 : vector<16x36xf32>
    %349 = arith.addf %331, %348 : vector<16x36xf32>
    %c2_78 = arith.constant 2 : index
    %c0_79 = arith.constant 0 : index
    %c0_80 = arith.constant 0 : index
    %350 = vector.load %arg7[%c2_78, %c0_79, %c0_80] : memref<4x18x38xf32, #tpu.memory_space<vmem>>, vector<1x16x36xf32>
    %351 = vector.shape_cast %350 : vector<1x16x36xf32> to vector<16x36xf32>
    %c18 = arith.constant 18 : index
    %352 = memref.load %arg2[%c18] : memref<144xf32, #tpu.memory_space<smem>>
    %353 = vector.broadcast %352 : f32 to vector<16x36xf32>
    %354 = arith.mulf %353, %351 : vector<16x36xf32>
    %355 = arith.addf %337, %354 : vector<16x36xf32>
    %c54 = arith.constant 54 : index
    %356 = memref.load %arg2[%c54] : memref<144xf32, #tpu.memory_space<smem>>
    %357 = vector.broadcast %356 : f32 to vector<16x36xf32>
    %358 = arith.mulf %357, %351 : vector<16x36xf32>
    %359 = arith.addf %341, %358 : vector<16x36xf32>
    %c90 = arith.constant 90 : index
    %360 = memref.load %arg2[%c90] : memref<144xf32, #tpu.memory_space<smem>>
    %361 = vector.broadcast %360 : f32 to vector<16x36xf32>
    %362 = arith.mulf %361, %351 : vector<16x36xf32>
    %363 = arith.addf %345, %362 : vector<16x36xf32>
    %c126 = arith.constant 126 : index
    %364 = memref.load %arg2[%c126] : memref<144xf32, #tpu.memory_space<smem>>
    %365 = vector.broadcast %364 : f32 to vector<16x36xf32>
    %366 = arith.mulf %365, %351 : vector<16x36xf32>
    %367 = arith.addf %349, %366 : vector<16x36xf32>
    %c2_81 = arith.constant 2 : index
    %c0_82 = arith.constant 0 : index
    %c1_83 = arith.constant 1 : index
    %368 = vector.load %arg7[%c2_81, %c0_82, %c1_83] : memref<4x18x38xf32, #tpu.memory_space<vmem>>, vector<1x16x36xf32>
    %369 = vector.shape_cast %368 : vector<1x16x36xf32> to vector<16x36xf32>
    %c19 = arith.constant 19 : index
    %370 = memref.load %arg2[%c19] : memref<144xf32, #tpu.memory_space<smem>>
    %371 = vector.broadcast %370 : f32 to vector<16x36xf32>
    %372 = arith.mulf %371, %369 : vector<16x36xf32>
    %373 = arith.addf %355, %372 : vector<16x36xf32>
    %c55 = arith.constant 55 : index
    %374 = memref.load %arg2[%c55] : memref<144xf32, #tpu.memory_space<smem>>
    %375 = vector.broadcast %374 : f32 to vector<16x36xf32>
    %376 = arith.mulf %375, %369 : vector<16x36xf32>
    %377 = arith.addf %359, %376 : vector<16x36xf32>
    %c91 = arith.constant 91 : index
    %378 = memref.load %arg2[%c91] : memref<144xf32, #tpu.memory_space<smem>>
    %379 = vector.broadcast %378 : f32 to vector<16x36xf32>
    %380 = arith.mulf %379, %369 : vector<16x36xf32>
    %381 = arith.addf %363, %380 : vector<16x36xf32>
    %c127 = arith.constant 127 : index
    %382 = memref.load %arg2[%c127] : memref<144xf32, #tpu.memory_space<smem>>
    %383 = vector.broadcast %382 : f32 to vector<16x36xf32>
    %384 = arith.mulf %383, %369 : vector<16x36xf32>
    %385 = arith.addf %367, %384 : vector<16x36xf32>
    %c2_84 = arith.constant 2 : index
    %c0_85 = arith.constant 0 : index
    %c2_86 = arith.constant 2 : index
    %386 = vector.load %arg7[%c2_84, %c0_85, %c2_86] : memref<4x18x38xf32, #tpu.memory_space<vmem>>, vector<1x16x36xf32>
    %387 = vector.shape_cast %386 : vector<1x16x36xf32> to vector<16x36xf32>
    %c20_87 = arith.constant 20 : index
    %388 = memref.load %arg2[%c20_87] : memref<144xf32, #tpu.memory_space<smem>>
    %389 = vector.broadcast %388 : f32 to vector<16x36xf32>
    %390 = arith.mulf %389, %387 : vector<16x36xf32>
    %391 = arith.addf %373, %390 : vector<16x36xf32>
    %c56 = arith.constant 56 : index
    %392 = memref.load %arg2[%c56] : memref<144xf32, #tpu.memory_space<smem>>
    %393 = vector.broadcast %392 : f32 to vector<16x36xf32>
    %394 = arith.mulf %393, %387 : vector<16x36xf32>
    %395 = arith.addf %377, %394 : vector<16x36xf32>
    %c92 = arith.constant 92 : index
    %396 = memref.load %arg2[%c92] : memref<144xf32, #tpu.memory_space<smem>>
    %397 = vector.broadcast %396 : f32 to vector<16x36xf32>
    %398 = arith.mulf %397, %387 : vector<16x36xf32>
    %399 = arith.addf %381, %398 : vector<16x36xf32>
    %c128 = arith.constant 128 : index
    %400 = memref.load %arg2[%c128] : memref<144xf32, #tpu.memory_space<smem>>
    %401 = vector.broadcast %400 : f32 to vector<16x36xf32>
    %402 = arith.mulf %401, %387 : vector<16x36xf32>
    %403 = arith.addf %385, %402 : vector<16x36xf32>
    %c2_88 = arith.constant 2 : index
    %c1_89 = arith.constant 1 : index
    %c0_90 = arith.constant 0 : index
    %404 = vector.load %arg7[%c2_88, %c1_89, %c0_90] : memref<4x18x38xf32, #tpu.memory_space<vmem>>, vector<1x16x36xf32>
    %405 = vector.shape_cast %404 : vector<1x16x36xf32> to vector<16x36xf32>
    %c21 = arith.constant 21 : index
    %406 = memref.load %arg2[%c21] : memref<144xf32, #tpu.memory_space<smem>>
    %407 = vector.broadcast %406 : f32 to vector<16x36xf32>
    %408 = arith.mulf %407, %405 : vector<16x36xf32>
    %409 = arith.addf %391, %408 : vector<16x36xf32>
    %c57 = arith.constant 57 : index
    %410 = memref.load %arg2[%c57] : memref<144xf32, #tpu.memory_space<smem>>
    %411 = vector.broadcast %410 : f32 to vector<16x36xf32>
    %412 = arith.mulf %411, %405 : vector<16x36xf32>
    %413 = arith.addf %395, %412 : vector<16x36xf32>
    %c93 = arith.constant 93 : index
    %414 = memref.load %arg2[%c93] : memref<144xf32, #tpu.memory_space<smem>>
    %415 = vector.broadcast %414 : f32 to vector<16x36xf32>
    %416 = arith.mulf %415, %405 : vector<16x36xf32>
    %417 = arith.addf %399, %416 : vector<16x36xf32>
    %c129 = arith.constant 129 : index
    %418 = memref.load %arg2[%c129] : memref<144xf32, #tpu.memory_space<smem>>
    %419 = vector.broadcast %418 : f32 to vector<16x36xf32>
    %420 = arith.mulf %419, %405 : vector<16x36xf32>
    %421 = arith.addf %403, %420 : vector<16x36xf32>
    %c2_91 = arith.constant 2 : index
    %c1_92 = arith.constant 1 : index
    %c1_93 = arith.constant 1 : index
    %422 = vector.load %arg7[%c2_91, %c1_92, %c1_93] : memref<4x18x38xf32, #tpu.memory_space<vmem>>, vector<1x16x36xf32>
    %423 = vector.shape_cast %422 : vector<1x16x36xf32> to vector<16x36xf32>
    %c22 = arith.constant 22 : index
    %424 = memref.load %arg2[%c22] : memref<144xf32, #tpu.memory_space<smem>>
    %425 = vector.broadcast %424 : f32 to vector<16x36xf32>
    %426 = arith.mulf %425, %423 : vector<16x36xf32>
    %427 = arith.addf %409, %426 : vector<16x36xf32>
    %c58 = arith.constant 58 : index
    %428 = memref.load %arg2[%c58] : memref<144xf32, #tpu.memory_space<smem>>
    %429 = vector.broadcast %428 : f32 to vector<16x36xf32>
    %430 = arith.mulf %429, %423 : vector<16x36xf32>
    %431 = arith.addf %413, %430 : vector<16x36xf32>
    %c94 = arith.constant 94 : index
    %432 = memref.load %arg2[%c94] : memref<144xf32, #tpu.memory_space<smem>>
    %433 = vector.broadcast %432 : f32 to vector<16x36xf32>
    %434 = arith.mulf %433, %423 : vector<16x36xf32>
    %435 = arith.addf %417, %434 : vector<16x36xf32>
    %c130 = arith.constant 130 : index
    %436 = memref.load %arg2[%c130] : memref<144xf32, #tpu.memory_space<smem>>
    %437 = vector.broadcast %436 : f32 to vector<16x36xf32>
    %438 = arith.mulf %437, %423 : vector<16x36xf32>
    %439 = arith.addf %421, %438 : vector<16x36xf32>
    %c2_94 = arith.constant 2 : index
    %c1_95 = arith.constant 1 : index
    %c2_96 = arith.constant 2 : index
    %440 = vector.load %arg7[%c2_94, %c1_95, %c2_96] : memref<4x18x38xf32, #tpu.memory_space<vmem>>, vector<1x16x36xf32>
    %441 = vector.shape_cast %440 : vector<1x16x36xf32> to vector<16x36xf32>
    %c23 = arith.constant 23 : index
    %442 = memref.load %arg2[%c23] : memref<144xf32, #tpu.memory_space<smem>>
    %443 = vector.broadcast %442 : f32 to vector<16x36xf32>
    %444 = arith.mulf %443, %441 : vector<16x36xf32>
    %445 = arith.addf %427, %444 : vector<16x36xf32>
    %c59 = arith.constant 59 : index
    %446 = memref.load %arg2[%c59] : memref<144xf32, #tpu.memory_space<smem>>
    %447 = vector.broadcast %446 : f32 to vector<16x36xf32>
    %448 = arith.mulf %447, %441 : vector<16x36xf32>
    %449 = arith.addf %431, %448 : vector<16x36xf32>
    %c95 = arith.constant 95 : index
    %450 = memref.load %arg2[%c95] : memref<144xf32, #tpu.memory_space<smem>>
    %451 = vector.broadcast %450 : f32 to vector<16x36xf32>
    %452 = arith.mulf %451, %441 : vector<16x36xf32>
    %453 = arith.addf %435, %452 : vector<16x36xf32>
    %c131 = arith.constant 131 : index
    %454 = memref.load %arg2[%c131] : memref<144xf32, #tpu.memory_space<smem>>
    %455 = vector.broadcast %454 : f32 to vector<16x36xf32>
    %456 = arith.mulf %455, %441 : vector<16x36xf32>
    %457 = arith.addf %439, %456 : vector<16x36xf32>
    %c2_97 = arith.constant 2 : index
    %c2_98 = arith.constant 2 : index
    %c0_99 = arith.constant 0 : index
    %458 = vector.load %arg7[%c2_97, %c2_98, %c0_99] : memref<4x18x38xf32, #tpu.memory_space<vmem>>, vector<1x16x36xf32>
    %459 = vector.shape_cast %458 : vector<1x16x36xf32> to vector<16x36xf32>
    %c24 = arith.constant 24 : index
    %460 = memref.load %arg2[%c24] : memref<144xf32, #tpu.memory_space<smem>>
    %461 = vector.broadcast %460 : f32 to vector<16x36xf32>
    %462 = arith.mulf %461, %459 : vector<16x36xf32>
    %463 = arith.addf %445, %462 : vector<16x36xf32>
    %c60 = arith.constant 60 : index
    %464 = memref.load %arg2[%c60] : memref<144xf32, #tpu.memory_space<smem>>
    %465 = vector.broadcast %464 : f32 to vector<16x36xf32>
    %466 = arith.mulf %465, %459 : vector<16x36xf32>
    %467 = arith.addf %449, %466 : vector<16x36xf32>
    %c96 = arith.constant 96 : index
    %468 = memref.load %arg2[%c96] : memref<144xf32, #tpu.memory_space<smem>>
    %469 = vector.broadcast %468 : f32 to vector<16x36xf32>
    %470 = arith.mulf %469, %459 : vector<16x36xf32>
    %471 = arith.addf %453, %470 : vector<16x36xf32>
    %c132 = arith.constant 132 : index
    %472 = memref.load %arg2[%c132] : memref<144xf32, #tpu.memory_space<smem>>
    %473 = vector.broadcast %472 : f32 to vector<16x36xf32>
    %474 = arith.mulf %473, %459 : vector<16x36xf32>
    %475 = arith.addf %457, %474 : vector<16x36xf32>
    %c2_100 = arith.constant 2 : index
    %c2_101 = arith.constant 2 : index
    %c1_102 = arith.constant 1 : index
    %476 = vector.load %arg7[%c2_100, %c2_101, %c1_102] : memref<4x18x38xf32, #tpu.memory_space<vmem>>, vector<1x16x36xf32>
    %477 = vector.shape_cast %476 : vector<1x16x36xf32> to vector<16x36xf32>
    %c25 = arith.constant 25 : index
    %478 = memref.load %arg2[%c25] : memref<144xf32, #tpu.memory_space<smem>>
    %479 = vector.broadcast %478 : f32 to vector<16x36xf32>
    %480 = arith.mulf %479, %477 : vector<16x36xf32>
    %481 = arith.addf %463, %480 : vector<16x36xf32>
    %c61 = arith.constant 61 : index
    %482 = memref.load %arg2[%c61] : memref<144xf32, #tpu.memory_space<smem>>
    %483 = vector.broadcast %482 : f32 to vector<16x36xf32>
    %484 = arith.mulf %483, %477 : vector<16x36xf32>
    %485 = arith.addf %467, %484 : vector<16x36xf32>
    %c97 = arith.constant 97 : index
    %486 = memref.load %arg2[%c97] : memref<144xf32, #tpu.memory_space<smem>>
    %487 = vector.broadcast %486 : f32 to vector<16x36xf32>
    %488 = arith.mulf %487, %477 : vector<16x36xf32>
    %489 = arith.addf %471, %488 : vector<16x36xf32>
    %c133 = arith.constant 133 : index
    %490 = memref.load %arg2[%c133] : memref<144xf32, #tpu.memory_space<smem>>
    %491 = vector.broadcast %490 : f32 to vector<16x36xf32>
    %492 = arith.mulf %491, %477 : vector<16x36xf32>
    %493 = arith.addf %475, %492 : vector<16x36xf32>
    %c2_103 = arith.constant 2 : index
    %c2_104 = arith.constant 2 : index
    %c2_105 = arith.constant 2 : index
    %494 = vector.load %arg7[%c2_103, %c2_104, %c2_105] : memref<4x18x38xf32, #tpu.memory_space<vmem>>, vector<1x16x36xf32>
    %495 = vector.shape_cast %494 : vector<1x16x36xf32> to vector<16x36xf32>
    %c26 = arith.constant 26 : index
    %496 = memref.load %arg2[%c26] : memref<144xf32, #tpu.memory_space<smem>>
    %497 = vector.broadcast %496 : f32 to vector<16x36xf32>
    %498 = arith.mulf %497, %495 : vector<16x36xf32>
    %499 = arith.addf %481, %498 : vector<16x36xf32>
    %c62 = arith.constant 62 : index
    %500 = memref.load %arg2[%c62] : memref<144xf32, #tpu.memory_space<smem>>
    %501 = vector.broadcast %500 : f32 to vector<16x36xf32>
    %502 = arith.mulf %501, %495 : vector<16x36xf32>
    %503 = arith.addf %485, %502 : vector<16x36xf32>
    %c98 = arith.constant 98 : index
    %504 = memref.load %arg2[%c98] : memref<144xf32, #tpu.memory_space<smem>>
    %505 = vector.broadcast %504 : f32 to vector<16x36xf32>
    %506 = arith.mulf %505, %495 : vector<16x36xf32>
    %507 = arith.addf %489, %506 : vector<16x36xf32>
    %c134 = arith.constant 134 : index
    %508 = memref.load %arg2[%c134] : memref<144xf32, #tpu.memory_space<smem>>
    %509 = vector.broadcast %508 : f32 to vector<16x36xf32>
    %510 = arith.mulf %509, %495 : vector<16x36xf32>
    %511 = arith.addf %493, %510 : vector<16x36xf32>
    %c3_106 = arith.constant 3 : index
    %c0_107 = arith.constant 0 : index
    %c0_108 = arith.constant 0 : index
    %512 = vector.load %arg7[%c3_106, %c0_107, %c0_108] : memref<4x18x38xf32, #tpu.memory_space<vmem>>, vector<1x16x36xf32>
    %513 = vector.shape_cast %512 : vector<1x16x36xf32> to vector<16x36xf32>
    %c27 = arith.constant 27 : index
    %514 = memref.load %arg2[%c27] : memref<144xf32, #tpu.memory_space<smem>>
    %515 = vector.broadcast %514 : f32 to vector<16x36xf32>
    %516 = arith.mulf %515, %513 : vector<16x36xf32>
    %517 = arith.addf %499, %516 : vector<16x36xf32>
    %c63 = arith.constant 63 : index
    %518 = memref.load %arg2[%c63] : memref<144xf32, #tpu.memory_space<smem>>
    %519 = vector.broadcast %518 : f32 to vector<16x36xf32>
    %520 = arith.mulf %519, %513 : vector<16x36xf32>
    %521 = arith.addf %503, %520 : vector<16x36xf32>
    %c99 = arith.constant 99 : index
    %522 = memref.load %arg2[%c99] : memref<144xf32, #tpu.memory_space<smem>>
    %523 = vector.broadcast %522 : f32 to vector<16x36xf32>
    %524 = arith.mulf %523, %513 : vector<16x36xf32>
    %525 = arith.addf %507, %524 : vector<16x36xf32>
    %c135 = arith.constant 135 : index
    %526 = memref.load %arg2[%c135] : memref<144xf32, #tpu.memory_space<smem>>
    %527 = vector.broadcast %526 : f32 to vector<16x36xf32>
    %528 = arith.mulf %527, %513 : vector<16x36xf32>
    %529 = arith.addf %511, %528 : vector<16x36xf32>
    %c3_109 = arith.constant 3 : index
    %c0_110 = arith.constant 0 : index
    %c1_111 = arith.constant 1 : index
    %530 = vector.load %arg7[%c3_109, %c0_110, %c1_111] : memref<4x18x38xf32, #tpu.memory_space<vmem>>, vector<1x16x36xf32>
    %531 = vector.shape_cast %530 : vector<1x16x36xf32> to vector<16x36xf32>
    %c28 = arith.constant 28 : index
    %532 = memref.load %arg2[%c28] : memref<144xf32, #tpu.memory_space<smem>>
    %533 = vector.broadcast %532 : f32 to vector<16x36xf32>
    %534 = arith.mulf %533, %531 : vector<16x36xf32>
    %535 = arith.addf %517, %534 : vector<16x36xf32>
    %c64 = arith.constant 64 : index
    %536 = memref.load %arg2[%c64] : memref<144xf32, #tpu.memory_space<smem>>
    %537 = vector.broadcast %536 : f32 to vector<16x36xf32>
    %538 = arith.mulf %537, %531 : vector<16x36xf32>
    %539 = arith.addf %521, %538 : vector<16x36xf32>
    %c100 = arith.constant 100 : index
    %540 = memref.load %arg2[%c100] : memref<144xf32, #tpu.memory_space<smem>>
    %541 = vector.broadcast %540 : f32 to vector<16x36xf32>
    %542 = arith.mulf %541, %531 : vector<16x36xf32>
    %543 = arith.addf %525, %542 : vector<16x36xf32>
    %c136 = arith.constant 136 : index
    %544 = memref.load %arg2[%c136] : memref<144xf32, #tpu.memory_space<smem>>
    %545 = vector.broadcast %544 : f32 to vector<16x36xf32>
    %546 = arith.mulf %545, %531 : vector<16x36xf32>
    %547 = arith.addf %529, %546 : vector<16x36xf32>
    %c3_112 = arith.constant 3 : index
    %c0_113 = arith.constant 0 : index
    %c2_114 = arith.constant 2 : index
    %548 = vector.load %arg7[%c3_112, %c0_113, %c2_114] : memref<4x18x38xf32, #tpu.memory_space<vmem>>, vector<1x16x36xf32>
    %549 = vector.shape_cast %548 : vector<1x16x36xf32> to vector<16x36xf32>
    %c29 = arith.constant 29 : index
    %550 = memref.load %arg2[%c29] : memref<144xf32, #tpu.memory_space<smem>>
    %551 = vector.broadcast %550 : f32 to vector<16x36xf32>
    %552 = arith.mulf %551, %549 : vector<16x36xf32>
    %553 = arith.addf %535, %552 : vector<16x36xf32>
    %c65 = arith.constant 65 : index
    %554 = memref.load %arg2[%c65] : memref<144xf32, #tpu.memory_space<smem>>
    %555 = vector.broadcast %554 : f32 to vector<16x36xf32>
    %556 = arith.mulf %555, %549 : vector<16x36xf32>
    %557 = arith.addf %539, %556 : vector<16x36xf32>
    %c101 = arith.constant 101 : index
    %558 = memref.load %arg2[%c101] : memref<144xf32, #tpu.memory_space<smem>>
    %559 = vector.broadcast %558 : f32 to vector<16x36xf32>
    %560 = arith.mulf %559, %549 : vector<16x36xf32>
    %561 = arith.addf %543, %560 : vector<16x36xf32>
    %c137 = arith.constant 137 : index
    %562 = memref.load %arg2[%c137] : memref<144xf32, #tpu.memory_space<smem>>
    %563 = vector.broadcast %562 : f32 to vector<16x36xf32>
    %564 = arith.mulf %563, %549 : vector<16x36xf32>
    %565 = arith.addf %547, %564 : vector<16x36xf32>
    %c3_115 = arith.constant 3 : index
    %c1_116 = arith.constant 1 : index
    %c0_117 = arith.constant 0 : index
    %566 = vector.load %arg7[%c3_115, %c1_116, %c0_117] : memref<4x18x38xf32, #tpu.memory_space<vmem>>, vector<1x16x36xf32>
    %567 = vector.shape_cast %566 : vector<1x16x36xf32> to vector<16x36xf32>
    %c30 = arith.constant 30 : index
    %568 = memref.load %arg2[%c30] : memref<144xf32, #tpu.memory_space<smem>>
    %569 = vector.broadcast %568 : f32 to vector<16x36xf32>
    %570 = arith.mulf %569, %567 : vector<16x36xf32>
    %571 = arith.addf %553, %570 : vector<16x36xf32>
    %c66 = arith.constant 66 : index
    %572 = memref.load %arg2[%c66] : memref<144xf32, #tpu.memory_space<smem>>
    %573 = vector.broadcast %572 : f32 to vector<16x36xf32>
    %574 = arith.mulf %573, %567 : vector<16x36xf32>
    %575 = arith.addf %557, %574 : vector<16x36xf32>
    %c102 = arith.constant 102 : index
    %576 = memref.load %arg2[%c102] : memref<144xf32, #tpu.memory_space<smem>>
    %577 = vector.broadcast %576 : f32 to vector<16x36xf32>
    %578 = arith.mulf %577, %567 : vector<16x36xf32>
    %579 = arith.addf %561, %578 : vector<16x36xf32>
    %c138 = arith.constant 138 : index
    %580 = memref.load %arg2[%c138] : memref<144xf32, #tpu.memory_space<smem>>
    %581 = vector.broadcast %580 : f32 to vector<16x36xf32>
    %582 = arith.mulf %581, %567 : vector<16x36xf32>
    %583 = arith.addf %565, %582 : vector<16x36xf32>
    %c3_118 = arith.constant 3 : index
    %c1_119 = arith.constant 1 : index
    %c1_120 = arith.constant 1 : index
    %584 = vector.load %arg7[%c3_118, %c1_119, %c1_120] : memref<4x18x38xf32, #tpu.memory_space<vmem>>, vector<1x16x36xf32>
    %585 = vector.shape_cast %584 : vector<1x16x36xf32> to vector<16x36xf32>
    %c31 = arith.constant 31 : index
    %586 = memref.load %arg2[%c31] : memref<144xf32, #tpu.memory_space<smem>>
    %587 = vector.broadcast %586 : f32 to vector<16x36xf32>
    %588 = arith.mulf %587, %585 : vector<16x36xf32>
    %589 = arith.addf %571, %588 : vector<16x36xf32>
    %c67 = arith.constant 67 : index
    %590 = memref.load %arg2[%c67] : memref<144xf32, #tpu.memory_space<smem>>
    %591 = vector.broadcast %590 : f32 to vector<16x36xf32>
    %592 = arith.mulf %591, %585 : vector<16x36xf32>
    %593 = arith.addf %575, %592 : vector<16x36xf32>
    %c103 = arith.constant 103 : index
    %594 = memref.load %arg2[%c103] : memref<144xf32, #tpu.memory_space<smem>>
    %595 = vector.broadcast %594 : f32 to vector<16x36xf32>
    %596 = arith.mulf %595, %585 : vector<16x36xf32>
    %597 = arith.addf %579, %596 : vector<16x36xf32>
    %c139 = arith.constant 139 : index
    %598 = memref.load %arg2[%c139] : memref<144xf32, #tpu.memory_space<smem>>
    %599 = vector.broadcast %598 : f32 to vector<16x36xf32>
    %600 = arith.mulf %599, %585 : vector<16x36xf32>
    %601 = arith.addf %583, %600 : vector<16x36xf32>
    %c3_121 = arith.constant 3 : index
    %c1_122 = arith.constant 1 : index
    %c2_123 = arith.constant 2 : index
    %602 = vector.load %arg7[%c3_121, %c1_122, %c2_123] : memref<4x18x38xf32, #tpu.memory_space<vmem>>, vector<1x16x36xf32>
    %603 = vector.shape_cast %602 : vector<1x16x36xf32> to vector<16x36xf32>
    %c32 = arith.constant 32 : index
    %604 = memref.load %arg2[%c32] : memref<144xf32, #tpu.memory_space<smem>>
    %605 = vector.broadcast %604 : f32 to vector<16x36xf32>
    %606 = arith.mulf %605, %603 : vector<16x36xf32>
    %607 = arith.addf %589, %606 : vector<16x36xf32>
    %c68 = arith.constant 68 : index
    %608 = memref.load %arg2[%c68] : memref<144xf32, #tpu.memory_space<smem>>
    %609 = vector.broadcast %608 : f32 to vector<16x36xf32>
    %610 = arith.mulf %609, %603 : vector<16x36xf32>
    %611 = arith.addf %593, %610 : vector<16x36xf32>
    %c104 = arith.constant 104 : index
    %612 = memref.load %arg2[%c104] : memref<144xf32, #tpu.memory_space<smem>>
    %613 = vector.broadcast %612 : f32 to vector<16x36xf32>
    %614 = arith.mulf %613, %603 : vector<16x36xf32>
    %615 = arith.addf %597, %614 : vector<16x36xf32>
    %c140 = arith.constant 140 : index
    %616 = memref.load %arg2[%c140] : memref<144xf32, #tpu.memory_space<smem>>
    %617 = vector.broadcast %616 : f32 to vector<16x36xf32>
    %618 = arith.mulf %617, %603 : vector<16x36xf32>
    %619 = arith.addf %601, %618 : vector<16x36xf32>
    %c3_124 = arith.constant 3 : index
    %c2_125 = arith.constant 2 : index
    %c0_126 = arith.constant 0 : index
    %620 = vector.load %arg7[%c3_124, %c2_125, %c0_126] : memref<4x18x38xf32, #tpu.memory_space<vmem>>, vector<1x16x36xf32>
    %621 = vector.shape_cast %620 : vector<1x16x36xf32> to vector<16x36xf32>
    %c33 = arith.constant 33 : index
    %622 = memref.load %arg2[%c33] : memref<144xf32, #tpu.memory_space<smem>>
    %623 = vector.broadcast %622 : f32 to vector<16x36xf32>
    %624 = arith.mulf %623, %621 : vector<16x36xf32>
    %625 = arith.addf %607, %624 : vector<16x36xf32>
    %c69 = arith.constant 69 : index
    %626 = memref.load %arg2[%c69] : memref<144xf32, #tpu.memory_space<smem>>
    %627 = vector.broadcast %626 : f32 to vector<16x36xf32>
    %628 = arith.mulf %627, %621 : vector<16x36xf32>
    %629 = arith.addf %611, %628 : vector<16x36xf32>
    %c105 = arith.constant 105 : index
    %630 = memref.load %arg2[%c105] : memref<144xf32, #tpu.memory_space<smem>>
    %631 = vector.broadcast %630 : f32 to vector<16x36xf32>
    %632 = arith.mulf %631, %621 : vector<16x36xf32>
    %633 = arith.addf %615, %632 : vector<16x36xf32>
    %c141 = arith.constant 141 : index
    %634 = memref.load %arg2[%c141] : memref<144xf32, #tpu.memory_space<smem>>
    %635 = vector.broadcast %634 : f32 to vector<16x36xf32>
    %636 = arith.mulf %635, %621 : vector<16x36xf32>
    %637 = arith.addf %619, %636 : vector<16x36xf32>
    %c3_127 = arith.constant 3 : index
    %c2_128 = arith.constant 2 : index
    %c1_129 = arith.constant 1 : index
    %638 = vector.load %arg7[%c3_127, %c2_128, %c1_129] : memref<4x18x38xf32, #tpu.memory_space<vmem>>, vector<1x16x36xf32>
    %639 = vector.shape_cast %638 : vector<1x16x36xf32> to vector<16x36xf32>
    %c34 = arith.constant 34 : index
    %640 = memref.load %arg2[%c34] : memref<144xf32, #tpu.memory_space<smem>>
    %641 = vector.broadcast %640 : f32 to vector<16x36xf32>
    %642 = arith.mulf %641, %639 : vector<16x36xf32>
    %643 = arith.addf %625, %642 : vector<16x36xf32>
    %c70 = arith.constant 70 : index
    %644 = memref.load %arg2[%c70] : memref<144xf32, #tpu.memory_space<smem>>
    %645 = vector.broadcast %644 : f32 to vector<16x36xf32>
    %646 = arith.mulf %645, %639 : vector<16x36xf32>
    %647 = arith.addf %629, %646 : vector<16x36xf32>
    %c106 = arith.constant 106 : index
    %648 = memref.load %arg2[%c106] : memref<144xf32, #tpu.memory_space<smem>>
    %649 = vector.broadcast %648 : f32 to vector<16x36xf32>
    %650 = arith.mulf %649, %639 : vector<16x36xf32>
    %651 = arith.addf %633, %650 : vector<16x36xf32>
    %c142 = arith.constant 142 : index
    %652 = memref.load %arg2[%c142] : memref<144xf32, #tpu.memory_space<smem>>
    %653 = vector.broadcast %652 : f32 to vector<16x36xf32>
    %654 = arith.mulf %653, %639 : vector<16x36xf32>
    %655 = arith.addf %637, %654 : vector<16x36xf32>
    %c3_130 = arith.constant 3 : index
    %c2_131 = arith.constant 2 : index
    %c2_132 = arith.constant 2 : index
    %656 = vector.load %arg7[%c3_130, %c2_131, %c2_132] : memref<4x18x38xf32, #tpu.memory_space<vmem>>, vector<1x16x36xf32>
    %657 = vector.shape_cast %656 : vector<1x16x36xf32> to vector<16x36xf32>
    %c35 = arith.constant 35 : index
    %658 = memref.load %arg2[%c35] : memref<144xf32, #tpu.memory_space<smem>>
    %659 = vector.broadcast %658 : f32 to vector<16x36xf32>
    %660 = arith.mulf %659, %657 : vector<16x36xf32>
    %661 = arith.addf %643, %660 : vector<16x36xf32>
    %c71 = arith.constant 71 : index
    %662 = memref.load %arg2[%c71] : memref<144xf32, #tpu.memory_space<smem>>
    %663 = vector.broadcast %662 : f32 to vector<16x36xf32>
    %664 = arith.mulf %663, %657 : vector<16x36xf32>
    %665 = arith.addf %647, %664 : vector<16x36xf32>
    %c107 = arith.constant 107 : index
    %666 = memref.load %arg2[%c107] : memref<144xf32, #tpu.memory_space<smem>>
    %667 = vector.broadcast %666 : f32 to vector<16x36xf32>
    %668 = arith.mulf %667, %657 : vector<16x36xf32>
    %669 = arith.addf %651, %668 : vector<16x36xf32>
    %c143 = arith.constant 143 : index
    %670 = memref.load %arg2[%c143] : memref<144xf32, #tpu.memory_space<smem>>
    %671 = vector.broadcast %670 : f32 to vector<16x36xf32>
    %672 = arith.mulf %671, %657 : vector<16x36xf32>
    %673 = arith.addf %655, %672 : vector<16x36xf32>
    %c0_133 = arith.constant 0 : index
    %674 = memref.load %arg3[%c0_133] : memref<4xf32, #tpu.memory_space<smem>>
    %675 = vector.broadcast %674 : f32 to vector<16x36xf32>
    %676 = arith.addf %661, %675 : vector<16x36xf32>
    %cst_134 = arith.constant 0.000000e+00 : f32
    %677 = vector.broadcast %cst_134 : f32 to vector<16x36xf32>
    %678 = arith.cmpf oge, %676, %677 : vector<16x36xf32>
    %cst_135 = arith.constant 0.00999999977 : f32
    %679 = vector.broadcast %cst_135 : f32 to vector<16x36xf32>
    %680 = arith.mulf %679, %676 : vector<16x36xf32>
    %681 = arith.select %678, %676, %680 : vector<16x36xi1>, vector<16x36xf32>
    %cst_136 = arith.constant 0.000000e+00 : f32
    %682 = vector.shape_cast %11 : vector<1x36xi1> to vector<1x36xi1>
    %683 = vector.broadcast %682 : vector<1x36xi1> to vector<16x36xi1>
    %684 = vector.broadcast %cst_136 : f32 to vector<16x36xf32>
    %685 = arith.select %683, %681, %684 : vector<16x36xi1>, vector<16x36xf32>
    %c0_137 = arith.constant 0 : index
    %c1_138 = arith.constant 1 : index
    %c1_139 = arith.constant 1 : index
    %686 = vector.load %arg8[%c0_137, %c1_138, %c1_139] : memref<4x18x38xf32, #tpu.memory_space<vmem>>, vector<1x16x36xf32>
    %687 = vector.shape_cast %686 : vector<1x16x36xf32> to vector<16x36xf32>
    %688 = vector.shape_cast %685 : vector<16x36xf32> to vector<1x16x36xf32>
    tpu.vector_store %arg8[%c0_137, %c1_138, %c1_139], %688 {strides = array<i32>} : memref<4x18x38xf32, #tpu.memory_space<vmem>>, vector<1x16x36xf32>,
    %c1_140 = arith.constant 1 : index
    %689 = memref.load %arg3[%c1_140] : memref<4xf32, #tpu.memory_space<smem>>
    %690 = vector.broadcast %689 : f32 to vector<16x36xf32>
    %691 = arith.addf %665, %690 : vector<16x36xf32>
    %cst_141 = arith.constant 0.000000e+00 : f32
    %692 = vector.broadcast %cst_141 : f32 to vector<16x36xf32>
    %693 = arith.cmpf oge, %691, %692 : vector<16x36xf32>
    %cst_142 = arith.constant 0.00999999977 : f32
    %694 = vector.broadcast %cst_142 : f32 to vector<16x36xf32>
    %695 = arith.mulf %694, %691 : vector<16x36xf32>
    %696 = arith.select %693, %691, %695 : vector<16x36xi1>, vector<16x36xf32>
    %cst_143 = arith.constant 0.000000e+00 : f32
    %697 = vector.shape_cast %11 : vector<1x36xi1> to vector<1x36xi1>
    %698 = vector.broadcast %697 : vector<1x36xi1> to vector<16x36xi1>
    %699 = vector.broadcast %cst_143 : f32 to vector<16x36xf32>
    %700 = arith.select %698, %696, %699 : vector<16x36xi1>, vector<16x36xf32>
    %c1_144 = arith.constant 1 : index
    %c1_145 = arith.constant 1 : index
    %c1_146 = arith.constant 1 : index
    %701 = vector.load %arg8[%c1_144, %c1_145, %c1_146] : memref<4x18x38xf32, #tpu.memory_space<vmem>>, vector<1x16x36xf32>
    %702 = vector.shape_cast %701 : vector<1x16x36xf32> to vector<16x36xf32>
    %703 = vector.shape_cast %700 : vector<16x36xf32> to vector<1x16x36xf32>
    tpu.vector_store %arg8[%c1_144, %c1_145, %c1_146], %703 {strides = array<i32>} : memref<4x18x38xf32, #tpu.memory_space<vmem>>, vector<1x16x36xf32>,
    %c2_147 = arith.constant 2 : index
    %704 = memref.load %arg3[%c2_147] : memref<4xf32, #tpu.memory_space<smem>>
    %705 = vector.broadcast %704 : f32 to vector<16x36xf32>
    %706 = arith.addf %669, %705 : vector<16x36xf32>
    %cst_148 = arith.constant 0.000000e+00 : f32
    %707 = vector.broadcast %cst_148 : f32 to vector<16x36xf32>
    %708 = arith.cmpf oge, %706, %707 : vector<16x36xf32>
    %cst_149 = arith.constant 0.00999999977 : f32
    %709 = vector.broadcast %cst_149 : f32 to vector<16x36xf32>
    %710 = arith.mulf %709, %706 : vector<16x36xf32>
    %711 = arith.select %708, %706, %710 : vector<16x36xi1>, vector<16x36xf32>
    %cst_150 = arith.constant 0.000000e+00 : f32
    %712 = vector.shape_cast %11 : vector<1x36xi1> to vector<1x36xi1>
    %713 = vector.broadcast %712 : vector<1x36xi1> to vector<16x36xi1>
    %714 = vector.broadcast %cst_150 : f32 to vector<16x36xf32>
    %715 = arith.select %713, %711, %714 : vector<16x36xi1>, vector<16x36xf32>
    %c2_151 = arith.constant 2 : index
    %c1_152 = arith.constant 1 : index
    %c1_153 = arith.constant 1 : index
    %716 = vector.load %arg8[%c2_151, %c1_152, %c1_153] : memref<4x18x38xf32, #tpu.memory_space<vmem>>, vector<1x16x36xf32>
    %717 = vector.shape_cast %716 : vector<1x16x36xf32> to vector<16x36xf32>
    %718 = vector.shape_cast %715 : vector<16x36xf32> to vector<1x16x36xf32>
    tpu.vector_store %arg8[%c2_151, %c1_152, %c1_153], %718 {strides = array<i32>} : memref<4x18x38xf32, #tpu.memory_space<vmem>>, vector<1x16x36xf32>,
    %c3_154 = arith.constant 3 : index
    %719 = memref.load %arg3[%c3_154] : memref<4xf32, #tpu.memory_space<smem>>
    %720 = vector.broadcast %719 : f32 to vector<16x36xf32>
    %721 = arith.addf %673, %720 : vector<16x36xf32>
    %cst_155 = arith.constant 0.000000e+00 : f32
    %722 = vector.broadcast %cst_155 : f32 to vector<16x36xf32>
    %723 = arith.cmpf oge, %721, %722 : vector<16x36xf32>
    %cst_156 = arith.constant 0.00999999977 : f32
    %724 = vector.broadcast %cst_156 : f32 to vector<16x36xf32>
    %725 = arith.mulf %724, %721 : vector<16x36xf32>
    %726 = arith.select %723, %721, %725 : vector<16x36xi1>, vector<16x36xf32>
    %cst_157 = arith.constant 0.000000e+00 : f32
    %727 = vector.shape_cast %11 : vector<1x36xi1> to vector<1x36xi1>
    %728 = vector.broadcast %727 : vector<1x36xi1> to vector<16x36xi1>
    %729 = vector.broadcast %cst_157 : f32 to vector<16x36xf32>
    %730 = arith.select %728, %726, %729 : vector<16x36xi1>, vector<16x36xf32>
    %c3_158 = arith.constant 3 : index
    %c1_159 = arith.constant 1 : index
    %c1_160 = arith.constant 1 : index
    %731 = vector.load %arg8[%c3_158, %c1_159, %c1_160] : memref<4x18x38xf32, #tpu.memory_space<vmem>>, vector<1x16x36xf32>
    %732 = vector.shape_cast %731 : vector<1x16x36xf32> to vector<16x36xf32>
    %733 = vector.shape_cast %730 : vector<16x36xf32> to vector<1x16x36xf32>
    tpu.vector_store %arg8[%c3_158, %c1_159, %c1_160], %733 {strides = array<i32>} : memref<4x18x38xf32, #tpu.memory_space<vmem>>, vector<1x16x36xf32>,
    %cst_161 = arith.constant 0.000000e+00 : f32
    %734 = vector.broadcast %cst_161 : f32 to vector<16x36xf32>
    %cst_162 = arith.constant 0.000000e+00 : f32
    %735 = vector.broadcast %cst_162 : f32 to vector<16x36xf32>
    %cst_163 = arith.constant 0.000000e+00 : f32
    %736 = vector.broadcast %cst_163 : f32 to vector<16x36xf32>
    %cst_164 = arith.constant 0.000000e+00 : f32
    %737 = vector.broadcast %cst_164 : f32 to vector<16x36xf32>
    %c0_165 = arith.constant 0 : index
    %c0_166 = arith.constant 0 : index
    %c0_167 = arith.constant 0 : index
    %738 = vector.load %arg8[%c0_165, %c0_166, %c0_167] : memref<4x18x38xf32, #tpu.memory_space<vmem>>, vector<1x16x36xf32>
    %739 = vector.shape_cast %738 : vector<1x16x36xf32> to vector<16x36xf32>
    %c0_168 = arith.constant 0 : index
    %740 = memref.load %arg4[%c0_168] : memref<144xf32, #tpu.memory_space<smem>>
    %741 = vector.broadcast %740 : f32 to vector<16x36xf32>
    %742 = arith.mulf %741, %739 : vector<16x36xf32>
    %743 = arith.addf %734, %742 : vector<16x36xf32>
    %c36_169 = arith.constant 36 : index
    %744 = memref.load %arg4[%c36_169] : memref<144xf32, #tpu.memory_space<smem>>
    %745 = vector.broadcast %744 : f32 to vector<16x36xf32>
    %746 = arith.mulf %745, %739 : vector<16x36xf32>
    %747 = arith.addf %735, %746 : vector<16x36xf32>
    %c72_170 = arith.constant 72 : index
    %748 = memref.load %arg4[%c72_170] : memref<144xf32, #tpu.memory_space<smem>>
    %749 = vector.broadcast %748 : f32 to vector<16x36xf32>
    %750 = arith.mulf %749, %739 : vector<16x36xf32>
    %751 = arith.addf %736, %750 : vector<16x36xf32>
    %c108_171 = arith.constant 108 : index
    %752 = memref.load %arg4[%c108_171] : memref<144xf32, #tpu.memory_space<smem>>
    %753 = vector.broadcast %752 : f32 to vector<16x36xf32>
    %754 = arith.mulf %753, %739 : vector<16x36xf32>
    %755 = arith.addf %737, %754 : vector<16x36xf32>
    %c0_172 = arith.constant 0 : index
    %c0_173 = arith.constant 0 : index
    %c1_174 = arith.constant 1 : index
    %756 = vector.load %arg8[%c0_172, %c0_173, %c1_174] : memref<4x18x38xf32, #tpu.memory_space<vmem>>, vector<1x16x36xf32>
    %757 = vector.shape_cast %756 : vector<1x16x36xf32> to vector<16x36xf32>
    %c1_175 = arith.constant 1 : index
    %758 = memref.load %arg4[%c1_175] : memref<144xf32, #tpu.memory_space<smem>>
    %759 = vector.broadcast %758 : f32 to vector<16x36xf32>
    %760 = arith.mulf %759, %757 : vector<16x36xf32>
    %761 = arith.addf %743, %760 : vector<16x36xf32>
    %c37_176 = arith.constant 37 : index
    %762 = memref.load %arg4[%c37_176] : memref<144xf32, #tpu.memory_space<smem>>
    %763 = vector.broadcast %762 : f32 to vector<16x36xf32>
    %764 = arith.mulf %763, %757 : vector<16x36xf32>
    %765 = arith.addf %747, %764 : vector<16x36xf32>
    %c73_177 = arith.constant 73 : index
    %766 = memref.load %arg4[%c73_177] : memref<144xf32, #tpu.memory_space<smem>>
    %767 = vector.broadcast %766 : f32 to vector<16x36xf32>
    %768 = arith.mulf %767, %757 : vector<16x36xf32>
    %769 = arith.addf %751, %768 : vector<16x36xf32>
    %c109_178 = arith.constant 109 : index
    %770 = memref.load %arg4[%c109_178] : memref<144xf32, #tpu.memory_space<smem>>
    %771 = vector.broadcast %770 : f32 to vector<16x36xf32>
    %772 = arith.mulf %771, %757 : vector<16x36xf32>
    %773 = arith.addf %755, %772 : vector<16x36xf32>
    %c0_179 = arith.constant 0 : index
    %c0_180 = arith.constant 0 : index
    %c2_181 = arith.constant 2 : index
    %774 = vector.load %arg8[%c0_179, %c0_180, %c2_181] : memref<4x18x38xf32, #tpu.memory_space<vmem>>, vector<1x16x36xf32>
    %775 = vector.shape_cast %774 : vector<1x16x36xf32> to vector<16x36xf32>
    %c2_182 = arith.constant 2 : index
    %776 = memref.load %arg4[%c2_182] : memref<144xf32, #tpu.memory_space<smem>>
    %777 = vector.broadcast %776 : f32 to vector<16x36xf32>
    %778 = arith.mulf %777, %775 : vector<16x36xf32>
    %779 = arith.addf %761, %778 : vector<16x36xf32>
    %c38_183 = arith.constant 38 : index
    %780 = memref.load %arg4[%c38_183] : memref<144xf32, #tpu.memory_space<smem>>
    %781 = vector.broadcast %780 : f32 to vector<16x36xf32>
    %782 = arith.mulf %781, %775 : vector<16x36xf32>
    %783 = arith.addf %765, %782 : vector<16x36xf32>
    %c74_184 = arith.constant 74 : index
    %784 = memref.load %arg4[%c74_184] : memref<144xf32, #tpu.memory_space<smem>>
    %785 = vector.broadcast %784 : f32 to vector<16x36xf32>
    %786 = arith.mulf %785, %775 : vector<16x36xf32>
    %787 = arith.addf %769, %786 : vector<16x36xf32>
    %c110_185 = arith.constant 110 : index
    %788 = memref.load %arg4[%c110_185] : memref<144xf32, #tpu.memory_space<smem>>
    %789 = vector.broadcast %788 : f32 to vector<16x36xf32>
    %790 = arith.mulf %789, %775 : vector<16x36xf32>
    %791 = arith.addf %773, %790 : vector<16x36xf32>
    %c0_186 = arith.constant 0 : index
    %c1_187 = arith.constant 1 : index
    %c0_188 = arith.constant 0 : index
    %792 = vector.load %arg8[%c0_186, %c1_187, %c0_188] : memref<4x18x38xf32, #tpu.memory_space<vmem>>, vector<1x16x36xf32>
    %793 = vector.shape_cast %792 : vector<1x16x36xf32> to vector<16x36xf32>
    %c3_189 = arith.constant 3 : index
    %794 = memref.load %arg4[%c3_189] : memref<144xf32, #tpu.memory_space<smem>>
    %795 = vector.broadcast %794 : f32 to vector<16x36xf32>
    %796 = arith.mulf %795, %793 : vector<16x36xf32>
    %797 = arith.addf %779, %796 : vector<16x36xf32>
    %c39_190 = arith.constant 39 : index
    %798 = memref.load %arg4[%c39_190] : memref<144xf32, #tpu.memory_space<smem>>
    %799 = vector.broadcast %798 : f32 to vector<16x36xf32>
    %800 = arith.mulf %799, %793 : vector<16x36xf32>
    %801 = arith.addf %783, %800 : vector<16x36xf32>
    %c75_191 = arith.constant 75 : index
    %802 = memref.load %arg4[%c75_191] : memref<144xf32, #tpu.memory_space<smem>>
    %803 = vector.broadcast %802 : f32 to vector<16x36xf32>
    %804 = arith.mulf %803, %793 : vector<16x36xf32>
    %805 = arith.addf %787, %804 : vector<16x36xf32>
    %c111_192 = arith.constant 111 : index
    %806 = memref.load %arg4[%c111_192] : memref<144xf32, #tpu.memory_space<smem>>
    %807 = vector.broadcast %806 : f32 to vector<16x36xf32>
    %808 = arith.mulf %807, %793 : vector<16x36xf32>
    %809 = arith.addf %791, %808 : vector<16x36xf32>
    %c0_193 = arith.constant 0 : index
    %c1_194 = arith.constant 1 : index
    %c1_195 = arith.constant 1 : index
    %810 = vector.load %arg8[%c0_193, %c1_194, %c1_195] : memref<4x18x38xf32, #tpu.memory_space<vmem>>, vector<1x16x36xf32>
    %811 = vector.shape_cast %810 : vector<1x16x36xf32> to vector<16x36xf32>
    %c4_196 = arith.constant 4 : index
    %812 = memref.load %arg4[%c4_196] : memref<144xf32, #tpu.memory_space<smem>>
    %813 = vector.broadcast %812 : f32 to vector<16x36xf32>
    %814 = arith.mulf %813, %811 : vector<16x36xf32>
    %815 = arith.addf %797, %814 : vector<16x36xf32>
    %c40_197 = arith.constant 40 : index
    %816 = memref.load %arg4[%c40_197] : memref<144xf32, #tpu.memory_space<smem>>
    %817 = vector.broadcast %816 : f32 to vector<16x36xf32>
    %818 = arith.mulf %817, %811 : vector<16x36xf32>
    %819 = arith.addf %801, %818 : vector<16x36xf32>
    %c76_198 = arith.constant 76 : index
    %820 = memref.load %arg4[%c76_198] : memref<144xf32, #tpu.memory_space<smem>>
    %821 = vector.broadcast %820 : f32 to vector<16x36xf32>
    %822 = arith.mulf %821, %811 : vector<16x36xf32>
    %823 = arith.addf %805, %822 : vector<16x36xf32>
    %c112_199 = arith.constant 112 : index
    %824 = memref.load %arg4[%c112_199] : memref<144xf32, #tpu.memory_space<smem>>
    %825 = vector.broadcast %824 : f32 to vector<16x36xf32>
    %826 = arith.mulf %825, %811 : vector<16x36xf32>
    %827 = arith.addf %809, %826 : vector<16x36xf32>
    %c0_200 = arith.constant 0 : index
    %c1_201 = arith.constant 1 : index
    %c2_202 = arith.constant 2 : index
    %828 = vector.load %arg8[%c0_200, %c1_201, %c2_202] : memref<4x18x38xf32, #tpu.memory_space<vmem>>, vector<1x16x36xf32>
    %829 = vector.shape_cast %828 : vector<1x16x36xf32> to vector<16x36xf32>
    %c5_203 = arith.constant 5 : index
    %830 = memref.load %arg4[%c5_203] : memref<144xf32, #tpu.memory_space<smem>>
    %831 = vector.broadcast %830 : f32 to vector<16x36xf32>
    %832 = arith.mulf %831, %829 : vector<16x36xf32>
    %833 = arith.addf %815, %832 : vector<16x36xf32>
    %c41_204 = arith.constant 41 : index
    %834 = memref.load %arg4[%c41_204] : memref<144xf32, #tpu.memory_space<smem>>
    %835 = vector.broadcast %834 : f32 to vector<16x36xf32>
    %836 = arith.mulf %835, %829 : vector<16x36xf32>
    %837 = arith.addf %819, %836 : vector<16x36xf32>
    %c77_205 = arith.constant 77 : index
    %838 = memref.load %arg4[%c77_205] : memref<144xf32, #tpu.memory_space<smem>>
    %839 = vector.broadcast %838 : f32 to vector<16x36xf32>
    %840 = arith.mulf %839, %829 : vector<16x36xf32>
    %841 = arith.addf %823, %840 : vector<16x36xf32>
    %c113_206 = arith.constant 113 : index
    %842 = memref.load %arg4[%c113_206] : memref<144xf32, #tpu.memory_space<smem>>
    %843 = vector.broadcast %842 : f32 to vector<16x36xf32>
    %844 = arith.mulf %843, %829 : vector<16x36xf32>
    %845 = arith.addf %827, %844 : vector<16x36xf32>
    %c0_207 = arith.constant 0 : index
    %c2_208 = arith.constant 2 : index
    %c0_209 = arith.constant 0 : index
    %846 = vector.load %arg8[%c0_207, %c2_208, %c0_209] : memref<4x18x38xf32, #tpu.memory_space<vmem>>, vector<1x16x36xf32>
    %847 = vector.shape_cast %846 : vector<1x16x36xf32> to vector<16x36xf32>
    %c6_210 = arith.constant 6 : index
    %848 = memref.load %arg4[%c6_210] : memref<144xf32, #tpu.memory_space<smem>>
    %849 = vector.broadcast %848 : f32 to vector<16x36xf32>
    %850 = arith.mulf %849, %847 : vector<16x36xf32>
    %851 = arith.addf %833, %850 : vector<16x36xf32>
    %c42_211 = arith.constant 42 : index
    %852 = memref.load %arg4[%c42_211] : memref<144xf32, #tpu.memory_space<smem>>
    %853 = vector.broadcast %852 : f32 to vector<16x36xf32>
    %854 = arith.mulf %853, %847 : vector<16x36xf32>
    %855 = arith.addf %837, %854 : vector<16x36xf32>
    %c78_212 = arith.constant 78 : index
    %856 = memref.load %arg4[%c78_212] : memref<144xf32, #tpu.memory_space<smem>>
    %857 = vector.broadcast %856 : f32 to vector<16x36xf32>
    %858 = arith.mulf %857, %847 : vector<16x36xf32>
    %859 = arith.addf %841, %858 : vector<16x36xf32>
    %c114_213 = arith.constant 114 : index
    %860 = memref.load %arg4[%c114_213] : memref<144xf32, #tpu.memory_space<smem>>
    %861 = vector.broadcast %860 : f32 to vector<16x36xf32>
    %862 = arith.mulf %861, %847 : vector<16x36xf32>
    %863 = arith.addf %845, %862 : vector<16x36xf32>
    %c0_214 = arith.constant 0 : index
    %c2_215 = arith.constant 2 : index
    %c1_216 = arith.constant 1 : index
    %864 = vector.load %arg8[%c0_214, %c2_215, %c1_216] : memref<4x18x38xf32, #tpu.memory_space<vmem>>, vector<1x16x36xf32>
    %865 = vector.shape_cast %864 : vector<1x16x36xf32> to vector<16x36xf32>
    %c7_217 = arith.constant 7 : index
    %866 = memref.load %arg4[%c7_217] : memref<144xf32, #tpu.memory_space<smem>>
    %867 = vector.broadcast %866 : f32 to vector<16x36xf32>
    %868 = arith.mulf %867, %865 : vector<16x36xf32>
    %869 = arith.addf %851, %868 : vector<16x36xf32>
    %c43_218 = arith.constant 43 : index
    %870 = memref.load %arg4[%c43_218] : memref<144xf32, #tpu.memory_space<smem>>
    %871 = vector.broadcast %870 : f32 to vector<16x36xf32>
    %872 = arith.mulf %871, %865 : vector<16x36xf32>
    %873 = arith.addf %855, %872 : vector<16x36xf32>
    %c79_219 = arith.constant 79 : index
    %874 = memref.load %arg4[%c79_219] : memref<144xf32, #tpu.memory_space<smem>>
    %875 = vector.broadcast %874 : f32 to vector<16x36xf32>
    %876 = arith.mulf %875, %865 : vector<16x36xf32>
    %877 = arith.addf %859, %876 : vector<16x36xf32>
    %c115_220 = arith.constant 115 : index
    %878 = memref.load %arg4[%c115_220] : memref<144xf32, #tpu.memory_space<smem>>
    %879 = vector.broadcast %878 : f32 to vector<16x36xf32>
    %880 = arith.mulf %879, %865 : vector<16x36xf32>
    %881 = arith.addf %863, %880 : vector<16x36xf32>
    %c0_221 = arith.constant 0 : index
    %c2_222 = arith.constant 2 : index
    %c2_223 = arith.constant 2 : index
    %882 = vector.load %arg8[%c0_221, %c2_222, %c2_223] : memref<4x18x38xf32, #tpu.memory_space<vmem>>, vector<1x16x36xf32>
    %883 = vector.shape_cast %882 : vector<1x16x36xf32> to vector<16x36xf32>
    %c8_224 = arith.constant 8 : index
    %884 = memref.load %arg4[%c8_224] : memref<144xf32, #tpu.memory_space<smem>>
    %885 = vector.broadcast %884 : f32 to vector<16x36xf32>
    %886 = arith.mulf %885, %883 : vector<16x36xf32>
    %887 = arith.addf %869, %886 : vector<16x36xf32>
    %c44_225 = arith.constant 44 : index
    %888 = memref.load %arg4[%c44_225] : memref<144xf32, #tpu.memory_space<smem>>
    %889 = vector.broadcast %888 : f32 to vector<16x36xf32>
    %890 = arith.mulf %889, %883 : vector<16x36xf32>
    %891 = arith.addf %873, %890 : vector<16x36xf32>
    %c80_226 = arith.constant 80 : index
    %892 = memref.load %arg4[%c80_226] : memref<144xf32, #tpu.memory_space<smem>>
    %893 = vector.broadcast %892 : f32 to vector<16x36xf32>
    %894 = arith.mulf %893, %883 : vector<16x36xf32>
    %895 = arith.addf %877, %894 : vector<16x36xf32>
    %c116_227 = arith.constant 116 : index
    %896 = memref.load %arg4[%c116_227] : memref<144xf32, #tpu.memory_space<smem>>
    %897 = vector.broadcast %896 : f32 to vector<16x36xf32>
    %898 = arith.mulf %897, %883 : vector<16x36xf32>
    %899 = arith.addf %881, %898 : vector<16x36xf32>
    %c1_228 = arith.constant 1 : index
    %c0_229 = arith.constant 0 : index
    %c0_230 = arith.constant 0 : index
    %900 = vector.load %arg8[%c1_228, %c0_229, %c0_230] : memref<4x18x38xf32, #tpu.memory_space<vmem>>, vector<1x16x36xf32>
    %901 = vector.shape_cast %900 : vector<1x16x36xf32> to vector<16x36xf32>
    %c9_231 = arith.constant 9 : index
    %902 = memref.load %arg4[%c9_231] : memref<144xf32, #tpu.memory_space<smem>>
    %903 = vector.broadcast %902 : f32 to vector<16x36xf32>
    %904 = arith.mulf %903, %901 : vector<16x36xf32>
    %905 = arith.addf %887, %904 : vector<16x36xf32>
    %c45_232 = arith.constant 45 : index
    %906 = memref.load %arg4[%c45_232] : memref<144xf32, #tpu.memory_space<smem>>
    %907 = vector.broadcast %906 : f32 to vector<16x36xf32>
    %908 = arith.mulf %907, %901 : vector<16x36xf32>
    %909 = arith.addf %891, %908 : vector<16x36xf32>
    %c81_233 = arith.constant 81 : index
    %910 = memref.load %arg4[%c81_233] : memref<144xf32, #tpu.memory_space<smem>>
    %911 = vector.broadcast %910 : f32 to vector<16x36xf32>
    %912 = arith.mulf %911, %901 : vector<16x36xf32>
    %913 = arith.addf %895, %912 : vector<16x36xf32>
    %c117_234 = arith.constant 117 : index
    %914 = memref.load %arg4[%c117_234] : memref<144xf32, #tpu.memory_space<smem>>
    %915 = vector.broadcast %914 : f32 to vector<16x36xf32>
    %916 = arith.mulf %915, %901 : vector<16x36xf32>
    %917 = arith.addf %899, %916 : vector<16x36xf32>
    %c1_235 = arith.constant 1 : index
    %c0_236 = arith.constant 0 : index
    %c1_237 = arith.constant 1 : index
    %918 = vector.load %arg8[%c1_235, %c0_236, %c1_237] : memref<4x18x38xf32, #tpu.memory_space<vmem>>, vector<1x16x36xf32>
    %919 = vector.shape_cast %918 : vector<1x16x36xf32> to vector<16x36xf32>
    %c10_238 = arith.constant 10 : index
    %920 = memref.load %arg4[%c10_238] : memref<144xf32, #tpu.memory_space<smem>>
    %921 = vector.broadcast %920 : f32 to vector<16x36xf32>
    %922 = arith.mulf %921, %919 : vector<16x36xf32>
    %923 = arith.addf %905, %922 : vector<16x36xf32>
    %c46_239 = arith.constant 46 : index
    %924 = memref.load %arg4[%c46_239] : memref<144xf32, #tpu.memory_space<smem>>
    %925 = vector.broadcast %924 : f32 to vector<16x36xf32>
    %926 = arith.mulf %925, %919 : vector<16x36xf32>
    %927 = arith.addf %909, %926 : vector<16x36xf32>
    %c82_240 = arith.constant 82 : index
    %928 = memref.load %arg4[%c82_240] : memref<144xf32, #tpu.memory_space<smem>>
    %929 = vector.broadcast %928 : f32 to vector<16x36xf32>
    %930 = arith.mulf %929, %919 : vector<16x36xf32>
    %931 = arith.addf %913, %930 : vector<16x36xf32>
    %c118_241 = arith.constant 118 : index
    %932 = memref.load %arg4[%c118_241] : memref<144xf32, #tpu.memory_space<smem>>
    %933 = vector.broadcast %932 : f32 to vector<16x36xf32>
    %934 = arith.mulf %933, %919 : vector<16x36xf32>
    %935 = arith.addf %917, %934 : vector<16x36xf32>
    %c1_242 = arith.constant 1 : index
    %c0_243 = arith.constant 0 : index
    %c2_244 = arith.constant 2 : index
    %936 = vector.load %arg8[%c1_242, %c0_243, %c2_244] : memref<4x18x38xf32, #tpu.memory_space<vmem>>, vector<1x16x36xf32>
    %937 = vector.shape_cast %936 : vector<1x16x36xf32> to vector<16x36xf32>
    %c11_245 = arith.constant 11 : index
    %938 = memref.load %arg4[%c11_245] : memref<144xf32, #tpu.memory_space<smem>>
    %939 = vector.broadcast %938 : f32 to vector<16x36xf32>
    %940 = arith.mulf %939, %937 : vector<16x36xf32>
    %941 = arith.addf %923, %940 : vector<16x36xf32>
    %c47_246 = arith.constant 47 : index
    %942 = memref.load %arg4[%c47_246] : memref<144xf32, #tpu.memory_space<smem>>
    %943 = vector.broadcast %942 : f32 to vector<16x36xf32>
    %944 = arith.mulf %943, %937 : vector<16x36xf32>
    %945 = arith.addf %927, %944 : vector<16x36xf32>
    %c83_247 = arith.constant 83 : index
    %946 = memref.load %arg4[%c83_247] : memref<144xf32, #tpu.memory_space<smem>>
    %947 = vector.broadcast %946 : f32 to vector<16x36xf32>
    %948 = arith.mulf %947, %937 : vector<16x36xf32>
    %949 = arith.addf %931, %948 : vector<16x36xf32>
    %c119_248 = arith.constant 119 : index
    %950 = memref.load %arg4[%c119_248] : memref<144xf32, #tpu.memory_space<smem>>
    %951 = vector.broadcast %950 : f32 to vector<16x36xf32>
    %952 = arith.mulf %951, %937 : vector<16x36xf32>
    %953 = arith.addf %935, %952 : vector<16x36xf32>
    %c1_249 = arith.constant 1 : index
    %c1_250 = arith.constant 1 : index
    %c0_251 = arith.constant 0 : index
    %954 = vector.load %arg8[%c1_249, %c1_250, %c0_251] : memref<4x18x38xf32, #tpu.memory_space<vmem>>, vector<1x16x36xf32>
    %955 = vector.shape_cast %954 : vector<1x16x36xf32> to vector<16x36xf32>
    %c12_252 = arith.constant 12 : index
    %956 = memref.load %arg4[%c12_252] : memref<144xf32, #tpu.memory_space<smem>>
    %957 = vector.broadcast %956 : f32 to vector<16x36xf32>
    %958 = arith.mulf %957, %955 : vector<16x36xf32>
    %959 = arith.addf %941, %958 : vector<16x36xf32>
    %c48_253 = arith.constant 48 : index
    %960 = memref.load %arg4[%c48_253] : memref<144xf32, #tpu.memory_space<smem>>
    %961 = vector.broadcast %960 : f32 to vector<16x36xf32>
    %962 = arith.mulf %961, %955 : vector<16x36xf32>
    %963 = arith.addf %945, %962 : vector<16x36xf32>
    %c84_254 = arith.constant 84 : index
    %964 = memref.load %arg4[%c84_254] : memref<144xf32, #tpu.memory_space<smem>>
    %965 = vector.broadcast %964 : f32 to vector<16x36xf32>
    %966 = arith.mulf %965, %955 : vector<16x36xf32>
    %967 = arith.addf %949, %966 : vector<16x36xf32>
    %c120_255 = arith.constant 120 : index
    %968 = memref.load %arg4[%c120_255] : memref<144xf32, #tpu.memory_space<smem>>
    %969 = vector.broadcast %968 : f32 to vector<16x36xf32>
    %970 = arith.mulf %969, %955 : vector<16x36xf32>
    %971 = arith.addf %953, %970 : vector<16x36xf32>
    %c1_256 = arith.constant 1 : index
    %c1_257 = arith.constant 1 : index
    %c1_258 = arith.constant 1 : index
    %972 = vector.load %arg8[%c1_256, %c1_257, %c1_258] : memref<4x18x38xf32, #tpu.memory_space<vmem>>, vector<1x16x36xf32>
    %973 = vector.shape_cast %972 : vector<1x16x36xf32> to vector<16x36xf32>
    %c13_259 = arith.constant 13 : index
    %974 = memref.load %arg4[%c13_259] : memref<144xf32, #tpu.memory_space<smem>>
    %975 = vector.broadcast %974 : f32 to vector<16x36xf32>
    %976 = arith.mulf %975, %973 : vector<16x36xf32>
    %977 = arith.addf %959, %976 : vector<16x36xf32>
    %c49_260 = arith.constant 49 : index
    %978 = memref.load %arg4[%c49_260] : memref<144xf32, #tpu.memory_space<smem>>
    %979 = vector.broadcast %978 : f32 to vector<16x36xf32>
    %980 = arith.mulf %979, %973 : vector<16x36xf32>
    %981 = arith.addf %963, %980 : vector<16x36xf32>
    %c85_261 = arith.constant 85 : index
    %982 = memref.load %arg4[%c85_261] : memref<144xf32, #tpu.memory_space<smem>>
    %983 = vector.broadcast %982 : f32 to vector<16x36xf32>
    %984 = arith.mulf %983, %973 : vector<16x36xf32>
    %985 = arith.addf %967, %984 : vector<16x36xf32>
    %c121_262 = arith.constant 121 : index
    %986 = memref.load %arg4[%c121_262] : memref<144xf32, #tpu.memory_space<smem>>
    %987 = vector.broadcast %986 : f32 to vector<16x36xf32>
    %988 = arith.mulf %987, %973 : vector<16x36xf32>
    %989 = arith.addf %971, %988 : vector<16x36xf32>
    %c1_263 = arith.constant 1 : index
    %c1_264 = arith.constant 1 : index
    %c2_265 = arith.constant 2 : index
    %990 = vector.load %arg8[%c1_263, %c1_264, %c2_265] : memref<4x18x38xf32, #tpu.memory_space<vmem>>, vector<1x16x36xf32>
    %991 = vector.shape_cast %990 : vector<1x16x36xf32> to vector<16x36xf32>
    %c14_266 = arith.constant 14 : index
    %992 = memref.load %arg4[%c14_266] : memref<144xf32, #tpu.memory_space<smem>>
    %993 = vector.broadcast %992 : f32 to vector<16x36xf32>
    %994 = arith.mulf %993, %991 : vector<16x36xf32>
    %995 = arith.addf %977, %994 : vector<16x36xf32>
    %c50_267 = arith.constant 50 : index
    %996 = memref.load %arg4[%c50_267] : memref<144xf32, #tpu.memory_space<smem>>
    %997 = vector.broadcast %996 : f32 to vector<16x36xf32>
    %998 = arith.mulf %997, %991 : vector<16x36xf32>
    %999 = arith.addf %981, %998 : vector<16x36xf32>
    %c86_268 = arith.constant 86 : index
    %1000 = memref.load %arg4[%c86_268] : memref<144xf32, #tpu.memory_space<smem>>
    %1001 = vector.broadcast %1000 : f32 to vector<16x36xf32>
    %1002 = arith.mulf %1001, %991 : vector<16x36xf32>
    %1003 = arith.addf %985, %1002 : vector<16x36xf32>
    %c122_269 = arith.constant 122 : index
    %1004 = memref.load %arg4[%c122_269] : memref<144xf32, #tpu.memory_space<smem>>
    %1005 = vector.broadcast %1004 : f32 to vector<16x36xf32>
    %1006 = arith.mulf %1005, %991 : vector<16x36xf32>
    %1007 = arith.addf %989, %1006 : vector<16x36xf32>
    %c1_270 = arith.constant 1 : index
    %c2_271 = arith.constant 2 : index
    %c0_272 = arith.constant 0 : index
    %1008 = vector.load %arg8[%c1_270, %c2_271, %c0_272] : memref<4x18x38xf32, #tpu.memory_space<vmem>>, vector<1x16x36xf32>
    %1009 = vector.shape_cast %1008 : vector<1x16x36xf32> to vector<16x36xf32>
    %c15_273 = arith.constant 15 : index
    %1010 = memref.load %arg4[%c15_273] : memref<144xf32, #tpu.memory_space<smem>>
    %1011 = vector.broadcast %1010 : f32 to vector<16x36xf32>
    %1012 = arith.mulf %1011, %1009 : vector<16x36xf32>
    %1013 = arith.addf %995, %1012 : vector<16x36xf32>
    %c51_274 = arith.constant 51 : index
    %1014 = memref.load %arg4[%c51_274] : memref<144xf32, #tpu.memory_space<smem>>
    %1015 = vector.broadcast %1014 : f32 to vector<16x36xf32>
    %1016 = arith.mulf %1015, %1009 : vector<16x36xf32>
    %1017 = arith.addf %999, %1016 : vector<16x36xf32>
    %c87_275 = arith.constant 87 : index
    %1018 = memref.load %arg4[%c87_275] : memref<144xf32, #tpu.memory_space<smem>>
    %1019 = vector.broadcast %1018 : f32 to vector<16x36xf32>
    %1020 = arith.mulf %1019, %1009 : vector<16x36xf32>
    %1021 = arith.addf %1003, %1020 : vector<16x36xf32>
    %c123_276 = arith.constant 123 : index
    %1022 = memref.load %arg4[%c123_276] : memref<144xf32, #tpu.memory_space<smem>>
    %1023 = vector.broadcast %1022 : f32 to vector<16x36xf32>
    %1024 = arith.mulf %1023, %1009 : vector<16x36xf32>
    %1025 = arith.addf %1007, %1024 : vector<16x36xf32>
    %c1_277 = arith.constant 1 : index
    %c2_278 = arith.constant 2 : index
    %c1_279 = arith.constant 1 : index
    %1026 = vector.load %arg8[%c1_277, %c2_278, %c1_279] : memref<4x18x38xf32, #tpu.memory_space<vmem>>, vector<1x16x36xf32>
    %1027 = vector.shape_cast %1026 : vector<1x16x36xf32> to vector<16x36xf32>
    %c16_280 = arith.constant 16 : index
    %1028 = memref.load %arg4[%c16_280] : memref<144xf32, #tpu.memory_space<smem>>
    %1029 = vector.broadcast %1028 : f32 to vector<16x36xf32>
    %1030 = arith.mulf %1029, %1027 : vector<16x36xf32>
    %1031 = arith.addf %1013, %1030 : vector<16x36xf32>
    %c52_281 = arith.constant 52 : index
    %1032 = memref.load %arg4[%c52_281] : memref<144xf32, #tpu.memory_space<smem>>
    %1033 = vector.broadcast %1032 : f32 to vector<16x36xf32>
    %1034 = arith.mulf %1033, %1027 : vector<16x36xf32>
    %1035 = arith.addf %1017, %1034 : vector<16x36xf32>
    %c88_282 = arith.constant 88 : index
    %1036 = memref.load %arg4[%c88_282] : memref<144xf32, #tpu.memory_space<smem>>
    %1037 = vector.broadcast %1036 : f32 to vector<16x36xf32>
    %1038 = arith.mulf %1037, %1027 : vector<16x36xf32>
    %1039 = arith.addf %1021, %1038 : vector<16x36xf32>
    %c124_283 = arith.constant 124 : index
    %1040 = memref.load %arg4[%c124_283] : memref<144xf32, #tpu.memory_space<smem>>
    %1041 = vector.broadcast %1040 : f32 to vector<16x36xf32>
    %1042 = arith.mulf %1041, %1027 : vector<16x36xf32>
    %1043 = arith.addf %1025, %1042 : vector<16x36xf32>
    %c1_284 = arith.constant 1 : index
    %c2_285 = arith.constant 2 : index
    %c2_286 = arith.constant 2 : index
    %1044 = vector.load %arg8[%c1_284, %c2_285, %c2_286] : memref<4x18x38xf32, #tpu.memory_space<vmem>>, vector<1x16x36xf32>
    %1045 = vector.shape_cast %1044 : vector<1x16x36xf32> to vector<16x36xf32>
    %c17_287 = arith.constant 17 : index
    %1046 = memref.load %arg4[%c17_287] : memref<144xf32, #tpu.memory_space<smem>>
    %1047 = vector.broadcast %1046 : f32 to vector<16x36xf32>
    %1048 = arith.mulf %1047, %1045 : vector<16x36xf32>
    %1049 = arith.addf %1031, %1048 : vector<16x36xf32>
    %c53_288 = arith.constant 53 : index
    %1050 = memref.load %arg4[%c53_288] : memref<144xf32, #tpu.memory_space<smem>>
    %1051 = vector.broadcast %1050 : f32 to vector<16x36xf32>
    %1052 = arith.mulf %1051, %1045 : vector<16x36xf32>
    %1053 = arith.addf %1035, %1052 : vector<16x36xf32>
    %c89_289 = arith.constant 89 : index
    %1054 = memref.load %arg4[%c89_289] : memref<144xf32, #tpu.memory_space<smem>>
    %1055 = vector.broadcast %1054 : f32 to vector<16x36xf32>
    %1056 = arith.mulf %1055, %1045 : vector<16x36xf32>
    %1057 = arith.addf %1039, %1056 : vector<16x36xf32>
    %c125_290 = arith.constant 125 : index
    %1058 = memref.load %arg4[%c125_290] : memref<144xf32, #tpu.memory_space<smem>>
    %1059 = vector.broadcast %1058 : f32 to vector<16x36xf32>
    %1060 = arith.mulf %1059, %1045 : vector<16x36xf32>
    %1061 = arith.addf %1043, %1060 : vector<16x36xf32>
    %c2_291 = arith.constant 2 : index
    %c0_292 = arith.constant 0 : index
    %c0_293 = arith.constant 0 : index
    %1062 = vector.load %arg8[%c2_291, %c0_292, %c0_293] : memref<4x18x38xf32, #tpu.memory_space<vmem>>, vector<1x16x36xf32>
    %1063 = vector.shape_cast %1062 : vector<1x16x36xf32> to vector<16x36xf32>
    %c18_294 = arith.constant 18 : index
    %1064 = memref.load %arg4[%c18_294] : memref<144xf32, #tpu.memory_space<smem>>
    %1065 = vector.broadcast %1064 : f32 to vector<16x36xf32>
    %1066 = arith.mulf %1065, %1063 : vector<16x36xf32>
    %1067 = arith.addf %1049, %1066 : vector<16x36xf32>
    %c54_295 = arith.constant 54 : index
    %1068 = memref.load %arg4[%c54_295] : memref<144xf32, #tpu.memory_space<smem>>
    %1069 = vector.broadcast %1068 : f32 to vector<16x36xf32>
    %1070 = arith.mulf %1069, %1063 : vector<16x36xf32>
    %1071 = arith.addf %1053, %1070 : vector<16x36xf32>
    %c90_296 = arith.constant 90 : index
    %1072 = memref.load %arg4[%c90_296] : memref<144xf32, #tpu.memory_space<smem>>
    %1073 = vector.broadcast %1072 : f32 to vector<16x36xf32>
    %1074 = arith.mulf %1073, %1063 : vector<16x36xf32>
    %1075 = arith.addf %1057, %1074 : vector<16x36xf32>
    %c126_297 = arith.constant 126 : index
    %1076 = memref.load %arg4[%c126_297] : memref<144xf32, #tpu.memory_space<smem>>
    %1077 = vector.broadcast %1076 : f32 to vector<16x36xf32>
    %1078 = arith.mulf %1077, %1063 : vector<16x36xf32>
    %1079 = arith.addf %1061, %1078 : vector<16x36xf32>
    %c2_298 = arith.constant 2 : index
    %c0_299 = arith.constant 0 : index
    %c1_300 = arith.constant 1 : index
    %1080 = vector.load %arg8[%c2_298, %c0_299, %c1_300] : memref<4x18x38xf32, #tpu.memory_space<vmem>>, vector<1x16x36xf32>
    %1081 = vector.shape_cast %1080 : vector<1x16x36xf32> to vector<16x36xf32>
    %c19_301 = arith.constant 19 : index
    %1082 = memref.load %arg4[%c19_301] : memref<144xf32, #tpu.memory_space<smem>>
    %1083 = vector.broadcast %1082 : f32 to vector<16x36xf32>
    %1084 = arith.mulf %1083, %1081 : vector<16x36xf32>
    %1085 = arith.addf %1067, %1084 : vector<16x36xf32>
    %c55_302 = arith.constant 55 : index
    %1086 = memref.load %arg4[%c55_302] : memref<144xf32, #tpu.memory_space<smem>>
    %1087 = vector.broadcast %1086 : f32 to vector<16x36xf32>
    %1088 = arith.mulf %1087, %1081 : vector<16x36xf32>
    %1089 = arith.addf %1071, %1088 : vector<16x36xf32>
    %c91_303 = arith.constant 91 : index
    %1090 = memref.load %arg4[%c91_303] : memref<144xf32, #tpu.memory_space<smem>>
    %1091 = vector.broadcast %1090 : f32 to vector<16x36xf32>
    %1092 = arith.mulf %1091, %1081 : vector<16x36xf32>
    %1093 = arith.addf %1075, %1092 : vector<16x36xf32>
    %c127_304 = arith.constant 127 : index
    %1094 = memref.load %arg4[%c127_304] : memref<144xf32, #tpu.memory_space<smem>>
    %1095 = vector.broadcast %1094 : f32 to vector<16x36xf32>
    %1096 = arith.mulf %1095, %1081 : vector<16x36xf32>
    %1097 = arith.addf %1079, %1096 : vector<16x36xf32>
    %c2_305 = arith.constant 2 : index
    %c0_306 = arith.constant 0 : index
    %c2_307 = arith.constant 2 : index
    %1098 = vector.load %arg8[%c2_305, %c0_306, %c2_307] : memref<4x18x38xf32, #tpu.memory_space<vmem>>, vector<1x16x36xf32>
    %1099 = vector.shape_cast %1098 : vector<1x16x36xf32> to vector<16x36xf32>
    %c20_308 = arith.constant 20 : index
    %1100 = memref.load %arg4[%c20_308] : memref<144xf32, #tpu.memory_space<smem>>
    %1101 = vector.broadcast %1100 : f32 to vector<16x36xf32>
    %1102 = arith.mulf %1101, %1099 : vector<16x36xf32>
    %1103 = arith.addf %1085, %1102 : vector<16x36xf32>
    %c56_309 = arith.constant 56 : index
    %1104 = memref.load %arg4[%c56_309] : memref<144xf32, #tpu.memory_space<smem>>
    %1105 = vector.broadcast %1104 : f32 to vector<16x36xf32>
    %1106 = arith.mulf %1105, %1099 : vector<16x36xf32>
    %1107 = arith.addf %1089, %1106 : vector<16x36xf32>
    %c92_310 = arith.constant 92 : index
    %1108 = memref.load %arg4[%c92_310] : memref<144xf32, #tpu.memory_space<smem>>
    %1109 = vector.broadcast %1108 : f32 to vector<16x36xf32>
    %1110 = arith.mulf %1109, %1099 : vector<16x36xf32>
    %1111 = arith.addf %1093, %1110 : vector<16x36xf32>
    %c128_311 = arith.constant 128 : index
    %1112 = memref.load %arg4[%c128_311] : memref<144xf32, #tpu.memory_space<smem>>
    %1113 = vector.broadcast %1112 : f32 to vector<16x36xf32>
    %1114 = arith.mulf %1113, %1099 : vector<16x36xf32>
    %1115 = arith.addf %1097, %1114 : vector<16x36xf32>
    %c2_312 = arith.constant 2 : index
    %c1_313 = arith.constant 1 : index
    %c0_314 = arith.constant 0 : index
    %1116 = vector.load %arg8[%c2_312, %c1_313, %c0_314] : memref<4x18x38xf32, #tpu.memory_space<vmem>>, vector<1x16x36xf32>
    %1117 = vector.shape_cast %1116 : vector<1x16x36xf32> to vector<16x36xf32>
    %c21_315 = arith.constant 21 : index
    %1118 = memref.load %arg4[%c21_315] : memref<144xf32, #tpu.memory_space<smem>>
    %1119 = vector.broadcast %1118 : f32 to vector<16x36xf32>
    %1120 = arith.mulf %1119, %1117 : vector<16x36xf32>
    %1121 = arith.addf %1103, %1120 : vector<16x36xf32>
    %c57_316 = arith.constant 57 : index
    %1122 = memref.load %arg4[%c57_316] : memref<144xf32, #tpu.memory_space<smem>>
    %1123 = vector.broadcast %1122 : f32 to vector<16x36xf32>
    %1124 = arith.mulf %1123, %1117 : vector<16x36xf32>
    %1125 = arith.addf %1107, %1124 : vector<16x36xf32>
    %c93_317 = arith.constant 93 : index
    %1126 = memref.load %arg4[%c93_317] : memref<144xf32, #tpu.memory_space<smem>>
    %1127 = vector.broadcast %1126 : f32 to vector<16x36xf32>
    %1128 = arith.mulf %1127, %1117 : vector<16x36xf32>
    %1129 = arith.addf %1111, %1128 : vector<16x36xf32>
    %c129_318 = arith.constant 129 : index
    %1130 = memref.load %arg4[%c129_318] : memref<144xf32, #tpu.memory_space<smem>>
    %1131 = vector.broadcast %1130 : f32 to vector<16x36xf32>
    %1132 = arith.mulf %1131, %1117 : vector<16x36xf32>
    %1133 = arith.addf %1115, %1132 : vector<16x36xf32>
    %c2_319 = arith.constant 2 : index
    %c1_320 = arith.constant 1 : index
    %c1_321 = arith.constant 1 : index
    %1134 = vector.load %arg8[%c2_319, %c1_320, %c1_321] : memref<4x18x38xf32, #tpu.memory_space<vmem>>, vector<1x16x36xf32>
    %1135 = vector.shape_cast %1134 : vector<1x16x36xf32> to vector<16x36xf32>
    %c22_322 = arith.constant 22 : index
    %1136 = memref.load %arg4[%c22_322] : memref<144xf32, #tpu.memory_space<smem>>
    %1137 = vector.broadcast %1136 : f32 to vector<16x36xf32>
    %1138 = arith.mulf %1137, %1135 : vector<16x36xf32>
    %1139 = arith.addf %1121, %1138 : vector<16x36xf32>
    %c58_323 = arith.constant 58 : index
    %1140 = memref.load %arg4[%c58_323] : memref<144xf32, #tpu.memory_space<smem>>
    %1141 = vector.broadcast %1140 : f32 to vector<16x36xf32>
    %1142 = arith.mulf %1141, %1135 : vector<16x36xf32>
    %1143 = arith.addf %1125, %1142 : vector<16x36xf32>
    %c94_324 = arith.constant 94 : index
    %1144 = memref.load %arg4[%c94_324] : memref<144xf32, #tpu.memory_space<smem>>
    %1145 = vector.broadcast %1144 : f32 to vector<16x36xf32>
    %1146 = arith.mulf %1145, %1135 : vector<16x36xf32>
    %1147 = arith.addf %1129, %1146 : vector<16x36xf32>
    %c130_325 = arith.constant 130 : index
    %1148 = memref.load %arg4[%c130_325] : memref<144xf32, #tpu.memory_space<smem>>
    %1149 = vector.broadcast %1148 : f32 to vector<16x36xf32>
    %1150 = arith.mulf %1149, %1135 : vector<16x36xf32>
    %1151 = arith.addf %1133, %1150 : vector<16x36xf32>
    %c2_326 = arith.constant 2 : index
    %c1_327 = arith.constant 1 : index
    %c2_328 = arith.constant 2 : index
    %1152 = vector.load %arg8[%c2_326, %c1_327, %c2_328] : memref<4x18x38xf32, #tpu.memory_space<vmem>>, vector<1x16x36xf32>
    %1153 = vector.shape_cast %1152 : vector<1x16x36xf32> to vector<16x36xf32>
    %c23_329 = arith.constant 23 : index
    %1154 = memref.load %arg4[%c23_329] : memref<144xf32, #tpu.memory_space<smem>>
    %1155 = vector.broadcast %1154 : f32 to vector<16x36xf32>
    %1156 = arith.mulf %1155, %1153 : vector<16x36xf32>
    %1157 = arith.addf %1139, %1156 : vector<16x36xf32>
    %c59_330 = arith.constant 59 : index
    %1158 = memref.load %arg4[%c59_330] : memref<144xf32, #tpu.memory_space<smem>>
    %1159 = vector.broadcast %1158 : f32 to vector<16x36xf32>
    %1160 = arith.mulf %1159, %1153 : vector<16x36xf32>
    %1161 = arith.addf %1143, %1160 : vector<16x36xf32>
    %c95_331 = arith.constant 95 : index
    %1162 = memref.load %arg4[%c95_331] : memref<144xf32, #tpu.memory_space<smem>>
    %1163 = vector.broadcast %1162 : f32 to vector<16x36xf32>
    %1164 = arith.mulf %1163, %1153 : vector<16x36xf32>
    %1165 = arith.addf %1147, %1164 : vector<16x36xf32>
    %c131_332 = arith.constant 131 : index
    %1166 = memref.load %arg4[%c131_332] : memref<144xf32, #tpu.memory_space<smem>>
    %1167 = vector.broadcast %1166 : f32 to vector<16x36xf32>
    %1168 = arith.mulf %1167, %1153 : vector<16x36xf32>
    %1169 = arith.addf %1151, %1168 : vector<16x36xf32>
    %c2_333 = arith.constant 2 : index
    %c2_334 = arith.constant 2 : index
    %c0_335 = arith.constant 0 : index
    %1170 = vector.load %arg8[%c2_333, %c2_334, %c0_335] : memref<4x18x38xf32, #tpu.memory_space<vmem>>, vector<1x16x36xf32>
    %1171 = vector.shape_cast %1170 : vector<1x16x36xf32> to vector<16x36xf32>
    %c24_336 = arith.constant 24 : index
    %1172 = memref.load %arg4[%c24_336] : memref<144xf32, #tpu.memory_space<smem>>
    %1173 = vector.broadcast %1172 : f32 to vector<16x36xf32>
    %1174 = arith.mulf %1173, %1171 : vector<16x36xf32>
    %1175 = arith.addf %1157, %1174 : vector<16x36xf32>
    %c60_337 = arith.constant 60 : index
    %1176 = memref.load %arg4[%c60_337] : memref<144xf32, #tpu.memory_space<smem>>
    %1177 = vector.broadcast %1176 : f32 to vector<16x36xf32>
    %1178 = arith.mulf %1177, %1171 : vector<16x36xf32>
    %1179 = arith.addf %1161, %1178 : vector<16x36xf32>
    %c96_338 = arith.constant 96 : index
    %1180 = memref.load %arg4[%c96_338] : memref<144xf32, #tpu.memory_space<smem>>
    %1181 = vector.broadcast %1180 : f32 to vector<16x36xf32>
    %1182 = arith.mulf %1181, %1171 : vector<16x36xf32>
    %1183 = arith.addf %1165, %1182 : vector<16x36xf32>
    %c132_339 = arith.constant 132 : index
    %1184 = memref.load %arg4[%c132_339] : memref<144xf32, #tpu.memory_space<smem>>
    %1185 = vector.broadcast %1184 : f32 to vector<16x36xf32>
    %1186 = arith.mulf %1185, %1171 : vector<16x36xf32>
    %1187 = arith.addf %1169, %1186 : vector<16x36xf32>
    %c2_340 = arith.constant 2 : index
    %c2_341 = arith.constant 2 : index
    %c1_342 = arith.constant 1 : index
    %1188 = vector.load %arg8[%c2_340, %c2_341, %c1_342] : memref<4x18x38xf32, #tpu.memory_space<vmem>>, vector<1x16x36xf32>
    %1189 = vector.shape_cast %1188 : vector<1x16x36xf32> to vector<16x36xf32>
    %c25_343 = arith.constant 25 : index
    %1190 = memref.load %arg4[%c25_343] : memref<144xf32, #tpu.memory_space<smem>>
    %1191 = vector.broadcast %1190 : f32 to vector<16x36xf32>
    %1192 = arith.mulf %1191, %1189 : vector<16x36xf32>
    %1193 = arith.addf %1175, %1192 : vector<16x36xf32>
    %c61_344 = arith.constant 61 : index
    %1194 = memref.load %arg4[%c61_344] : memref<144xf32, #tpu.memory_space<smem>>
    %1195 = vector.broadcast %1194 : f32 to vector<16x36xf32>
    %1196 = arith.mulf %1195, %1189 : vector<16x36xf32>
    %1197 = arith.addf %1179, %1196 : vector<16x36xf32>
    %c97_345 = arith.constant 97 : index
    %1198 = memref.load %arg4[%c97_345] : memref<144xf32, #tpu.memory_space<smem>>
    %1199 = vector.broadcast %1198 : f32 to vector<16x36xf32>
    %1200 = arith.mulf %1199, %1189 : vector<16x36xf32>
    %1201 = arith.addf %1183, %1200 : vector<16x36xf32>
    %c133_346 = arith.constant 133 : index
    %1202 = memref.load %arg4[%c133_346] : memref<144xf32, #tpu.memory_space<smem>>
    %1203 = vector.broadcast %1202 : f32 to vector<16x36xf32>
    %1204 = arith.mulf %1203, %1189 : vector<16x36xf32>
    %1205 = arith.addf %1187, %1204 : vector<16x36xf32>
    %c2_347 = arith.constant 2 : index
    %c2_348 = arith.constant 2 : index
    %c2_349 = arith.constant 2 : index
    %1206 = vector.load %arg8[%c2_347, %c2_348, %c2_349] : memref<4x18x38xf32, #tpu.memory_space<vmem>>, vector<1x16x36xf32>
    %1207 = vector.shape_cast %1206 : vector<1x16x36xf32> to vector<16x36xf32>
    %c26_350 = arith.constant 26 : index
    %1208 = memref.load %arg4[%c26_350] : memref<144xf32, #tpu.memory_space<smem>>
    %1209 = vector.broadcast %1208 : f32 to vector<16x36xf32>
    %1210 = arith.mulf %1209, %1207 : vector<16x36xf32>
    %1211 = arith.addf %1193, %1210 : vector<16x36xf32>
    %c62_351 = arith.constant 62 : index
    %1212 = memref.load %arg4[%c62_351] : memref<144xf32, #tpu.memory_space<smem>>
    %1213 = vector.broadcast %1212 : f32 to vector<16x36xf32>
    %1214 = arith.mulf %1213, %1207 : vector<16x36xf32>
    %1215 = arith.addf %1197, %1214 : vector<16x36xf32>
    %c98_352 = arith.constant 98 : index
    %1216 = memref.load %arg4[%c98_352] : memref<144xf32, #tpu.memory_space<smem>>
    %1217 = vector.broadcast %1216 : f32 to vector<16x36xf32>
    %1218 = arith.mulf %1217, %1207 : vector<16x36xf32>
    %1219 = arith.addf %1201, %1218 : vector<16x36xf32>
    %c134_353 = arith.constant 134 : index
    %1220 = memref.load %arg4[%c134_353] : memref<144xf32, #tpu.memory_space<smem>>
    %1221 = vector.broadcast %1220 : f32 to vector<16x36xf32>
    %1222 = arith.mulf %1221, %1207 : vector<16x36xf32>
    %1223 = arith.addf %1205, %1222 : vector<16x36xf32>
    %c3_354 = arith.constant 3 : index
    %c0_355 = arith.constant 0 : index
    %c0_356 = arith.constant 0 : index
    %1224 = vector.load %arg8[%c3_354, %c0_355, %c0_356] : memref<4x18x38xf32, #tpu.memory_space<vmem>>, vector<1x16x36xf32>
    %1225 = vector.shape_cast %1224 : vector<1x16x36xf32> to vector<16x36xf32>
    %c27_357 = arith.constant 27 : index
    %1226 = memref.load %arg4[%c27_357] : memref<144xf32, #tpu.memory_space<smem>>
    %1227 = vector.broadcast %1226 : f32 to vector<16x36xf32>
    %1228 = arith.mulf %1227, %1225 : vector<16x36xf32>
    %1229 = arith.addf %1211, %1228 : vector<16x36xf32>
    %c63_358 = arith.constant 63 : index
    %1230 = memref.load %arg4[%c63_358] : memref<144xf32, #tpu.memory_space<smem>>
    %1231 = vector.broadcast %1230 : f32 to vector<16x36xf32>
    %1232 = arith.mulf %1231, %1225 : vector<16x36xf32>
    %1233 = arith.addf %1215, %1232 : vector<16x36xf32>
    %c99_359 = arith.constant 99 : index
    %1234 = memref.load %arg4[%c99_359] : memref<144xf32, #tpu.memory_space<smem>>
    %1235 = vector.broadcast %1234 : f32 to vector<16x36xf32>
    %1236 = arith.mulf %1235, %1225 : vector<16x36xf32>
    %1237 = arith.addf %1219, %1236 : vector<16x36xf32>
    %c135_360 = arith.constant 135 : index
    %1238 = memref.load %arg4[%c135_360] : memref<144xf32, #tpu.memory_space<smem>>
    %1239 = vector.broadcast %1238 : f32 to vector<16x36xf32>
    %1240 = arith.mulf %1239, %1225 : vector<16x36xf32>
    %1241 = arith.addf %1223, %1240 : vector<16x36xf32>
    %c3_361 = arith.constant 3 : index
    %c0_362 = arith.constant 0 : index
    %c1_363 = arith.constant 1 : index
    %1242 = vector.load %arg8[%c3_361, %c0_362, %c1_363] : memref<4x18x38xf32, #tpu.memory_space<vmem>>, vector<1x16x36xf32>
    %1243 = vector.shape_cast %1242 : vector<1x16x36xf32> to vector<16x36xf32>
    %c28_364 = arith.constant 28 : index
    %1244 = memref.load %arg4[%c28_364] : memref<144xf32, #tpu.memory_space<smem>>
    %1245 = vector.broadcast %1244 : f32 to vector<16x36xf32>
    %1246 = arith.mulf %1245, %1243 : vector<16x36xf32>
    %1247 = arith.addf %1229, %1246 : vector<16x36xf32>
    %c64_365 = arith.constant 64 : index
    %1248 = memref.load %arg4[%c64_365] : memref<144xf32, #tpu.memory_space<smem>>
    %1249 = vector.broadcast %1248 : f32 to vector<16x36xf32>
    %1250 = arith.mulf %1249, %1243 : vector<16x36xf32>
    %1251 = arith.addf %1233, %1250 : vector<16x36xf32>
    %c100_366 = arith.constant 100 : index
    %1252 = memref.load %arg4[%c100_366] : memref<144xf32, #tpu.memory_space<smem>>
    %1253 = vector.broadcast %1252 : f32 to vector<16x36xf32>
    %1254 = arith.mulf %1253, %1243 : vector<16x36xf32>
    %1255 = arith.addf %1237, %1254 : vector<16x36xf32>
    %c136_367 = arith.constant 136 : index
    %1256 = memref.load %arg4[%c136_367] : memref<144xf32, #tpu.memory_space<smem>>
    %1257 = vector.broadcast %1256 : f32 to vector<16x36xf32>
    %1258 = arith.mulf %1257, %1243 : vector<16x36xf32>
    %1259 = arith.addf %1241, %1258 : vector<16x36xf32>
    %c3_368 = arith.constant 3 : index
    %c0_369 = arith.constant 0 : index
    %c2_370 = arith.constant 2 : index
    %1260 = vector.load %arg8[%c3_368, %c0_369, %c2_370] : memref<4x18x38xf32, #tpu.memory_space<vmem>>, vector<1x16x36xf32>
    %1261 = vector.shape_cast %1260 : vector<1x16x36xf32> to vector<16x36xf32>
    %c29_371 = arith.constant 29 : index
    %1262 = memref.load %arg4[%c29_371] : memref<144xf32, #tpu.memory_space<smem>>
    %1263 = vector.broadcast %1262 : f32 to vector<16x36xf32>
    %1264 = arith.mulf %1263, %1261 : vector<16x36xf32>
    %1265 = arith.addf %1247, %1264 : vector<16x36xf32>
    %c65_372 = arith.constant 65 : index
    %1266 = memref.load %arg4[%c65_372] : memref<144xf32, #tpu.memory_space<smem>>
    %1267 = vector.broadcast %1266 : f32 to vector<16x36xf32>
    %1268 = arith.mulf %1267, %1261 : vector<16x36xf32>
    %1269 = arith.addf %1251, %1268 : vector<16x36xf32>
    %c101_373 = arith.constant 101 : index
    %1270 = memref.load %arg4[%c101_373] : memref<144xf32, #tpu.memory_space<smem>>
    %1271 = vector.broadcast %1270 : f32 to vector<16x36xf32>
    %1272 = arith.mulf %1271, %1261 : vector<16x36xf32>
    %1273 = arith.addf %1255, %1272 : vector<16x36xf32>
    %c137_374 = arith.constant 137 : index
    %1274 = memref.load %arg4[%c137_374] : memref<144xf32, #tpu.memory_space<smem>>
    %1275 = vector.broadcast %1274 : f32 to vector<16x36xf32>
    %1276 = arith.mulf %1275, %1261 : vector<16x36xf32>
    %1277 = arith.addf %1259, %1276 : vector<16x36xf32>
    %c3_375 = arith.constant 3 : index
    %c1_376 = arith.constant 1 : index
    %c0_377 = arith.constant 0 : index
    %1278 = vector.load %arg8[%c3_375, %c1_376, %c0_377] : memref<4x18x38xf32, #tpu.memory_space<vmem>>, vector<1x16x36xf32>
    %1279 = vector.shape_cast %1278 : vector<1x16x36xf32> to vector<16x36xf32>
    %c30_378 = arith.constant 30 : index
    %1280 = memref.load %arg4[%c30_378] : memref<144xf32, #tpu.memory_space<smem>>
    %1281 = vector.broadcast %1280 : f32 to vector<16x36xf32>
    %1282 = arith.mulf %1281, %1279 : vector<16x36xf32>
    %1283 = arith.addf %1265, %1282 : vector<16x36xf32>
    %c66_379 = arith.constant 66 : index
    %1284 = memref.load %arg4[%c66_379] : memref<144xf32, #tpu.memory_space<smem>>
    %1285 = vector.broadcast %1284 : f32 to vector<16x36xf32>
    %1286 = arith.mulf %1285, %1279 : vector<16x36xf32>
    %1287 = arith.addf %1269, %1286 : vector<16x36xf32>
    %c102_380 = arith.constant 102 : index
    %1288 = memref.load %arg4[%c102_380] : memref<144xf32, #tpu.memory_space<smem>>
    %1289 = vector.broadcast %1288 : f32 to vector<16x36xf32>
    %1290 = arith.mulf %1289, %1279 : vector<16x36xf32>
    %1291 = arith.addf %1273, %1290 : vector<16x36xf32>
    %c138_381 = arith.constant 138 : index
    %1292 = memref.load %arg4[%c138_381] : memref<144xf32, #tpu.memory_space<smem>>
    %1293 = vector.broadcast %1292 : f32 to vector<16x36xf32>
    %1294 = arith.mulf %1293, %1279 : vector<16x36xf32>
    %1295 = arith.addf %1277, %1294 : vector<16x36xf32>
    %c3_382 = arith.constant 3 : index
    %c1_383 = arith.constant 1 : index
    %c1_384 = arith.constant 1 : index
    %1296 = vector.load %arg8[%c3_382, %c1_383, %c1_384] : memref<4x18x38xf32, #tpu.memory_space<vmem>>, vector<1x16x36xf32>
    %1297 = vector.shape_cast %1296 : vector<1x16x36xf32> to vector<16x36xf32>
    %c31_385 = arith.constant 31 : index
    %1298 = memref.load %arg4[%c31_385] : memref<144xf32, #tpu.memory_space<smem>>
    %1299 = vector.broadcast %1298 : f32 to vector<16x36xf32>
    %1300 = arith.mulf %1299, %1297 : vector<16x36xf32>
    %1301 = arith.addf %1283, %1300 : vector<16x36xf32>
    %c67_386 = arith.constant 67 : index
    %1302 = memref.load %arg4[%c67_386] : memref<144xf32, #tpu.memory_space<smem>>
    %1303 = vector.broadcast %1302 : f32 to vector<16x36xf32>
    %1304 = arith.mulf %1303, %1297 : vector<16x36xf32>
    %1305 = arith.addf %1287, %1304 : vector<16x36xf32>
    %c103_387 = arith.constant 103 : index
    %1306 = memref.load %arg4[%c103_387] : memref<144xf32, #tpu.memory_space<smem>>
    %1307 = vector.broadcast %1306 : f32 to vector<16x36xf32>
    %1308 = arith.mulf %1307, %1297 : vector<16x36xf32>
    %1309 = arith.addf %1291, %1308 : vector<16x36xf32>
    %c139_388 = arith.constant 139 : index
    %1310 = memref.load %arg4[%c139_388] : memref<144xf32, #tpu.memory_space<smem>>
    %1311 = vector.broadcast %1310 : f32 to vector<16x36xf32>
    %1312 = arith.mulf %1311, %1297 : vector<16x36xf32>
    %1313 = arith.addf %1295, %1312 : vector<16x36xf32>
    %c3_389 = arith.constant 3 : index
    %c1_390 = arith.constant 1 : index
    %c2_391 = arith.constant 2 : index
    %1314 = vector.load %arg8[%c3_389, %c1_390, %c2_391] : memref<4x18x38xf32, #tpu.memory_space<vmem>>, vector<1x16x36xf32>
    %1315 = vector.shape_cast %1314 : vector<1x16x36xf32> to vector<16x36xf32>
    %c32_392 = arith.constant 32 : index
    %1316 = memref.load %arg4[%c32_392] : memref<144xf32, #tpu.memory_space<smem>>
    %1317 = vector.broadcast %1316 : f32 to vector<16x36xf32>
    %1318 = arith.mulf %1317, %1315 : vector<16x36xf32>
    %1319 = arith.addf %1301, %1318 : vector<16x36xf32>
    %c68_393 = arith.constant 68 : index
    %1320 = memref.load %arg4[%c68_393] : memref<144xf32, #tpu.memory_space<smem>>
    %1321 = vector.broadcast %1320 : f32 to vector<16x36xf32>
    %1322 = arith.mulf %1321, %1315 : vector<16x36xf32>
    %1323 = arith.addf %1305, %1322 : vector<16x36xf32>
    %c104_394 = arith.constant 104 : index
    %1324 = memref.load %arg4[%c104_394] : memref<144xf32, #tpu.memory_space<smem>>
    %1325 = vector.broadcast %1324 : f32 to vector<16x36xf32>
    %1326 = arith.mulf %1325, %1315 : vector<16x36xf32>
    %1327 = arith.addf %1309, %1326 : vector<16x36xf32>
    %c140_395 = arith.constant 140 : index
    %1328 = memref.load %arg4[%c140_395] : memref<144xf32, #tpu.memory_space<smem>>
    %1329 = vector.broadcast %1328 : f32 to vector<16x36xf32>
    %1330 = arith.mulf %1329, %1315 : vector<16x36xf32>
    %1331 = arith.addf %1313, %1330 : vector<16x36xf32>
    %c3_396 = arith.constant 3 : index
    %c2_397 = arith.constant 2 : index
    %c0_398 = arith.constant 0 : index
    %1332 = vector.load %arg8[%c3_396, %c2_397, %c0_398] : memref<4x18x38xf32, #tpu.memory_space<vmem>>, vector<1x16x36xf32>
    %1333 = vector.shape_cast %1332 : vector<1x16x36xf32> to vector<16x36xf32>
    %c33_399 = arith.constant 33 : index
    %1334 = memref.load %arg4[%c33_399] : memref<144xf32, #tpu.memory_space<smem>>
    %1335 = vector.broadcast %1334 : f32 to vector<16x36xf32>
    %1336 = arith.mulf %1335, %1333 : vector<16x36xf32>
    %1337 = arith.addf %1319, %1336 : vector<16x36xf32>
    %c69_400 = arith.constant 69 : index
    %1338 = memref.load %arg4[%c69_400] : memref<144xf32, #tpu.memory_space<smem>>
    %1339 = vector.broadcast %1338 : f32 to vector<16x36xf32>
    %1340 = arith.mulf %1339, %1333 : vector<16x36xf32>
    %1341 = arith.addf %1323, %1340 : vector<16x36xf32>
    %c105_401 = arith.constant 105 : index
    %1342 = memref.load %arg4[%c105_401] : memref<144xf32, #tpu.memory_space<smem>>
    %1343 = vector.broadcast %1342 : f32 to vector<16x36xf32>
    %1344 = arith.mulf %1343, %1333 : vector<16x36xf32>
    %1345 = arith.addf %1327, %1344 : vector<16x36xf32>
    %c141_402 = arith.constant 141 : index
    %1346 = memref.load %arg4[%c141_402] : memref<144xf32, #tpu.memory_space<smem>>
    %1347 = vector.broadcast %1346 : f32 to vector<16x36xf32>
    %1348 = arith.mulf %1347, %1333 : vector<16x36xf32>
    %1349 = arith.addf %1331, %1348 : vector<16x36xf32>
    %c3_403 = arith.constant 3 : index
    %c2_404 = arith.constant 2 : index
    %c1_405 = arith.constant 1 : index
    %1350 = vector.load %arg8[%c3_403, %c2_404, %c1_405] : memref<4x18x38xf32, #tpu.memory_space<vmem>>, vector<1x16x36xf32>
    %1351 = vector.shape_cast %1350 : vector<1x16x36xf32> to vector<16x36xf32>
    %c34_406 = arith.constant 34 : index
    %1352 = memref.load %arg4[%c34_406] : memref<144xf32, #tpu.memory_space<smem>>
    %1353 = vector.broadcast %1352 : f32 to vector<16x36xf32>
    %1354 = arith.mulf %1353, %1351 : vector<16x36xf32>
    %1355 = arith.addf %1337, %1354 : vector<16x36xf32>
    %c70_407 = arith.constant 70 : index
    %1356 = memref.load %arg4[%c70_407] : memref<144xf32, #tpu.memory_space<smem>>
    %1357 = vector.broadcast %1356 : f32 to vector<16x36xf32>
    %1358 = arith.mulf %1357, %1351 : vector<16x36xf32>
    %1359 = arith.addf %1341, %1358 : vector<16x36xf32>
    %c106_408 = arith.constant 106 : index
    %1360 = memref.load %arg4[%c106_408] : memref<144xf32, #tpu.memory_space<smem>>
    %1361 = vector.broadcast %1360 : f32 to vector<16x36xf32>
    %1362 = arith.mulf %1361, %1351 : vector<16x36xf32>
    %1363 = arith.addf %1345, %1362 : vector<16x36xf32>
    %c142_409 = arith.constant 142 : index
    %1364 = memref.load %arg4[%c142_409] : memref<144xf32, #tpu.memory_space<smem>>
    %1365 = vector.broadcast %1364 : f32 to vector<16x36xf32>
    %1366 = arith.mulf %1365, %1351 : vector<16x36xf32>
    %1367 = arith.addf %1349, %1366 : vector<16x36xf32>
    %c3_410 = arith.constant 3 : index
    %c2_411 = arith.constant 2 : index
    %c2_412 = arith.constant 2 : index
    %1368 = vector.load %arg8[%c3_410, %c2_411, %c2_412] : memref<4x18x38xf32, #tpu.memory_space<vmem>>, vector<1x16x36xf32>
    %1369 = vector.shape_cast %1368 : vector<1x16x36xf32> to vector<16x36xf32>
    %c35_413 = arith.constant 35 : index
    %1370 = memref.load %arg4[%c35_413] : memref<144xf32, #tpu.memory_space<smem>>
    %1371 = vector.broadcast %1370 : f32 to vector<16x36xf32>
    %1372 = arith.mulf %1371, %1369 : vector<16x36xf32>
    %1373 = arith.addf %1355, %1372 : vector<16x36xf32>
    %c71_414 = arith.constant 71 : index
    %1374 = memref.load %arg4[%c71_414] : memref<144xf32, #tpu.memory_space<smem>>
    %1375 = vector.broadcast %1374 : f32 to vector<16x36xf32>
    %1376 = arith.mulf %1375, %1369 : vector<16x36xf32>
    %1377 = arith.addf %1359, %1376 : vector<16x36xf32>
    %c107_415 = arith.constant 107 : index
    %1378 = memref.load %arg4[%c107_415] : memref<144xf32, #tpu.memory_space<smem>>
    %1379 = vector.broadcast %1378 : f32 to vector<16x36xf32>
    %1380 = arith.mulf %1379, %1369 : vector<16x36xf32>
    %1381 = arith.addf %1363, %1380 : vector<16x36xf32>
    %c143_416 = arith.constant 143 : index
    %1382 = memref.load %arg4[%c143_416] : memref<144xf32, #tpu.memory_space<smem>>
    %1383 = vector.broadcast %1382 : f32 to vector<16x36xf32>
    %1384 = arith.mulf %1383, %1369 : vector<16x36xf32>
    %1385 = arith.addf %1367, %1384 : vector<16x36xf32>
    %c0_417 = arith.constant 0 : index
    %c1_418 = arith.constant 1 : index
    %c1_419 = arith.constant 1 : index
    %1386 = vector.load %arg7[%c0_417, %c1_418, %c1_419] : memref<4x18x38xf32, #tpu.memory_space<vmem>>, vector<1x16x36xf32>
    %1387 = vector.shape_cast %1386 : vector<1x16x36xf32> to vector<16x36xf32>
    %c0_420 = arith.constant 0 : index
    %1388 = memref.load %arg5[%c0_420] : memref<4xf32, #tpu.memory_space<smem>>
    %1389 = vector.broadcast %1388 : f32 to vector<16x36xf32>
    %1390 = arith.addf %1373, %1389 : vector<16x36xf32>
    %1391 = arith.addf %1390, %1387 : vector<16x36xf32>
    %cst_421 = arith.constant 0.000000e+00 : f32
    %1392 = vector.broadcast %cst_421 : f32 to vector<16x36xf32>
    %1393 = arith.cmpf oge, %1391, %1392 : vector<16x36xf32>
    %cst_422 = arith.constant 0.00999999977 : f32
    %1394 = vector.broadcast %cst_422 : f32 to vector<16x36xf32>
    %1395 = arith.mulf %1394, %1391 : vector<16x36xf32>
    %1396 = arith.select %1393, %1391, %1395 : vector<16x36xi1>, vector<16x36xf32>
    %1397 = vector.extract_strided_slice %1396 {offsets = [0, 1], sizes = [16, 16], strides = [1, 1]} : vector<16x36xf32> to vector<16x16xf32>
    %c0_423 = arith.constant 0 : index
    %c0_424 = arith.constant 0 : index
    %c0_425 = arith.constant 0 : index
    %c0_426 = arith.constant 0 : index
    %1398 = vector.load %arg6[%c0_423, %c0_424, %c0_425, %c0_426] : memref<2x4x16x16xf32, #tpu.memory_space<vmem>>, vector<1x1x16x16xf32>
    %1399 = vector.shape_cast %1398 : vector<1x1x16x16xf32> to vector<16x16xf32>
    %1400 = vector.shape_cast %1397 : vector<16x16xf32> to vector<1x1x16x16xf32>
    tpu.vector_store %arg6[%c0_423, %c0_424, %c0_425, %c0_426], %1400 {strides = array<i32>} : memref<2x4x16x16xf32, #tpu.memory_space<vmem>>, vector<1x1x16x16xf32>,
    %1401 = vector.extract_strided_slice %1396 {offsets = [0, 19], sizes = [16, 16], strides = [1, 1]} : vector<16x36xf32> to vector<16x16xf32>
    %c1_427 = arith.constant 1 : index
    %c0_428 = arith.constant 0 : index
    %c0_429 = arith.constant 0 : index
    %c0_430 = arith.constant 0 : index
    %1402 = vector.load %arg6[%c1_427, %c0_428, %c0_429, %c0_430] : memref<2x4x16x16xf32, #tpu.memory_space<vmem>>, vector<1x1x16x16xf32>
    %1403 = vector.shape_cast %1402 : vector<1x1x16x16xf32> to vector<16x16xf32>
    %1404 = vector.shape_cast %1401 : vector<16x16xf32> to vector<1x1x16x16xf32>
    tpu.vector_store %arg6[%c1_427, %c0_428, %c0_429, %c0_430], %1404 {strides = array<i32>} : memref<2x4x16x16xf32, #tpu.memory_space<vmem>>, vector<1x1x16x16xf32>,
    %c1_431 = arith.constant 1 : index
    %c1_432 = arith.constant 1 : index
    %c1_433 = arith.constant 1 : index
    %1405 = vector.load %arg7[%c1_431, %c1_432, %c1_433] : memref<4x18x38xf32, #tpu.memory_space<vmem>>, vector<1x16x36xf32>
    %1406 = vector.shape_cast %1405 : vector<1x16x36xf32> to vector<16x36xf32>
    %c1_434 = arith.constant 1 : index
    %1407 = memref.load %arg5[%c1_434] : memref<4xf32, #tpu.memory_space<smem>>
    %1408 = vector.broadcast %1407 : f32 to vector<16x36xf32>
    %1409 = arith.addf %1377, %1408 : vector<16x36xf32>
    %1410 = arith.addf %1409, %1406 : vector<16x36xf32>
    %cst_435 = arith.constant 0.000000e+00 : f32
    %1411 = vector.broadcast %cst_435 : f32 to vector<16x36xf32>
    %1412 = arith.cmpf oge, %1410, %1411 : vector<16x36xf32>
    %cst_436 = arith.constant 0.00999999977 : f32
    %1413 = vector.broadcast %cst_436 : f32 to vector<16x36xf32>
    %1414 = arith.mulf %1413, %1410 : vector<16x36xf32>
    %1415 = arith.select %1412, %1410, %1414 : vector<16x36xi1>, vector<16x36xf32>
    %1416 = vector.extract_strided_slice %1415 {offsets = [0, 1], sizes = [16, 16], strides = [1, 1]} : vector<16x36xf32> to vector<16x16xf32>
    %c0_437 = arith.constant 0 : index
    %c1_438 = arith.constant 1 : index
    %c0_439 = arith.constant 0 : index
    %c0_440 = arith.constant 0 : index
    %1417 = vector.load %arg6[%c0_437, %c1_438, %c0_439, %c0_440] : memref<2x4x16x16xf32, #tpu.memory_space<vmem>>, vector<1x1x16x16xf32>
    %1418 = vector.shape_cast %1417 : vector<1x1x16x16xf32> to vector<16x16xf32>
    %1419 = vector.shape_cast %1416 : vector<16x16xf32> to vector<1x1x16x16xf32>
    tpu.vector_store %arg6[%c0_437, %c1_438, %c0_439, %c0_440], %1419 {strides = array<i32>} : memref<2x4x16x16xf32, #tpu.memory_space<vmem>>, vector<1x1x16x16xf32>,
    %1420 = vector.extract_strided_slice %1415 {offsets = [0, 19], sizes = [16, 16], strides = [1, 1]} : vector<16x36xf32> to vector<16x16xf32>
    %c1_441 = arith.constant 1 : index
    %c1_442 = arith.constant 1 : index
    %c0_443 = arith.constant 0 : index
    %c0_444 = arith.constant 0 : index
    %1421 = vector.load %arg6[%c1_441, %c1_442, %c0_443, %c0_444] : memref<2x4x16x16xf32, #tpu.memory_space<vmem>>, vector<1x1x16x16xf32>
    %1422 = vector.shape_cast %1421 : vector<1x1x16x16xf32> to vector<16x16xf32>
    %1423 = vector.shape_cast %1420 : vector<16x16xf32> to vector<1x1x16x16xf32>
    tpu.vector_store %arg6[%c1_441, %c1_442, %c0_443, %c0_444], %1423 {strides = array<i32>} : memref<2x4x16x16xf32, #tpu.memory_space<vmem>>, vector<1x1x16x16xf32>,
    %c2_445 = arith.constant 2 : index
    %c1_446 = arith.constant 1 : index
    %c1_447 = arith.constant 1 : index
    %1424 = vector.load %arg7[%c2_445, %c1_446, %c1_447] : memref<4x18x38xf32, #tpu.memory_space<vmem>>, vector<1x16x36xf32>
    %1425 = vector.shape_cast %1424 : vector<1x16x36xf32> to vector<16x36xf32>
    %c2_448 = arith.constant 2 : index
    %1426 = memref.load %arg5[%c2_448] : memref<4xf32, #tpu.memory_space<smem>>
    %1427 = vector.broadcast %1426 : f32 to vector<16x36xf32>
    %1428 = arith.addf %1381, %1427 : vector<16x36xf32>
    %1429 = arith.addf %1428, %1425 : vector<16x36xf32>
    %cst_449 = arith.constant 0.000000e+00 : f32
    %1430 = vector.broadcast %cst_449 : f32 to vector<16x36xf32>
    %1431 = arith.cmpf oge, %1429, %1430 : vector<16x36xf32>
    %cst_450 = arith.constant 0.00999999977 : f32
    %1432 = vector.broadcast %cst_450 : f32 to vector<16x36xf32>
    %1433 = arith.mulf %1432, %1429 : vector<16x36xf32>
    %1434 = arith.select %1431, %1429, %1433 : vector<16x36xi1>, vector<16x36xf32>
    %1435 = vector.extract_strided_slice %1434 {offsets = [0, 1], sizes = [16, 16], strides = [1, 1]} : vector<16x36xf32> to vector<16x16xf32>
    %c0_451 = arith.constant 0 : index
    %c2_452 = arith.constant 2 : index
    %c0_453 = arith.constant 0 : index
    %c0_454 = arith.constant 0 : index
    %1436 = vector.load %arg6[%c0_451, %c2_452, %c0_453, %c0_454] : memref<2x4x16x16xf32, #tpu.memory_space<vmem>>, vector<1x1x16x16xf32>
    %1437 = vector.shape_cast %1436 : vector<1x1x16x16xf32> to vector<16x16xf32>
    %1438 = vector.shape_cast %1435 : vector<16x16xf32> to vector<1x1x16x16xf32>
    tpu.vector_store %arg6[%c0_451, %c2_452, %c0_453, %c0_454], %1438 {strides = array<i32>} : memref<2x4x16x16xf32, #tpu.memory_space<vmem>>, vector<1x1x16x16xf32>,
    %1439 = vector.extract_strided_slice %1434 {offsets = [0, 19], sizes = [16, 16], strides = [1, 1]} : vector<16x36xf32> to vector<16x16xf32>
    %c1_455 = arith.constant 1 : index
    %c2_456 = arith.constant 2 : index
    %c0_457 = arith.constant 0 : index
    %c0_458 = arith.constant 0 : index
    %1440 = vector.load %arg6[%c1_455, %c2_456, %c0_457, %c0_458] : memref<2x4x16x16xf32, #tpu.memory_space<vmem>>, vector<1x1x16x16xf32>
    %1441 = vector.shape_cast %1440 : vector<1x1x16x16xf32> to vector<16x16xf32>
    %1442 = vector.shape_cast %1439 : vector<16x16xf32> to vector<1x1x16x16xf32>
    tpu.vector_store %arg6[%c1_455, %c2_456, %c0_457, %c0_458], %1442 {strides = array<i32>} : memref<2x4x16x16xf32, #tpu.memory_space<vmem>>, vector<1x1x16x16xf32>,
    %c3_459 = arith.constant 3 : index
    %c1_460 = arith.constant 1 : index
    %c1_461 = arith.constant 1 : index
    %1443 = vector.load %arg7[%c3_459, %c1_460, %c1_461] : memref<4x18x38xf32, #tpu.memory_space<vmem>>, vector<1x16x36xf32>
    %1444 = vector.shape_cast %1443 : vector<1x16x36xf32> to vector<16x36xf32>
    %c3_462 = arith.constant 3 : index
    %1445 = memref.load %arg5[%c3_462] : memref<4xf32, #tpu.memory_space<smem>>
    %1446 = vector.broadcast %1445 : f32 to vector<16x36xf32>
    %1447 = arith.addf %1385, %1446 : vector<16x36xf32>
    %1448 = arith.addf %1447, %1444 : vector<16x36xf32>
    %cst_463 = arith.constant 0.000000e+00 : f32
    %1449 = vector.broadcast %cst_463 : f32 to vector<16x36xf32>
    %1450 = arith.cmpf oge, %1448, %1449 : vector<16x36xf32>
    %cst_464 = arith.constant 0.00999999977 : f32
    %1451 = vector.broadcast %cst_464 : f32 to vector<16x36xf32>
    %1452 = arith.mulf %1451, %1448 : vector<16x36xf32>
    %1453 = arith.select %1450, %1448, %1452 : vector<16x36xi1>, vector<16x36xf32>
    %1454 = vector.extract_strided_slice %1453 {offsets = [0, 1], sizes = [16, 16], strides = [1, 1]} : vector<16x36xf32> to vector<16x16xf32>
    %c0_465 = arith.constant 0 : index
    %c3_466 = arith.constant 3 : index
    %c0_467 = arith.constant 0 : index
    %c0_468 = arith.constant 0 : index
    %1455 = vector.load %arg6[%c0_465, %c3_466, %c0_467, %c0_468] : memref<2x4x16x16xf32, #tpu.memory_space<vmem>>, vector<1x1x16x16xf32>
    %1456 = vector.shape_cast %1455 : vector<1x1x16x16xf32> to vector<16x16xf32>
    %1457 = vector.shape_cast %1454 : vector<16x16xf32> to vector<1x1x16x16xf32>
    tpu.vector_store %arg6[%c0_465, %c3_466, %c0_467, %c0_468], %1457 {strides = array<i32>} : memref<2x4x16x16xf32, #tpu.memory_space<vmem>>, vector<1x1x16x16xf32>,
    %1458 = vector.extract_strided_slice %1453 {offsets = [0, 19], sizes = [16, 16], strides = [1, 1]} : vector<16x36xf32> to vector<16x16xf32>
    %c1_469 = arith.constant 1 : index
    %c3_470 = arith.constant 3 : index
    %c0_471 = arith.constant 0 : index
    %c0_472 = arith.constant 0 : index
    %1459 = vector.load %arg6[%c1_469, %c3_470, %c0_471, %c0_472] : memref<2x4x16x16xf32, #tpu.memory_space<vmem>>, vector<1x1x16x16xf32>
    %1460 = vector.shape_cast %1459 : vector<1x1x16x16xf32> to vector<16x16xf32>
    %1461 = vector.shape_cast %1458 : vector<16x16xf32> to vector<1x1x16x16xf32>
    tpu.vector_store %arg6[%c1_469, %c3_470, %c0_471, %c0_472], %1461 {strides = array<i32>} : memref<2x4x16x16xf32, #tpu.memory_space<vmem>>, vector<1x1x16x16xf32>,
    return
  }
  func.func @transform_0(%arg0: i32) -> (i32, i32, i32, i32) {
    %c0_i32 = arith.constant 0 : i32
    %c0_i32_0 = arith.constant 0 : i32
    %c0_i32_1 = arith.constant 0 : i32
    %c0_i32_2 = arith.constant 0 : i32
    return %arg0, %c0_i32, %c0_i32_0, %c0_i32_1 : i32, i32, i32, i32
  }
  func.func @transform_1(%arg0: i32) -> i32 {
    %c0_i32 = arith.constant 0 : i32
    %c0_i32_0 = arith.constant 0 : i32
    return %c0_i32 : i32
  }
  func.func @transform_2(%arg0: i32) -> i32 {
    %c0_i32 = arith.constant 0 : i32
    %c0_i32_0 = arith.constant 0 : i32
    return %c0_i32 : i32
  }
  func.func @transform_3(%arg0: i32) -> i32 {
    %c0_i32 = arith.constant 0 : i32
    %c0_i32_0 = arith.constant 0 : i32
    return %c0_i32 : i32
  }
  func.func @transform_4(%arg0: i32) -> i32 {
    %c0_i32 = arith.constant 0 : i32
    %c0_i32_0 = arith.constant 0 : i32
    return %c0_i32 : i32
  }
  func.func @transform_5(%arg0: i32) -> (i32, i32, i32, i32) {
    %c0_i32 = arith.constant 0 : i32
    %c0_i32_0 = arith.constant 0 : i32
    %c0_i32_1 = arith.constant 0 : i32
    %c0_i32_2 = arith.constant 0 : i32
    return %arg0, %c0_i32, %c0_i32_0, %c0_i32_1 : i32, i32, i32, i32
  }
}

</mosaic_0001>

<llo_original>
// kernel: tpu_custom_call.1
$region0: #{tpu_custom_call.1}
  #allocation0 [shape = 'u32[]', space=smem, size = 0x4, offset = 0x4, fixed_abs, tag = 'smem constant byte address 0x4 - core index']
  #allocation1 [shape = 'u32[144,128]{1,0:T(1,128)}', space=vmem, size = 0x12000, scoped, tag = 'internal scratch']
  #allocation2 [shape = 'f32[4,18,38]{2,1,0:T(8,128)}', space=vmem, size = 0xc000, scoped, tag = 'scratch operand']
  #allocation3 [shape = 'f32[4,18,38]{2,1,0:T(8,128)}', space=vmem, size = 0xc000, scoped, tag = 'scratch operand']
  %s0 = inlined_call_operand.hbm [shape: f32[2,4,16,16], index: 0, kind: input, shape index: {}]
  %s1 = inlined_call_operand.vmem [shape: f32[144], index: 1, kind: input, shape index: {}]
  %s2 = inlined_call_operand.vmem [shape: f32[4], index: 2, kind: input, shape index: {}]
  %s3 = inlined_call_operand.vmem [shape: f32[144], index: 3, kind: input, shape index: {}]
  %s4 = inlined_call_operand.vmem [shape: f32[4], index: 4, kind: input, shape index: {}]
  %s5 = inlined_call_operand.hbm [shape: f32[2,4,16,16], index: 5, kind: output, shape index: {}]
  %s6 = sld [smem:[#allocation0]]
  $region50: #{tpu_custom_call.1} parent=0
    _
  %s8 = ssub.s32 1, %s6
  %s9 = scalar_select 0, %s8, %s6
  $region1: #{tpu_custom_call.1} parent=0
    #allocation4 [shape = 'u8[65536]{0}', space=vmem, size = 0x10000, scoped, tag = 'input window, operand 0, single buffered']
    #allocation5 [shape = 's32[1]{0}', space=sflag, size = 0x4, scoped, tag = 'scoped memory for tpu_custom_call.1']
    #allocation6 [shape = 's32[1]{0}', space=sflag, size = 0x4, scoped, tag = 'scoped memory for tpu_custom_call.1']
    #allocation7 [shape = 's32[1]{0}', space=sflag, size = 0x4, scoped, tag = 'scoped memory for tpu_custom_call.1']
    #allocation8 [shape = 'u8[1024]{0}', space=smem, size = 0x400, scoped, tag = 'input window, operand 1, single buffered']
    #allocation9 [shape = 'u8[512]{0}', space=smem, size = 0x200, scoped, tag = 'input window, operand 2, single buffered']
    #allocation10 [shape = 's32[1]{0}', space=sflag, size = 0x4, scoped, tag = 'scoped memory for tpu_custom_call.1']
    #allocation11 [shape = 'u8[1024]{0}', space=smem, size = 0x400, scoped, tag = 'input window, operand 3, single buffered']
    #allocation12 [shape = 'u8[512]{0}', space=smem, size = 0x200, scoped, tag = 'input window, operand 4, single buffered']
    #allocation13 [shape = 's32[1]{0}', space=sflag, size = 0x4, scoped, tag = 'scoped memory for tpu_custom_call.1']
    #allocation14 [shape = 'u8[65536]{0}', space=vmem, size = 0x10000, scoped, tag = 'output window, operand 0, single buffered']
    %10 = vsyncpa [#allocation5], 0
    %11 = vsyncpa [#allocation7], 0
    %12 = vsyncpa [#allocation10], 0
    %13 = vsyncpa [#allocation13], 0
    %14 = vsyncpa [#allocation6], 0
    // Predicated region
    $region2: #{tpu_custom_call.1} parent=1 // pred_check
      _
    $region3: #{tpu_custom_call.1} parent=1 // pred_check_branch
      %16 = sbr.rel (0) target = $region5
    $region4: #{tpu_custom_call.1} parent=1 // pred_region
      %s18 = ssub.s32 2048, 2048
      %19 = vsyncadd [#allocation5], %s18
      %s20 = sshll.u32 [#allocation4], 4
      %s21 = int_to_ptr.vmem [resolvable:$true] %s20
      %26 = dma.hbm_to_vmem [thread:$0]  %s0, 2048, %s21, [#allocation5], 128, 128, 8
    $region5: #{tpu_custom_call.1} parent=1 // pred_fallthru
      _
    // Predicated region
    $region6: #{tpu_custom_call.1} parent=1 // pred_check
      _
    $region7: #{tpu_custom_call.1} parent=1 // pred_check_branch
      %28 = sbr.rel (0) target = $region9
    $region8: #{tpu_custom_call.1} parent=1 // pred_region
      %s30 = ssub.s32 32, 32
      %31 = vsyncadd [#allocation7], %s30
      %s33 = sshll.u32 %s1, 4
      %s34 = int_to_ptr.vmem [resolvable:$true] %s33
      %36 = dma.vmem_to_smem %s34, 32, [#allocation8], [#allocation7]
    $region9: #{tpu_custom_call.1} parent=1 // pred_fallthru
      _
    // Predicated region
    $region10: #{tpu_custom_call.1} parent=1 // pred_check
      _
    $region11: #{tpu_custom_call.1} parent=1 // pred_check_branch
      %38 = sbr.rel (0) target = $region13
    $region12: #{tpu_custom_call.1} parent=1 // pred_region
      %s40 = ssub.s32 16, 16
      %41 = vsyncadd [#allocation10], %s40
      %s43 = sshll.u32 %s2, 4
      %s44 = int_to_ptr.vmem [resolvable:$true] %s43
      %46 = dma.vmem_to_smem %s44, 16, [#allocation9], [#allocation10]
    $region13: #{tpu_custom_call.1} parent=1 // pred_fallthru
      _
    // Predicated region
    $region14: #{tpu_custom_call.1} parent=1 // pred_check
      _
    $region15: #{tpu_custom_call.1} parent=1 // pred_check_branch
      %48 = sbr.rel (0) target = $region17
    $region16: #{tpu_custom_call.1} parent=1 // pred_region
      %s50 = ssub.s32 32, 32
      %51 = vsyncadd [#allocation10], %s50
      %s53 = sshll.u32 %s3, 4
      %s54 = int_to_ptr.vmem [resolvable:$true] %s53
      %56 = dma.vmem_to_smem %s54, 32, [#allocation11], [#allocation10]
    $region17: #{tpu_custom_call.1} parent=1 // pred_fallthru
      _
    // Predicated region
    $region18: #{tpu_custom_call.1} parent=1 // pred_check
      _
    $region19: #{tpu_custom_call.1} parent=1 // pred_check_branch
      %58 = sbr.rel (0) target = $region21
    $region20: #{tpu_custom_call.1} parent=1 // pred_region
      %s60 = ssub.s32 16, 16
      %61 = vsyncadd [#allocation13], %s60
      %s63 = sshll.u32 %s4, 4
      %s64 = int_to_ptr.vmem [resolvable:$true] %s63
      %66 = dma.vmem_to_smem %s64, 16, [#allocation12], [#allocation13]
    $region21: #{tpu_custom_call.1} parent=1 // pred_fallthru
      _
    // Predicated region
    $region22: #{tpu_custom_call.1} parent=1 // pred_check
      _
    $region23: #{tpu_custom_call.1} parent=1 // pred_check_branch
      %68 = sbr.rel (0) target = $region25
    $region24: #{tpu_custom_call.1} parent=1 // pred_region
      %69 = dma.done [#allocation5], 2048
    $region25: #{tpu_custom_call.1} parent=1 // pred_fallthru
      _
    // Predicated region
    $region26: #{tpu_custom_call.1} parent=1 // pred_check
      _
    $region27: #{tpu_custom_call.1} parent=1 // pred_check_branch
      %71 = sbr.rel (0) target = $region29
    $region28: #{tpu_custom_call.1} parent=1 // pred_region
      %72 = dma.done [#allocation7], 32
    $region29: #{tpu_custom_call.1} parent=1 // pred_fallthru
      _
    // Predicated region
    $region30: #{tpu_custom_call.1} parent=1 // pred_check
      _
    $region31: #{tpu_custom_call.1} parent=1 // pred_check_branch
      %74 = sbr.rel (0) target = $region33
    $region32: #{tpu_custom_call.1} parent=1 // pred_region
      %75 = dma.done [#allocation10], 16
    $region33: #{tpu_custom_call.1} parent=1 // pred_fallthru
      _
    // Predicated region
    $region34: #{tpu_custom_call.1} parent=1 // pred_check
      _
    $region35: #{tpu_custom_call.1} parent=1 // pred_check_branch
      %77 = sbr.rel (0) target = $region37
    $region36: #{tpu_custom_call.1} parent=1 // pred_region
      %78 = dma.done [#allocation10], 32
    $region37: #{tpu_custom_call.1} parent=1 // pred_fallthru
      _
    // Predicated region
    $region38: #{tpu_custom_call.1} parent=1 // pred_check
      _
    $region39: #{tpu_custom_call.1} parent=1 // pred_check_branch
      %80 = sbr.rel (0) target = $region41
    $region40: #{tpu_custom_call.1} parent=1 // pred_region
      %81 = dma.done [#allocation13], 16
    $region41: #{tpu_custom_call.1} parent=1 // pred_fallthru
      _
    %82 = sfence
    %v83 = vlaneseq
    %v84 = vand.u32 %v83, 127
    %vm85 = vcmp.ge.s32.totalorder %v84, 1
    %vm86 = vcmp.lt.s32.totalorder %v84, 17
    %vm87 = vmand %vm85, %vm86
    %vm88 = vcmp.ge.s32.totalorder %v84, 19
    %vm89 = vcmp.lt.s32.totalorder %v84, 35
    %vm90 = vmand %vm88, %vm89
    %vm91 = vmor %vm87, %vm90
    %vm92 = vcmask 310272
    %93 = vst.msk [vmem:[#allocation2] sm:$0xff] %vm92, 0.0
    %94 = vst.msk [vmem:[#allocation2 + $0x8] sm:$0xff] %vm92, 0.0
    %vm95 = vcmask 304128
    %96 = vst.msk [vmem:[#allocation2 + $0x10] sm:$0x3] %vm95, 0.0
    %97 = vst.msk [vmem:[#allocation2 + $0x18] sm:$0xff] %vm92, 0.0
    %98 = vst.msk [vmem:[#allocation2 + $0x20] sm:$0xff] %vm92, 0.0
    %99 = vst.msk [vmem:[#allocation2 + $0x28] sm:$0x3] %vm95, 0.0
    %100 = vst.msk [vmem:[#allocation2 + $0x30] sm:$0xff] %vm92, 0.0
    %101 = vst.msk [vmem:[#allocation2 + $0x38] sm:$0xff] %vm92, 0.0
    %102 = vst.msk [vmem:[#allocation2 + $0x40] sm:$0x3] %vm95, 0.0
    %103 = vst.msk [vmem:[#allocation2 + $0x48] sm:$0xff] %vm92, 0.0
    %104 = vst.msk [vmem:[#allocation2 + $0x50] sm:$0xff] %vm92, 0.0
    %105 = vst.msk [vmem:[#allocation2 + $0x58] sm:$0x3] %vm95, 0.0
    %106 = vst.msk [vmem:[#allocation3] sm:$0xff] %vm92, 0.0
    %107 = vst.msk [vmem:[#allocation3 + $0x8] sm:$0xff] %vm92, 0.0
    %108 = vst.msk [vmem:[#allocation3 + $0x10] sm:$0x3] %vm95, 0.0
    %109 = vst.msk [vmem:[#allocation3 + $0x18] sm:$0xff] %vm92, 0.0
    %110 = vst.msk [vmem:[#allocation3 + $0x20] sm:$0xff] %vm92, 0.0
    %111 = vst.msk [vmem:[#allocation3 + $0x28] sm:$0x3] %vm95, 0.0
    %112 = vst.msk [vmem:[#allocation3 + $0x30] sm:$0xff] %vm92, 0.0
    %113 = vst.msk [vmem:[#allocation3 + $0x38] sm:$0xff] %vm92, 0.0
    %114 = vst.msk [vmem:[#allocation3 + $0x40] sm:$0x3] %vm95, 0.0
    %115 = vst.msk [vmem:[#allocation3 + $0x48] sm:$0xff] %vm92, 0.0
    %116 = vst.msk [vmem:[#allocation3 + $0x50] sm:$0xff] %vm92, 0.0
    %117 = vst.msk [vmem:[#allocation3 + $0x58] sm:$0x3] %vm95, 0.0
    %v118 = vld [vmem:[#allocation4] sm:$0xff]
    %v119 = vld [vmem:[#allocation4 + $0x8] sm:$0xff]
    %v120 = vld [vmem:[#allocation4 + $0x10] sm:$0xff]
    %v121 = vld [vmem:[#allocation4 + $0x18] sm:$0xff]
    %v122 = vld [vmem:[#allocation4 + $0x20] sm:$0xff]
    %v123 = vld [vmem:[#allocation4 + $0x28] sm:$0xff]
    %v124 = vld [vmem:[#allocation4 + $0x30] sm:$0xff]
    %v125 = vld [vmem:[#allocation4 + $0x38] sm:$0xff]
    %134 = vrot.lane.b32.xlu0 %v118, 2
    %v135 = vpop.permute.xlu0 %134
    %136 = vrot.lane.b32.xlu0 %v119, 2
    %v137 = vpop.permute.xlu0 %136
    %138 = vrot.lane.b32.xlu0 %v120, 2
    %v139 = vpop.permute.xlu0 %138
    %140 = vrot.lane.b32.xlu0 %v121, 2
    %v141 = vpop.permute.xlu0 %140
    %142 = vrot.lane.b32.xlu0 %v122, 2
    %v143 = vpop.permute.xlu0 %142
    %144 = vrot.lane.b32.xlu0 %v123, 2
    %v145 = vpop.permute.xlu0 %144
    %146 = vrot.lane.b32.xlu0 %v124, 2
    %v147 = vpop.permute.xlu0 %146
    %148 = vrot.lane.b32.xlu0 %v125, 2
    %v149 = vpop.permute.xlu0 %148
    %vm158 = vcmask 146448
    %159 = vst.msk [vmem:[#allocation2 + $0x1] sm:$0xff] %vm158, %v135
    %160 = vst.msk [vmem:[#allocation2 + $0x9] sm:$0xff] %vm158, %v137
    %161 = vst.msk [vmem:[#allocation2 + $0x19] sm:$0xff] %vm158, %v139
    %162 = vst.msk [vmem:[#allocation2 + $0x21] sm:$0xff] %vm158, %v141
    %163 = vst.msk [vmem:[#allocation2 + $0x31] sm:$0xff] %vm158, %v143
    %164 = vst.msk [vmem:[#allocation2 + $0x39] sm:$0xff] %vm158, %v145
    %165 = vst.msk [vmem:[#allocation2 + $0x49] sm:$0xff] %vm158, %v147
    %166 = vst.msk [vmem:[#allocation2 + $0x51] sm:$0xff] %vm158, %v149
    %s167 = scalar_lea.vmem [#allocation4], 64
    %v168 = vld [vmem:[%s167] sm:$0xff]
    %v169 = vld [vmem:[%s167 + $0x8] sm:$0xff]
    %v170 = vld [vmem:[%s167 + $0x10] sm:$0xff]
    %v171 = vld [vmem:[%s167 + $0x18] sm:$0xff]
    %v172 = vld [vmem:[%s167 + $0x20] sm:$0xff]
    %v173 = vld [vmem:[%s167 + $0x28] sm:$0xff]
    %v174 = vld [vmem:[%s167 + $0x30] sm:$0xff]
    %v175 = vld [vmem:[%s167 + $0x38] sm:$0xff]
    %184 = vrot.lane.b32.xlu0 %v168, 20
    %v185 = vpop.permute.xlu0 %184
    %186 = vrot.lane.b32.xlu0 %v169, 20
    %v187 = vpop.permute.xlu0 %186
    %188 = vrot.lane.b32.xlu0 %v170, 20
    %v189 = vpop.permute.xlu0 %188
    %190 = vrot.lane.b32.xlu0 %v171, 20
    %v191 = vpop.permute.xlu0 %190
    %192 = vrot.lane.b32.xlu0 %v172, 20
    %v193 = vpop.permute.xlu0 %192
    %194 = vrot.lane.b32.xlu0 %v173, 20
    %v195 = vpop.permute.xlu0 %194
    %196 = vrot.lane.b32.xlu0 %v174, 20
    %v197 = vpop.permute.xlu0 %196
    %198 = vrot.lane.b32.xlu0 %v175, 20
    %v199 = vpop.permute.xlu0 %198
    %vm208 = vcmask 294048
    %209 = vst.msk [vmem:[#allocation2 + $0x1] sm:$0xff] %vm208, %v185
    %210 = vst.msk [vmem:[#allocation2 + $0x9] sm:$0xff] %vm208, %v187
    %211 = vst.msk [vmem:[#allocation2 + $0x19] sm:$0xff] %vm208, %v189
    %212 = vst.msk [vmem:[#allocation2 + $0x21] sm:$0xff] %vm208, %v191
    %213 = vst.msk [vmem:[#allocation2 + $0x31] sm:$0xff] %vm208, %v193
    %214 = vst.msk [vmem:[#allocation2 + $0x39] sm:$0xff] %vm208, %v195
    %215 = vst.msk [vmem:[#allocation2 + $0x49] sm:$0xff] %vm208, %v197
    %216 = vst.msk [vmem:[#allocation2 + $0x51] sm:$0xff] %vm208, %v199
    %v217 = vld [vmem:[#allocation2] sm:$0xff]
    %v218 = vld [vmem:[#allocation2 + $0x8] sm:$0xff]
    %s219 = sld [smem:[#allocation8]]
    %v220 = vstv %s219
    %v221 = vmul.f32 %v220, %v217
    %v222 = vmul.f32 %v220, %v218
    %v223 = vadd.f32 %v221, 0.0
    %v224 = vadd.f32 %v222, 0.0
    %s225 = sld [smem:[#allocation8 + $0x24]]
    %v226 = vstv %s225
    %v227 = vmul.f32 %v226, %v217
    %v228 = vmul.f32 %v226, %v218
    %v229 = vadd.f32 %v227, 0.0
    %v230 = vadd.f32 %v228, 0.0
    %s231 = sld [smem:[#allocation8 + $0x48]]
    %v232 = vstv %s231
    %v233 = vmul.f32 %v232, %v217
    %v234 = vmul.f32 %v232, %v218
    %v235 = vadd.f32 %v233, 0.0
    %v236 = vadd.f32 %v234, 0.0
    %s237 = sld [smem:[#allocation8 + $0x6c]]
    %v238 = vstv %s237
    %v239 = vmul.f32 %v238, %v217
    %v240 = vmul.f32 %v238, %v218
    %v241 = vadd.f32 %v239, 0.0
    %v242 = vadd.f32 %v240, 0.0
    %s243 = sld [smem:[#allocation8 + $0x1]]
    %v244 = vstv %s243
    %v245 = vmul.f32 %v244, %v217
    %v246 = vmul.f32 %v244, %v218
    %249 = vrot.lane.b32.xlu0 %v245, 127
    %v250 = vpop.permute.xlu0 %249
    %251 = vrot.lane.b32.xlu0 %v246, 127
    %v252 = vpop.permute.xlu0 %251
    %v255 = vadd.f32 %v223, %v250
    %v256 = vadd.f32 %v224, %v252
    %s257 = sld [smem:[#allocation8 + $0x25]]
    %v258 = vstv %s257
    %v259 = vmul.f32 %v258, %v217
    %v260 = vmul.f32 %v258, %v218
    %263 = vrot.lane.b32.xlu0 %v259, 127
    %v264 = vpop.permute.xlu0 %263
    %265 = vrot.lane.b32.xlu0 %v260, 127
    %v266 = vpop.permute.xlu0 %265
    %v269 = vadd.f32 %v229, %v264
    %v270 = vadd.f32 %v230, %v266
    %s271 = sld [smem:[#allocation8 + $0x49]]
    %v272 = vstv %s271
    %v273 = vmul.f32 %v272, %v217
    %v274 = vmul.f32 %v272, %v218
    %277 = vrot.lane.b32.xlu0 %v273, 127
    %v278 = vpop.permute.xlu0 %277
    %279 = vrot.lane.b32.xlu0 %v274, 127
    %v280 = vpop.permute.xlu0 %279
    %v283 = vadd.f32 %v235, %v278
    %v284 = vadd.f32 %v236, %v280
    %s285 = sld [smem:[#allocation8 + $0x6d]]
    %v286 = vstv %s285
    %v287 = vmul.f32 %v286, %v217
    %v288 = vmul.f32 %v286, %v218
    %291 = vrot.lane.b32.xlu0 %v287, 127
    %v292 = vpop.permute.xlu0 %291
    %293 = vrot.lane.b32.xlu0 %v288, 127
    %v294 = vpop.permute.xlu0 %293
    %v297 = vadd.f32 %v241, %v292
    %v298 = vadd.f32 %v242, %v294
    %s299 = sld [smem:[#allocation8 + $0x2]]
    %v300 = vstv %s299
    %v301 = vmul.f32 %v300, %v217
    %v302 = vmul.f32 %v300, %v218
    %305 = vrot.lane.b32.xlu0 %v301, 126
    %v306 = vpop.permute.xlu0 %305
    %307 = vrot.lane.b32.xlu0 %v302, 126
    %v308 = vpop.permute.xlu0 %307
    %v311 = vadd.f32 %v255, %v306
    %v312 = vadd.f32 %v256, %v308
    %s313 = sld [smem:[#allocation8 + $0x26]]
    %v314 = vstv %s313
    %v315 = vmul.f32 %v314, %v217
    %v316 = vmul.f32 %v314, %v218
    %319 = vrot.lane.b32.xlu0 %v315, 126
    %v320 = vpop.permute.xlu0 %319
    %321 = vrot.lane.b32.xlu0 %v316, 126
    %v322 = vpop.permute.xlu0 %321
    %v325 = vadd.f32 %v269, %v320
    %v326 = vadd.f32 %v270, %v322
    %s327 = sld [smem:[#allocation8 + $0x4a]]
    %v328 = vstv %s327
    %v329 = vmul.f32 %v328, %v217
    %v330 = vmul.f32 %v328, %v218
    %333 = vrot.lane.b32.xlu0 %v329, 126
    %v334 = vpop.permute.xlu0 %333
    %335 = vrot.lane.b32.xlu0 %v330, 126
    %v336 = vpop.permute.xlu0 %335
    %v339 = vadd.f32 %v283, %v334
    %v340 = vadd.f32 %v284, %v336
    %s341 = sld [smem:[#allocation8 + $0x6e]]
    %v342 = vstv %s341
    %v343 = vmul.f32 %v342, %v217
    %v344 = vmul.f32 %v342, %v218
    %347 = vrot.lane.b32.xlu0 %v343, 126
    %v348 = vpop.permute.xlu0 %347
    %349 = vrot.lane.b32.xlu0 %v344, 126
    %v350 = vpop.permute.xlu0 %349
    %v353 = vadd.f32 %v297, %v348
    %v354 = vadd.f32 %v298, %v350
    %v355 = vld [vmem:[#allocation2 + $0x1] sm:$0xff]
    %v356 = vld [vmem:[#allocation2 + $0x9] sm:$0xff]
    %s357 = sld [smem:[#allocation8 + $0x3]]
    %v358 = vstv %s357
    %v359 = vmul.f32 %v358, %v355
    %v360 = vmul.f32 %v358, %v356
    %v361 = vadd.f32 %v311, %v359
    %v362 = vadd.f32 %v312, %v360
    %s363 = sld [smem:[#allocation8 + $0x27]]
    %v364 = vstv %s363
    %v365 = vmul.f32 %v364, %v355
    %v366 = vmul.f32 %v364, %v356
    %v367 = vadd.f32 %v325, %v365
    %v368 = vadd.f32 %v326, %v366
    %s369 = sld [smem:[#allocation8 + $0x4b]]
    %v370 = vstv %s369
    %v371 = vmul.f32 %v370, %v355
    %v372 = vmul.f32 %v370, %v356
    %v373 = vadd.f32 %v339, %v371
    %v374 = vadd.f32 %v340, %v372
    %s375 = sld [smem:[#allocation8 + $0x6f]]
    %v376 = vstv %s375
    %v377 = vmul.f32 %v376, %v355
    %v378 = vmul.f32 %v376, %v356
    %v379 = vadd.f32 %v353, %v377
    %v380 = vadd.f32 %v354, %v378
    %s381 = sld [smem:[#allocation8 + $0x4]]
    %v382 = vstv %s381
    %v383 = vmul.f32 %v382, %v355
    %v384 = vmul.f32 %v382, %v356
    %387 = vrot.lane.b32.xlu0 %v383, 127
    %v388 = vpop.permute.xlu0 %387
    %389 = vrot.lane.b32.xlu0 %v384, 127
    %v390 = vpop.permute.xlu0 %389
    %v393 = vadd.f32 %v361, %v388
    %v394 = vadd.f32 %v362, %v390
    %s395 = sld [smem:[#allocation8 + $0x28]]
    %v396 = vstv %s395
    %v397 = vmul.f32 %v396, %v355
    %v398 = vmul.f32 %v396, %v356
    %401 = vrot.lane.b32.xlu0 %v397, 127
    %v402 = vpop.permute.xlu0 %401
    %403 = vrot.lane.b32.xlu0 %v398, 127
    %v404 = vpop.permute.xlu0 %403
    %v407 = vadd.f32 %v367, %v402
    %v408 = vadd.f32 %v368, %v404
    %s409 = sld [smem:[#allocation8 + $0x4c]]
    %v410 = vstv %s409
    %v411 = vmul.f32 %v410, %v355
    %v412 = vmul.f32 %v410, %v356
    %415 = vrot.lane.b32.xlu0 %v411, 127
    %v416 = vpop.permute.xlu0 %415
    %417 = vrot.lane.b32.xlu0 %v412, 127
    %v418 = vpop.permute.xlu0 %417
    %v421 = vadd.f32 %v373, %v416
    %v422 = vadd.f32 %v374, %v418
    %s423 = sld [smem:[#allocation8 + $0x70]]
    %v424 = vstv %s423
    %v425 = vmul.f32 %v424, %v355
    %v426 = vmul.f32 %v424, %v356
    %429 = vrot.lane.b32.xlu0 %v425, 127
    %v430 = vpop.permute.xlu0 %429
    %431 = vrot.lane.b32.xlu0 %v426, 127
    %v432 = vpop.permute.xlu0 %431
    %v435 = vadd.f32 %v379, %v430
    %v436 = vadd.f32 %v380, %v432
    %s437 = sld [smem:[#allocation8 + $0x5]]
    %v438 = vstv %s437
    %v439 = vmul.f32 %v438, %v355
    %v440 = vmul.f32 %v438, %v356
    %443 = vrot.lane.b32.xlu0 %v439, 126
    %v444 = vpop.permute.xlu0 %443
    %445 = vrot.lane.b32.xlu0 %v440, 126
    %v446 = vpop.permute.xlu0 %445
    %v449 = vadd.f32 %v393, %v444
    %v450 = vadd.f32 %v394, %v446
    %s451 = sld [smem:[#allocation8 + $0x29]]
    %v452 = vstv %s451
    %v453 = vmul.f32 %v452, %v355
    %v454 = vmul.f32 %v452, %v356
    %457 = vrot.lane.b32.xlu0 %v453, 126
    %v458 = vpop.permute.xlu0 %457
    %459 = vrot.lane.b32.xlu0 %v454, 126
    %v460 = vpop.permute.xlu0 %459
    %v463 = vadd.f32 %v407, %v458
    %v464 = vadd.f32 %v408, %v460
    %s465 = sld [smem:[#allocation8 + $0x4d]]
    %v466 = vstv %s465
    %v467 = vmul.f32 %v466, %v355
    %v468 = vmul.f32 %v466, %v356
    %471 = vrot.lane.b32.xlu0 %v467, 126
    %v472 = vpop.permute.xlu0 %471
    %473 = vrot.lane.b32.xlu0 %v468, 126
    %v474 = vpop.permute.xlu0 %473
    %v477 = vadd.f32 %v421, %v472
    %v478 = vadd.f32 %v422, %v474
    %s479 = sld [smem:[#allocation8 + $0x71]]
    %v480 = vstv %s479
    %v481 = vmul.f32 %v480, %v355
    %v482 = vmul.f32 %v480, %v356
    %485 = vrot.lane.b32.xlu0 %v481, 126
    %v486 = vpop.permute.xlu0 %485
    %487 = vrot.lane.b32.xlu0 %v482, 126
    %v488 = vpop.permute.xlu0 %487
    %v491 = vadd.f32 %v435, %v486
    %v492 = vadd.f32 %v436, %v488
    %v493 = vld [vmem:[#allocation2 + $0x2] sm:$0xff]
    %v494 = vld [vmem:[#allocation2 + $0xa] sm:$0xff]
    %s495 = sld [smem:[#allocation8 + $0x6]]
    %v496 = vstv %s495
    %v497 = vmul.f32 %v496, %v493
    %v498 = vmul.f32 %v496, %v494
    %v499 = vadd.f32 %v449, %v497
    %v500 = vadd.f32 %v450, %v498
    %s501 = sld [smem:[#allocation8 + $0x2a]]
    %v502 = vstv %s501
    %v503 = vmul.f32 %v502, %v493
    %v504 = vmul.f32 %v502, %v494
    %v505 = vadd.f32 %v463, %v503
    %v506 = vadd.f32 %v464, %v504
    %s507 = sld [smem:[#allocation8 + $0x4e]]
    %v508 = vstv %s507
    %v509 = vmul.f32 %v508, %v493
    %v510 = vmul.f32 %v508, %v494
    %v511 = vadd.f32 %v477, %v509
    %v512 = vadd.f32 %v478, %v510
    %s513 = sld [smem:[#allocation8 + $0x72]]
    %v514 = vstv %s513
    %v515 = vmul.f32 %v514, %v493
    %v516 = vmul.f32 %v514, %v494
    %v517 = vadd.f32 %v491, %v515
    %v518 = vadd.f32 %v492, %v516
    %s519 = sld [smem:[#allocation8 + $0x7]]
    %v520 = vstv %s519
    %v521 = vmul.f32 %v520, %v493
    %v522 = vmul.f32 %v520, %v494
    %525 = vrot.lane.b32.xlu0 %v521, 127
    %v526 = vpop.permute.xlu0 %525
    %527 = vrot.lane.b32.xlu0 %v522, 127
    %v528 = vpop.permute.xlu0 %527
    %v531 = vadd.f32 %v499, %v526
    %v532 = vadd.f32 %v500, %v528
    %s533 = sld [smem:[#allocation8 + $0x2b]]
    %v534 = vstv %s533
    %v535 = vmul.f32 %v534, %v493
    %v536 = vmul.f32 %v534, %v494
    %539 = vrot.lane.b32.xlu0 %v535, 127
    %v540 = vpop.permute.xlu0 %539
    %541 = vrot.lane.b32.xlu0 %v536, 127
    %v542 = vpop.permute.xlu0 %541
    %v545 = vadd.f32 %v505, %v540
    %v546 = vadd.f32 %v506, %v542
    %s547 = sld [smem:[#allocation8 + $0x4f]]
    %v548 = vstv %s547
    %v549 = vmul.f32 %v548, %v493
    %v550 = vmul.f32 %v548, %v494
    %553 = vrot.lane.b32.xlu0 %v549, 127
    %v554 = vpop.permute.xlu0 %553
    %555 = vrot.lane.b32.xlu0 %v550, 127
    %v556 = vpop.permute.xlu0 %555
    %v559 = vadd.f32 %v511, %v554
    %v560 = vadd.f32 %v512, %v556
    %s561 = sld [smem:[#allocation8 + $0x73]]
    %v562 = vstv %s561
    %v563 = vmul.f32 %v562, %v493
    %v564 = vmul.f32 %v562, %v494
    %567 = vrot.lane.b32.xlu0 %v563, 127
    %v568 = vpop.permute.xlu0 %567
    %569 = vrot.lane.b32.xlu0 %v564, 127
    %v570 = vpop.permute.xlu0 %569
    %v573 = vadd.f32 %v517, %v568
    %v574 = vadd.f32 %v518, %v570
    %s575 = sld [smem:[#allocation8 + $0x8]]
    %v576 = vstv %s575
    %v577 = vmul.f32 %v576, %v493
    %v578 = vmul.f32 %v576, %v494
    %581 = vrot.lane.b32.xlu0 %v577, 126
    %v582 = vpop.permute.xlu0 %581
    %583 = vrot.lane.b32.xlu0 %v578, 126
    %v584 = vpop.permute.xlu0 %583
    %v587 = vadd.f32 %v531, %v582
    %v588 = vadd.f32 %v532, %v584
    %s589 = sld [smem:[#allocation8 + $0x2c]]
    %v590 = vstv %s589
    %v591 = vmul.f32 %v590, %v493
    %v592 = vmul.f32 %v590, %v494
    %595 = vrot.lane.b32.xlu0 %v591, 126
    %v596 = vpop.permute.xlu0 %595
    %597 = vrot.lane.b32.xlu0 %v592, 126
    %v598 = vpop.permute.xlu0 %597
    %v601 = vadd.f32 %v545, %v596
    %v602 = vadd.f32 %v546, %v598
    %s603 = sld [smem:[#allocation8 + $0x50]]
    %v604 = vstv %s603
    %v605 = vmul.f32 %v604, %v493
    %v606 = vmul.f32 %v604, %v494
    %609 = vrot.lane.b32.xlu0 %v605, 126
    %v610 = vpop.permute.xlu0 %609
    %611 = vrot.lane.b32.xlu0 %v606, 126
    %v612 = vpop.permute.xlu0 %611
    %v615 = vadd.f32 %v559, %v610
    %v616 = vadd.f32 %v560, %v612
    %s617 = sld [smem:[#allocation8 + $0x74]]
    %v618 = vstv %s617
    %v619 = vmul.f32 %v618, %v493
    %v620 = vmul.f32 %v618, %v494
    %623 = vrot.lane.b32.xlu0 %v619, 126
    %v624 = vpop.permute.xlu0 %623
    %625 = vrot.lane.b32.xlu0 %v620, 126
    %v626 = vpop.permute.xlu0 %625
    %v629 = vadd.f32 %v573, %v624
    %v630 = vadd.f32 %v574, %v626
    %s631 = scalar_lea.vmem [#allocation2], 24
    %v632 = vld [vmem:[%s631] sm:$0xff]
    %v633 = vld [vmem:[%s631 + $0x8] sm:$0xff]
    %s634 = sld [smem:[#allocation8 + $0x9]]
    %v635 = vstv %s634
    %v636 = vmul.f32 %v635, %v632
    %v637 = vmul.f32 %v635, %v633
    %v638 = vadd.f32 %v587, %v636
    %v639 = vadd.f32 %v588, %v637
    %s640 = sld [smem:[#allocation8 + $0x2d]]
    %v641 = vstv %s640
    %v642 = vmul.f32 %v641, %v632
    %v643 = vmul.f32 %v641, %v633
    %v644 = vadd.f32 %v601, %v642
    %v645 = vadd.f32 %v602, %v643
    %s646 = sld [smem:[#allocation8 + $0x51]]
    %v647 = vstv %s646
    %v648 = vmul.f32 %v647, %v632
    %v649 = vmul.f32 %v647, %v633
    %v650 = vadd.f32 %v615, %v648
    %v651 = vadd.f32 %v616, %v649
    %s652 = sld [smem:[#allocation8 + $0x75]]
    %v653 = vstv %s652
    %v654 = vmul.f32 %v653, %v632
    %v655 = vmul.f32 %v653, %v633
    %v656 = vadd.f32 %v629, %v654
    %v657 = vadd.f32 %v630, %v655
    %s658 = sld [smem:[#allocation8 + $0xa]]
    %v659 = vstv %s658
    %v660 = vmul.f32 %v659, %v632
    %v661 = vmul.f32 %v659, %v633
    %664 = vrot.lane.b32.xlu0 %v660, 127
    %v665 = vpop.permute.xlu0 %664
    %666 = vrot.lane.b32.xlu0 %v661, 127
    %v667 = vpop.permute.xlu0 %666
    %v670 = vadd.f32 %v638, %v665
    %v671 = vadd.f32 %v639, %v667
    %s672 = sld [smem:[#allocation8 + $0x2e]]
    %v673 = vstv %s672
    %v674 = vmul.f32 %v673, %v632
    %v675 = vmul.f32 %v673, %v633
    %678 = vrot.lane.b32.xlu0 %v674, 127
    %v679 = vpop.permute.xlu0 %678
    %680 = vrot.lane.b32.xlu0 %v675, 127
    %v681 = vpop.permute.xlu0 %680
    %v684 = vadd.f32 %v644, %v679
    %v685 = vadd.f32 %v645, %v681
    %s686 = sld [smem:[#allocation8 + $0x52]]
    %v687 = vstv %s686
    %v688 = vmul.f32 %v687, %v632
    %v689 = vmul.f32 %v687, %v633
    %692 = vrot.lane.b32.xlu0 %v688, 127
    %v693 = vpop.permute.xlu0 %692
    %694 = vrot.lane.b32.xlu0 %v689, 127
    %v695 = vpop.permute.xlu0 %694
    %v698 = vadd.f32 %v650, %v693
    %v699 = vadd.f32 %v651, %v695
    %s700 = sld [smem:[#allocation8 + $0x76]]
    %v701 = vstv %s700
    %v702 = vmul.f32 %v701, %v632
    %v703 = vmul.f32 %v701, %v633
    %706 = vrot.lane.b32.xlu0 %v702, 127
    %v707 = vpop.permute.xlu0 %706
    %708 = vrot.lane.b32.xlu0 %v703, 127
    %v709 = vpop.permute.xlu0 %708
    %v712 = vadd.f32 %v656, %v707
    %v713 = vadd.f32 %v657, %v709
    %s714 = sld [smem:[#allocation8 + $0xb]]
    %v715 = vstv %s714
    %v716 = vmul.f32 %v715, %v632
    %v717 = vmul.f32 %v715, %v633
    %720 = vrot.lane.b32.xlu0 %v716, 126
    %v721 = vpop.permute.xlu0 %720
    %722 = vrot.lane.b32.xlu0 %v717, 126
    %v723 = vpop.permute.xlu0 %722
    %v726 = vadd.f32 %v670, %v721
    %v727 = vadd.f32 %v671, %v723
    %s728 = sld [smem:[#allocation8 + $0x2f]]
    %v729 = vstv %s728
    %v730 = vmul.f32 %v729, %v632
    %v731 = vmul.f32 %v729, %v633
    %734 = vrot.lane.b32.xlu0 %v730, 126
    %v735 = vpop.permute.xlu0 %734
    %736 = vrot.lane.b32.xlu0 %v731, 126
    %v737 = vpop.permute.xlu0 %736
    %v740 = vadd.f32 %v684, %v735
    %v741 = vadd.f32 %v685, %v737
    %s742 = sld [smem:[#allocation8 + $0x53]]
    %v743 = vstv %s742
    %v744 = vmul.f32 %v743, %v632
    %v745 = vmul.f32 %v743, %v633
    %748 = vrot.lane.b32.xlu0 %v744, 126
    %v749 = vpop.permute.xlu0 %748
    %750 = vrot.lane.b32.xlu0 %v745, 126
    %v751 = vpop.permute.xlu0 %750
    %v754 = vadd.f32 %v698, %v749
    %v755 = vadd.f32 %v699, %v751
    %s756 = sld [smem:[#allocation8 + $0x77]]
    %v757 = vstv %s756
    %v758 = vmul.f32 %v757, %v632
    %v759 = vmul.f32 %v757, %v633
    %762 = vrot.lane.b32.xlu0 %v758, 126
    %v763 = vpop.permute.xlu0 %762
    %764 = vrot.lane.b32.xlu0 %v759, 126
    %v765 = vpop.permute.xlu0 %764
    %v768 = vadd.f32 %v712, %v763
    %v769 = vadd.f32 %v713, %v765
    %v770 = vld [vmem:[%s631 + $0x1] sm:$0xff]
    %v771 = vld [vmem:[%s631 + $0x9] sm:$0xff]
    %s772 = sld [smem:[#allocation8 + $0xc]]
    %v773 = vstv %s772
    %v774 = vmul.f32 %v773, %v770
    %v775 = vmul.f32 %v773, %v771
    %v776 = vadd.f32 %v726, %v774
    %v777 = vadd.f32 %v727, %v775
    %s778 = sld [smem:[#allocation8 + $0x30]]
    %v779 = vstv %s778
    %v780 = vmul.f32 %v779, %v770
    %v781 = vmul.f32 %v779, %v771
    %v782 = vadd.f32 %v740, %v780
    %v783 = vadd.f32 %v741, %v781
    %s784 = sld [smem:[#allocation8 + $0x54]]
    %v785 = vstv %s784
    %v786 = vmul.f32 %v785, %v770
    %v787 = vmul.f32 %v785, %v771
    %v788 = vadd.f32 %v754, %v786
    %v789 = vadd.f32 %v755, %v787
    %s790 = sld [smem:[#allocation8 + $0x78]]
    %v791 = vstv %s790
    %v792 = vmul.f32 %v791, %v770
    %v793 = vmul.f32 %v791, %v771
    %v794 = vadd.f32 %v768, %v792
    %v795 = vadd.f32 %v769, %v793
    %s796 = sld [smem:[#allocation8 + $0xd]]
    %v797 = vstv %s796
    %v798 = vmul.f32 %v797, %v770
    %v799 = vmul.f32 %v797, %v771
    %802 = vrot.lane.b32.xlu0 %v798, 127
    %v803 = vpop.permute.xlu0 %802
    %804 = vrot.lane.b32.xlu0 %v799, 127
    %v805 = vpop.permute.xlu0 %804
    %v808 = vadd.f32 %v776, %v803
    %v809 = vadd.f32 %v777, %v805
    %s810 = sld [smem:[#allocation8 + $0x31]]
    %v811 = vstv %s810
    %v812 = vmul.f32 %v811, %v770
    %v813 = vmul.f32 %v811, %v771
    %816 = vrot.lane.b32.xlu0 %v812, 127
    %v817 = vpop.permute.xlu0 %816
    %818 = vrot.lane.b32.xlu0 %v813, 127
    %v819 = vpop.permute.xlu0 %818
    %v822 = vadd.f32 %v782, %v817
    %v823 = vadd.f32 %v783, %v819
    %s824 = sld [smem:[#allocation8 + $0x55]]
    %v825 = vstv %s824
    %v826 = vmul.f32 %v825, %v770
    %v827 = vmul.f32 %v825, %v771
    %830 = vrot.lane.b32.xlu0 %v826, 127
    %v831 = vpop.permute.xlu0 %830
    %832 = vrot.lane.b32.xlu0 %v827, 127
    %v833 = vpop.permute.xlu0 %832
    %v836 = vadd.f32 %v788, %v831
    %v837 = vadd.f32 %v789, %v833
    %s838 = sld [smem:[#allocation8 + $0x79]]
    %v839 = vstv %s838
    %v840 = vmul.f32 %v839, %v770
    %v841 = vmul.f32 %v839, %v771
    %844 = vrot.lane.b32.xlu0 %v840, 127
    %v845 = vpop.permute.xlu0 %844
    %846 = vrot.lane.b32.xlu0 %v841, 127
    %v847 = vpop.permute.xlu0 %846
    %v850 = vadd.f32 %v794, %v845
    %v851 = vadd.f32 %v795, %v847
    %s852 = sld [smem:[#allocation8 + $0xe]]
    %v853 = vstv %s852
    %v854 = vmul.f32 %v853, %v770
    %v855 = vmul.f32 %v853, %v771
    %858 = vrot.lane.b32.xlu0 %v854, 126
    %v859 = vpop.permute.xlu0 %858
    %860 = vrot.lane.b32.xlu0 %v855, 126
    %v861 = vpop.permute.xlu0 %860
    %v864 = vadd.f32 %v808, %v859
    %v865 = vadd.f32 %v809, %v861
    %s866 = sld [smem:[#allocation8 + $0x32]]
    %v867 = vstv %s866
    %v868 = vmul.f32 %v867, %v770
    %v869 = vmul.f32 %v867, %v771
    %872 = vrot.lane.b32.xlu0 %v868, 126
    %v873 = vpop.permute.xlu0 %872
    %874 = vrot.lane.b32.xlu0 %v869, 126
    %v875 = vpop.permute.xlu0 %874
    %v878 = vadd.f32 %v822, %v873
    %v879 = vadd.f32 %v823, %v875
    %s880 = sld [smem:[#allocation8 + $0x56]]
    %v881 = vstv %s880
    %v882 = vmul.f32 %v881, %v770
    %v883 = vmul.f32 %v881, %v771
    %886 = vrot.lane.b32.xlu0 %v882, 126
    %v887 = vpop.permute.xlu0 %886
    %888 = vrot.lane.b32.xlu0 %v883, 126
    %v889 = vpop.permute.xlu0 %888
    %v892 = vadd.f32 %v836, %v887
    %v893 = vadd.f32 %v837, %v889
    %s894 = sld [smem:[#allocation8 + $0x7a]]
    %v895 = vstv %s894
    %v896 = vmul.f32 %v895, %v770
    %v897 = vmul.f32 %v895, %v771
    %900 = vrot.lane.b32.xlu0 %v896, 126
    %v901 = vpop.permute.xlu0 %900
    %902 = vrot.lane.b32.xlu0 %v897, 126
    %v903 = vpop.permute.xlu0 %902
    %v906 = vadd.f32 %v850, %v901
    %v907 = vadd.f32 %v851, %v903
    %v908 = vld [vmem:[%s631 + $0x2] sm:$0xff]
    %v909 = vld [vmem:[%s631 + $0xa] sm:$0xff]
    %s910 = sld [smem:[#allocation8 + $0xf]]
    %v911 = vstv %s910
    %v912 = vmul.f32 %v911, %v908
    %v913 = vmul.f32 %v911, %v909
    %v914 = vadd.f32 %v864, %v912
    %v915 = vadd.f32 %v865, %v913
    %s916 = sld [smem:[#allocation8 + $0x33]]
    %v917 = vstv %s916
    %v918 = vmul.f32 %v917, %v908
    %v919 = vmul.f32 %v917, %v909
    %v920 = vadd.f32 %v878, %v918
    %v921 = vadd.f32 %v879, %v919
    %s922 = sld [smem:[#allocation8 + $0x57]]
    %v923 = vstv %s922
    %v924 = vmul.f32 %v923, %v908
    %v925 = vmul.f32 %v923, %v909
    %v926 = vadd.f32 %v892, %v924
    %v927 = vadd.f32 %v893, %v925
    %s928 = sld [smem:[#allocation8 + $0x7b]]
    %v929 = vstv %s928
    %v930 = vmul.f32 %v929, %v908
    %v931 = vmul.f32 %v929, %v909
    %v932 = vadd.f32 %v906, %v930
    %v933 = vadd.f32 %v907, %v931
    %s934 = sld [smem:[#allocation8 + $0x10]]
    %v935 = vstv %s934
    %v936 = vmul.f32 %v935, %v908
    %v937 = vmul.f32 %v935, %v909
    %940 = vrot.lane.b32.xlu0 %v936, 127
    %v941 = vpop.permute.xlu0 %940
    %942 = vrot.lane.b32.xlu0 %v937, 127
    %v943 = vpop.permute.xlu0 %942
    %v946 = vadd.f32 %v914, %v941
    %v947 = vadd.f32 %v915, %v943
    %s948 = sld [smem:[#allocation8 + $0x34]]
    %v949 = vstv %s948
    %v950 = vmul.f32 %v949, %v908
    %v951 = vmul.f32 %v949, %v909
    %954 = vrot.lane.b32.xlu0 %v950, 127
    %v955 = vpop.permute.xlu0 %954
    %956 = vrot.lane.b32.xlu0 %v951, 127
    %v957 = vpop.permute.xlu0 %956
    %v960 = vadd.f32 %v920, %v955
    %v961 = vadd.f32 %v921, %v957
    %s962 = sld [smem:[#allocation8 + $0x58]]
    %v963 = vstv %s962
    %v964 = vmul.f32 %v963, %v908
    %v965 = vmul.f32 %v963, %v909
    %968 = vrot.lane.b32.xlu0 %v964, 127
    %v969 = vpop.permute.xlu0 %968
    %970 = vrot.lane.b32.xlu0 %v965, 127
    %v971 = vpop.permute.xlu0 %970
    %v974 = vadd.f32 %v926, %v969
    %v975 = vadd.f32 %v927, %v971
    %s976 = sld [smem:[#allocation8 + $0x7c]]
    %v977 = vstv %s976
    %v978 = vmul.f32 %v977, %v908
    %v979 = vmul.f32 %v977, %v909
    %982 = vrot.lane.b32.xlu0 %v978, 127
    %v983 = vpop.permute.xlu0 %982
    %984 = vrot.lane.b32.xlu0 %v979, 127
    %v985 = vpop.permute.xlu0 %984
    %v988 = vadd.f32 %v932, %v983
    %v989 = vadd.f32 %v933, %v985
    %s990 = sld [smem:[#allocation8 + $0x11]]
    %v991 = vstv %s990
    %v992 = vmul.f32 %v991, %v908
    %v993 = vmul.f32 %v991, %v909
    %996 = vrot.lane.b32.xlu0 %v992, 126
    %v997 = vpop.permute.xlu0 %996
    %998 = vrot.lane.b32.xlu0 %v993, 126
    %v999 = vpop.permute.xlu0 %998
    %v1002 = vadd.f32 %v946, %v997
    %v1003 = vadd.f32 %v947, %v999
    %s1004 = sld [smem:[#allocation8 + $0x35]]
    %v1005 = vstv %s1004
    %v1006 = vmul.f32 %v1005, %v908
    %v1007 = vmul.f32 %v1005, %v909
    %1010 = vrot.lane.b32.xlu0 %v1006, 126
    %v1011 = vpop.permute.xlu0 %1010
    %1012 = vrot.lane.b32.xlu0 %v1007, 126
    %v1013 = vpop.permute.xlu0 %1012
    %v1016 = vadd.f32 %v960, %v1011
    %v1017 = vadd.f32 %v961, %v1013
    %s1018 = sld [smem:[#allocation8 + $0x59]]
    %v1019 = vstv %s1018
    %v1020 = vmul.f32 %v1019, %v908
    %v1021 = vmul.f32 %v1019, %v909
    %1024 = vrot.lane.b32.xlu0 %v1020, 126
    %v1025 = vpop.permute.xlu0 %1024
    %1026 = vrot.lane.b32.xlu0 %v1021, 126
    %v1027 = vpop.permute.xlu0 %1026
    %v1030 = vadd.f32 %v974, %v1025
    %v1031 = vadd.f32 %v975, %v1027
    %s1032 = sld [smem:[#allocation8 + $0x7d]]
    %v1033 = vstv %s1032
    %v1034 = vmul.f32 %v1033, %v908
    %v1035 = vmul.f32 %v1033, %v909
    %1038 = vrot.lane.b32.xlu0 %v1034, 126
    %v1039 = vpop.permute.xlu0 %1038
    %1040 = vrot.lane.b32.xlu0 %v1035, 126
    %v1041 = vpop.permute.xlu0 %1040
    %v1044 = vadd.f32 %v988, %v1039
    %v1045 = vadd.f32 %v989, %v1041
    %s1046 = scalar_lea.vmem [#allocation2], 48
    %v1047 = vld [vmem:[%s1046] sm:$0xff]
    %v1048 = vld [vmem:[%s1046 + $0x8] sm:$0xff]
    %s1049 = sld [smem:[#allocation8 + $0x12]]
    %v1050 = vstv %s1049
    %v1051 = vmul.f32 %v1050, %v1047
    %v1052 = vmul.f32 %v1050, %v1048
    %v1053 = vadd.f32 %v1002, %v1051
    %v1054 = vadd.f32 %v1003, %v1052
    %s1055 = sld [smem:[#allocation8 + $0x36]]
    %v1056 = vstv %s1055
    %v1057 = vmul.f32 %v1056, %v1047
    %v1058 = vmul.f32 %v1056, %v1048
    %v1059 = vadd.f32 %v1016, %v1057
    %v1060 = vadd.f32 %v1017, %v1058
    %s1061 = sld [smem:[#allocation8 + $0x5a]]
    %v1062 = vstv %s1061
    %v1063 = vmul.f32 %v1062, %v1047
    %v1064 = vmul.f32 %v1062, %v1048
    %v1065 = vadd.f32 %v1030, %v1063
    %v1066 = vadd.f32 %v1031, %v1064
    %s1067 = sld [smem:[#allocation8 + $0x7e]]
    %v1068 = vstv %s1067
    %v1069 = vmul.f32 %v1068, %v1047
    %v1070 = vmul.f32 %v1068, %v1048
    %v1071 = vadd.f32 %v1044, %v1069
    %v1072 = vadd.f32 %v1045, %v1070
    %s1073 = sld [smem:[#allocation8 + $0x13]]
    %v1074 = vstv %s1073
    %v1075 = vmul.f32 %v1074, %v1047
    %v1076 = vmul.f32 %v1074, %v1048
    %1079 = vrot.lane.b32.xlu0 %v1075, 127
    %v1080 = vpop.permute.xlu0 %1079
    %1081 = vrot.lane.b32.xlu0 %v1076, 127
    %v1082 = vpop.permute.xlu0 %1081
    %v1085 = vadd.f32 %v1053, %v1080
    %v1086 = vadd.f32 %v1054, %v1082
    %s1087 = sld [smem:[#allocation8 + $0x37]]
    %v1088 = vstv %s1087
    %v1089 = vmul.f32 %v1088, %v1047
    %v1090 = vmul.f32 %v1088, %v1048
    %1093 = vrot.lane.b32.xlu0 %v1089, 127
    %v1094 = vpop.permute.xlu0 %1093
    %1095 = vrot.lane.b32.xlu0 %v1090, 127
    %v1096 = vpop.permute.xlu0 %1095
    %v1099 = vadd.f32 %v1059, %v1094
    %v1100 = vadd.f32 %v1060, %v1096
    %s1101 = sld [smem:[#allocation8 + $0x5b]]
    %v1102 = vstv %s1101
    %v1103 = vmul.f32 %v1102, %v1047
    %v1104 = vmul.f32 %v1102, %v1048
    %1107 = vrot.lane.b32.xlu0 %v1103, 127
    %v1108 = vpop.permute.xlu0 %1107
    %1109 = vrot.lane.b32.xlu0 %v1104, 127
    %v1110 = vpop.permute.xlu0 %1109
    %v1113 = vadd.f32 %v1065, %v1108
    %v1114 = vadd.f32 %v1066, %v1110
    %s1115 = sld [smem:[#allocation8 + $0x7f]]
    %v1116 = vstv %s1115
    %v1117 = vmul.f32 %v1116, %v1047
    %v1118 = vmul.f32 %v1116, %v1048
    %1121 = vrot.lane.b32.xlu0 %v1117, 127
    %v1122 = vpop.permute.xlu0 %1121
    %1123 = vrot.lane.b32.xlu0 %v1118, 127
    %v1124 = vpop.permute.xlu0 %1123
    %v1127 = vadd.f32 %v1071, %v1122
    %v1128 = vadd.f32 %v1072, %v1124
    %s1129 = sld [smem:[#allocation8 + $0x14]]
    %v1130 = vstv %s1129
    %v1131 = vmul.f32 %v1130, %v1047
    %v1132 = vmul.f32 %v1130, %v1048
    %1135 = vrot.lane.b32.xlu0 %v1131, 126
    %v1136 = vpop.permute.xlu0 %1135
    %1137 = vrot.lane.b32.xlu0 %v1132, 126
    %v1138 = vpop.permute.xlu0 %1137
    %v1141 = vadd.f32 %v1085, %v1136
    %v1142 = vadd.f32 %v1086, %v1138
    %s1143 = sld [smem:[#allocation8 + $0x38]]
    %v1144 = vstv %s1143
    %v1145 = vmul.f32 %v1144, %v1047
    %v1146 = vmul.f32 %v1144, %v1048
    %1149 = vrot.lane.b32.xlu0 %v1145, 126
    %v1150 = vpop.permute.xlu0 %1149
    %1151 = vrot.lane.b32.xlu0 %v1146, 126
    %v1152 = vpop.permute.xlu0 %1151
    %v1155 = vadd.f32 %v1099, %v1150
    %v1156 = vadd.f32 %v1100, %v1152
    %s1157 = sld [smem:[#allocation8 + $0x5c]]
    %v1158 = vstv %s1157
    %v1159 = vmul.f32 %v1158, %v1047
    %v1160 = vmul.f32 %v1158, %v1048
    %1163 = vrot.lane.b32.xlu0 %v1159, 126
    %v1164 = vpop.permute.xlu0 %1163
    %1165 = vrot.lane.b32.xlu0 %v1160, 126
    %v1166 = vpop.permute.xlu0 %1165
    %v1169 = vadd.f32 %v1113, %v1164
    %v1170 = vadd.f32 %v1114, %v1166
    %s1171 = sld [smem:[#allocation8 + $0x80]]
    %v1172 = vstv %s1171
    %v1173 = vmul.f32 %v1172, %v1047
    %v1174 = vmul.f32 %v1172, %v1048
    %1177 = vrot.lane.b32.xlu0 %v1173, 126
    %v1178 = vpop.permute.xlu0 %1177
    %1179 = vrot.lane.b32.xlu0 %v1174, 126
    %v1180 = vpop.permute.xlu0 %1179
    %v1183 = vadd.f32 %v1127, %v1178
    %v1184 = vadd.f32 %v1128, %v1180
    %v1185 = vld [vmem:[%s1046 + $0x1] sm:$0xff]
    %v1186 = vld [vmem:[%s1046 + $0x9] sm:$0xff]
    %s1187 = sld [smem:[#allocation8 + $0x15]]
    %v1188 = vstv %s1187
    %v1189 = vmul.f32 %v1188, %v1185
    %v1190 = vmul.f32 %v1188, %v1186
    %v1191 = vadd.f32 %v1141, %v1189
    %v1192 = vadd.f32 %v1142, %v1190
    %s1193 = sld [smem:[#allocation8 + $0x39]]
    %v1194 = vstv %s1193
    %v1195 = vmul.f32 %v1194, %v1185
    %v1196 = vmul.f32 %v1194, %v1186
    %v1197 = vadd.f32 %v1155, %v1195
    %v1198 = vadd.f32 %v1156, %v1196
    %s1199 = sld [smem:[#allocation8 + $0x5d]]
    %v1200 = vstv %s1199
    %v1201 = vmul.f32 %v1200, %v1185
    %v1202 = vmul.f32 %v1200, %v1186
    %v1203 = vadd.f32 %v1169, %v1201
    %v1204 = vadd.f32 %v1170, %v1202
    %s1205 = sld [smem:[#allocation8 + $0x81]]
    %v1206 = vstv %s1205
    %v1207 = vmul.f32 %v1206, %v1185
    %v1208 = vmul.f32 %v1206, %v1186
    %v1209 = vadd.f32 %v1183, %v1207
    %v1210 = vadd.f32 %v1184, %v1208
    %s1211 = sld [smem:[#allocation8 + $0x16]]
    %v1212 = vstv %s1211
    %v1213 = vmul.f32 %v1212, %v1185
    %v1214 = vmul.f32 %v1212, %v1186
    %1217 = vrot.lane.b32.xlu0 %v1213, 127
    %v1218 = vpop.permute.xlu0 %1217
    %1219 = vrot.lane.b32.xlu0 %v1214, 127
    %v1220 = vpop.permute.xlu0 %1219
    %v1223 = vadd.f32 %v1191, %v1218
    %v1224 = vadd.f32 %v1192, %v1220
    %s1225 = sld [smem:[#allocation8 + $0x3a]]
    %v1226 = vstv %s1225
    %v1227 = vmul.f32 %v1226, %v1185
    %v1228 = vmul.f32 %v1226, %v1186
    %1231 = vrot.lane.b32.xlu0 %v1227, 127
    %v1232 = vpop.permute.xlu0 %1231
    %1233 = vrot.lane.b32.xlu0 %v1228, 127
    %v1234 = vpop.permute.xlu0 %1233
    %v1237 = vadd.f32 %v1197, %v1232
    %v1238 = vadd.f32 %v1198, %v1234
    %s1239 = sld [smem:[#allocation8 + $0x5e]]
    %v1240 = vstv %s1239
    %v1241 = vmul.f32 %v1240, %v1185
    %v1242 = vmul.f32 %v1240, %v1186
    %1245 = vrot.lane.b32.xlu0 %v1241, 127
    %v1246 = vpop.permute.xlu0 %1245
    %1247 = vrot.lane.b32.xlu0 %v1242, 127
    %v1248 = vpop.permute.xlu0 %1247
    %v1251 = vadd.f32 %v1203, %v1246
    %v1252 = vadd.f32 %v1204, %v1248
    %s1253 = sld [smem:[#allocation8 + $0x82]]
    %v1254 = vstv %s1253
    %v1255 = vmul.f32 %v1254, %v1185
    %v1256 = vmul.f32 %v1254, %v1186
    %1259 = vrot.lane.b32.xlu0 %v1255, 127
    %v1260 = vpop.permute.xlu0 %1259
    %1261 = vrot.lane.b32.xlu0 %v1256, 127
    %v1262 = vpop.permute.xlu0 %1261
    %v1265 = vadd.f32 %v1209, %v1260
    %v1266 = vadd.f32 %v1210, %v1262
    %s1267 = sld [smem:[#allocation8 + $0x17]]
    %v1268 = vstv %s1267
    %v1269 = vmul.f32 %v1268, %v1185
    %v1270 = vmul.f32 %v1268, %v1186
    %1273 = vrot.lane.b32.xlu0 %v1269, 126
    %v1274 = vpop.permute.xlu0 %1273
    %1275 = vrot.lane.b32.xlu0 %v1270, 126
    %v1276 = vpop.permute.xlu0 %1275
    %v1279 = vadd.f32 %v1223, %v1274
    %v1280 = vadd.f32 %v1224, %v1276
    %s1281 = sld [smem:[#allocation8 + $0x3b]]
    %v1282 = vstv %s1281
    %v1283 = vmul.f32 %v1282, %v1185
    %v1284 = vmul.f32 %v1282, %v1186
    %1287 = vrot.lane.b32.xlu0 %v1283, 126
    %v1288 = vpop.permute.xlu0 %1287
    %1289 = vrot.lane.b32.xlu0 %v1284, 126
    %v1290 = vpop.permute.xlu0 %1289
    %v1293 = vadd.f32 %v1237, %v1288
    %v1294 = vadd.f32 %v1238, %v1290
    %s1295 = sld [smem:[#allocation8 + $0x5f]]
    %v1296 = vstv %s1295
    %v1297 = vmul.f32 %v1296, %v1185
    %v1298 = vmul.f32 %v1296, %v1186
    %1301 = vrot.lane.b32.xlu0 %v1297, 126
    %v1302 = vpop.permute.xlu0 %1301
    %1303 = vrot.lane.b32.xlu0 %v1298, 126
    %v1304 = vpop.permute.xlu0 %1303
    %v1307 = vadd.f32 %v1251, %v1302
    %v1308 = vadd.f32 %v1252, %v1304
    %s1309 = sld [smem:[#allocation8 + $0x83]]
    %v1310 = vstv %s1309
    %v1311 = vmul.f32 %v1310, %v1185
    %v1312 = vmul.f32 %v1310, %v1186
    %1315 = vrot.lane.b32.xlu0 %v1311, 126
    %v1316 = vpop.permute.xlu0 %1315
    %1317 = vrot.lane.b32.xlu0 %v1312, 126
    %v1318 = vpop.permute.xlu0 %1317
    %v1321 = vadd.f32 %v1265, %v1316
    %v1322 = vadd.f32 %v1266, %v1318
    %v1323 = vld [vmem:[%s1046 + $0x2] sm:$0xff]
    %v1324 = vld [vmem:[%s1046 + $0xa] sm:$0xff]
    %s1325 = sld [smem:[#allocation8 + $0x18]]
    %v1326 = vstv %s1325
    %v1327 = vmul.f32 %v1326, %v1323
    %v1328 = vmul.f32 %v1326, %v1324
    %v1329 = vadd.f32 %v1279, %v1327
    %v1330 = vadd.f32 %v1280, %v1328
    %s1331 = sld [smem:[#allocation8 + $0x3c]]
    %v1332 = vstv %s1331
    %v1333 = vmul.f32 %v1332, %v1323
    %v1334 = vmul.f32 %v1332, %v1324
    %v1335 = vadd.f32 %v1293, %v1333
    %v1336 = vadd.f32 %v1294, %v1334
    %s1337 = sld [smem:[#allocation8 + $0x60]]
    %v1338 = vstv %s1337
    %v1339 = vmul.f32 %v1338, %v1323
    %v1340 = vmul.f32 %v1338, %v1324
    %v1341 = vadd.f32 %v1307, %v1339
    %v1342 = vadd.f32 %v1308, %v1340
    %s1343 = sld [smem:[#allocation8 + $0x84]]
    %v1344 = vstv %s1343
    %v1345 = vmul.f32 %v1344, %v1323
    %v1346 = vmul.f32 %v1344, %v1324
    %v1347 = vadd.f32 %v1321, %v1345
    %v1348 = vadd.f32 %v1322, %v1346
    %s1349 = sld [smem:[#allocation8 + $0x19]]
    %v1350 = vstv %s1349
    %v1351 = vmul.f32 %v1350, %v1323
    %v1352 = vmul.f32 %v1350, %v1324
    %1355 = vrot.lane.b32.xlu0 %v1351, 127
    %v1356 = vpop.permute.xlu0 %1355
    %1357 = vrot.lane.b32.xlu0 %v1352, 127
    %v1358 = vpop.permute.xlu0 %1357
    %v1361 = vadd.f32 %v1329, %v1356
    %v1362 = vadd.f32 %v1330, %v1358
    %s1363 = sld [smem:[#allocation8 + $0x3d]]
    %v1364 = vstv %s1363
    %v1365 = vmul.f32 %v1364, %v1323
    %v1366 = vmul.f32 %v1364, %v1324
    %1369 = vrot.lane.b32.xlu0 %v1365, 127
    %v1370 = vpop.permute.xlu0 %1369
    %1371 = vrot.lane.b32.xlu0 %v1366, 127
    %v1372 = vpop.permute.xlu0 %1371
    %v1375 = vadd.f32 %v1335, %v1370
    %v1376 = vadd.f32 %v1336, %v1372
    %s1377 = sld [smem:[#allocation8 + $0x61]]
    %v1378 = vstv %s1377
    %v1379 = vmul.f32 %v1378, %v1323
    %v1380 = vmul.f32 %v1378, %v1324
    %1383 = vrot.lane.b32.xlu0 %v1379, 127
    %v1384 = vpop.permute.xlu0 %1383
    %1385 = vrot.lane.b32.xlu0 %v1380, 127
    %v1386 = vpop.permute.xlu0 %1385
    %v1389 = vadd.f32 %v1341, %v1384
    %v1390 = vadd.f32 %v1342, %v1386
    %s1391 = sld [smem:[#allocation8 + $0x85]]
    %v1392 = vstv %s1391
    %v1393 = vmul.f32 %v1392, %v1323
    %v1394 = vmul.f32 %v1392, %v1324
    %1397 = vrot.lane.b32.xlu0 %v1393, 127
    %v1398 = vpop.permute.xlu0 %1397
    %1399 = vrot.lane.b32.xlu0 %v1394, 127
    %v1400 = vpop.permute.xlu0 %1399
    %v1403 = vadd.f32 %v1347, %v1398
    %v1404 = vadd.f32 %v1348, %v1400
    %s1405 = sld [smem:[#allocation8 + $0x1a]]
    %v1406 = vstv %s1405
    %v1407 = vmul.f32 %v1406, %v1323
    %v1408 = vmul.f32 %v1406, %v1324
    %1411 = vrot.lane.b32.xlu0 %v1407, 126
    %v1412 = vpop.permute.xlu0 %1411
    %1413 = vrot.lane.b32.xlu0 %v1408, 126
    %v1414 = vpop.permute.xlu0 %1413
    %v1417 = vadd.f32 %v1361, %v1412
    %v1418 = vadd.f32 %v1362, %v1414
    %s1419 = sld [smem:[#allocation8 + $0x3e]]
    %v1420 = vstv %s1419
    %v1421 = vmul.f32 %v1420, %v1323
    %v1422 = vmul.f32 %v1420, %v1324
    %1425 = vrot.lane.b32.xlu0 %v1421, 126
    %v1426 = vpop.permute.xlu0 %1425
    %1427 = vrot.lane.b32.xlu0 %v1422, 126
    %v1428 = vpop.permute.xlu0 %1427
    %v1431 = vadd.f32 %v1375, %v1426
    %v1432 = vadd.f32 %v1376, %v1428
    %s1433 = sld [smem:[#allocation8 + $0x62]]
    %v1434 = vstv %s1433
    %v1435 = vmul.f32 %v1434, %v1323
    %v1436 = vmul.f32 %v1434, %v1324
    %1439 = vrot.lane.b32.xlu0 %v1435, 126
    %v1440 = vpop.permute.xlu0 %1439
    %1441 = vrot.lane.b32.xlu0 %v1436, 126
    %v1442 = vpop.permute.xlu0 %1441
    %v1445 = vadd.f32 %v1389, %v1440
    %v1446 = vadd.f32 %v1390, %v1442
    %s1447 = sld [smem:[#allocation8 + $0x86]]
    %v1448 = vstv %s1447
    %v1449 = vmul.f32 %v1448, %v1323
    %v1450 = vmul.f32 %v1448, %v1324
    %1453 = vrot.lane.b32.xlu0 %v1449, 126
    %v1454 = vpop.permute.xlu0 %1453
    %1455 = vrot.lane.b32.xlu0 %v1450, 126
    %v1456 = vpop.permute.xlu0 %1455
    %v1459 = vadd.f32 %v1403, %v1454
    %v1460 = vadd.f32 %v1404, %v1456
    %s1461 = scalar_lea.vmem [#allocation2], 72
    %v1462 = vld [vmem:[%s1461] sm:$0xff]
    %v1463 = vld [vmem:[%s1461 + $0x8] sm:$0xff]
    %s1464 = sld [smem:[#allocation8 + $0x1b]]
    %v1465 = vstv %s1464
    %v1466 = vmul.f32 %v1465, %v1462
    %v1467 = vmul.f32 %v1465, %v1463
    %v1468 = vadd.f32 %v1417, %v1466
    %v1469 = vadd.f32 %v1418, %v1467
    %s1470 = sld [smem:[#allocation8 + $0x3f]]
    %v1471 = vstv %s1470
    %v1472 = vmul.f32 %v1471, %v1462
    %v1473 = vmul.f32 %v1471, %v1463
    %v1474 = vadd.f32 %v1431, %v1472
    %v1475 = vadd.f32 %v1432, %v1473
    %s1476 = sld [smem:[#allocation8 + $0x63]]
    %v1477 = vstv %s1476
    %v1478 = vmul.f32 %v1477, %v1462
    %v1479 = vmul.f32 %v1477, %v1463
    %v1480 = vadd.f32 %v1445, %v1478
    %v1481 = vadd.f32 %v1446, %v1479
    %s1482 = sld [smem:[#allocation8 + $0x87]]
    %v1483 = vstv %s1482
    %v1484 = vmul.f32 %v1483, %v1462
    %v1485 = vmul.f32 %v1483, %v1463
    %v1486 = vadd.f32 %v1459, %v1484
    %v1487 = vadd.f32 %v1460, %v1485
    %s1488 = sld [smem:[#allocation8 + $0x1c]]
    %v1489 = vstv %s1488
    %v1490 = vmul.f32 %v1489, %v1462
    %v1491 = vmul.f32 %v1489, %v1463
    %1494 = vrot.lane.b32.xlu0 %v1490, 127
    %v1495 = vpop.permute.xlu0 %1494
    %1496 = vrot.lane.b32.xlu0 %v1491, 127
    %v1497 = vpop.permute.xlu0 %1496
    %v1500 = vadd.f32 %v1468, %v1495
    %v1501 = vadd.f32 %v1469, %v1497
    %s1502 = sld [smem:[#allocation8 + $0x40]]
    %v1503 = vstv %s1502
    %v1504 = vmul.f32 %v1503, %v1462
    %v1505 = vmul.f32 %v1503, %v1463
    %1508 = vrot.lane.b32.xlu0 %v1504, 127
    %v1509 = vpop.permute.xlu0 %1508
    %1510 = vrot.lane.b32.xlu0 %v1505, 127
    %v1511 = vpop.permute.xlu0 %1510
    %v1514 = vadd.f32 %v1474, %v1509
    %v1515 = vadd.f32 %v1475, %v1511
    %s1516 = sld [smem:[#allocation8 + $0x64]]
    %v1517 = vstv %s1516
    %v1518 = vmul.f32 %v1517, %v1462
    %v1519 = vmul.f32 %v1517, %v1463
    %1522 = vrot.lane.b32.xlu0 %v1518, 127
    %v1523 = vpop.permute.xlu0 %1522
    %1524 = vrot.lane.b32.xlu0 %v1519, 127
    %v1525 = vpop.permute.xlu0 %1524
    %v1528 = vadd.f32 %v1480, %v1523
    %v1529 = vadd.f32 %v1481, %v1525
    %s1530 = sld [smem:[#allocation8 + $0x88]]
    %v1531 = vstv %s1530
    %v1532 = vmul.f32 %v1531, %v1462
    %v1533 = vmul.f32 %v1531, %v1463
    %1536 = vrot.lane.b32.xlu0 %v1532, 127
    %v1537 = vpop.permute.xlu0 %1536
    %1538 = vrot.lane.b32.xlu0 %v1533, 127
    %v1539 = vpop.permute.xlu0 %1538
    %v1542 = vadd.f32 %v1486, %v1537
    %v1543 = vadd.f32 %v1487, %v1539
    %s1544 = sld [smem:[#allocation8 + $0x1d]]
    %v1545 = vstv %s1544
    %v1546 = vmul.f32 %v1545, %v1462
    %v1547 = vmul.f32 %v1545, %v1463
    %1550 = vrot.lane.b32.xlu0 %v1546, 126
    %v1551 = vpop.permute.xlu0 %1550
    %1552 = vrot.lane.b32.xlu0 %v1547, 126
    %v1553 = vpop.permute.xlu0 %1552
    %v1556 = vadd.f32 %v1500, %v1551
    %v1557 = vadd.f32 %v1501, %v1553
    %s1558 = sld [smem:[#allocation8 + $0x41]]
    %v1559 = vstv %s1558
    %v1560 = vmul.f32 %v1559, %v1462
    %v1561 = vmul.f32 %v1559, %v1463
    %1564 = vrot.lane.b32.xlu0 %v1560, 126
    %v1565 = vpop.permute.xlu0 %1564
    %1566 = vrot.lane.b32.xlu0 %v1561, 126
    %v1567 = vpop.permute.xlu0 %1566
    %v1570 = vadd.f32 %v1514, %v1565
    %v1571 = vadd.f32 %v1515, %v1567
    %s1572 = sld [smem:[#allocation8 + $0x65]]
    %v1573 = vstv %s1572
    %v1574 = vmul.f32 %v1573, %v1462
    %v1575 = vmul.f32 %v1573, %v1463
    %1578 = vrot.lane.b32.xlu0 %v1574, 126
    %v1579 = vpop.permute.xlu0 %1578
    %1580 = vrot.lane.b32.xlu0 %v1575, 126
    %v1581 = vpop.permute.xlu0 %1580
    %v1584 = vadd.f32 %v1528, %v1579
    %v1585 = vadd.f32 %v1529, %v1581
    %s1586 = sld [smem:[#allocation8 + $0x89]]
    %v1587 = vstv %s1586
    %v1588 = vmul.f32 %v1587, %v1462
    %v1589 = vmul.f32 %v1587, %v1463
    %1592 = vrot.lane.b32.xlu0 %v1588, 126
    %v1593 = vpop.permute.xlu0 %1592
    %1594 = vrot.lane.b32.xlu0 %v1589, 126
    %v1595 = vpop.permute.xlu0 %1594
    %v1598 = vadd.f32 %v1542, %v1593
    %v1599 = vadd.f32 %v1543, %v1595
    %v1600 = vld [vmem:[%s1461 + $0x1] sm:$0xff]
    %v1601 = vld [vmem:[%s1461 + $0x9] sm:$0xff]
    %s1602 = sld [smem:[#allocation8 + $0x1e]]
    %v1603 = vstv %s1602
    %v1604 = vmul.f32 %v1603, %v1600
    %v1605 = vmul.f32 %v1603, %v1601
    %v1606 = vadd.f32 %v1556, %v1604
    %v1607 = vadd.f32 %v1557, %v1605
    %s1608 = sld [smem:[#allocation8 + $0x42]]
    %v1609 = vstv %s1608
    %v1610 = vmul.f32 %v1609, %v1600
    %v1611 = vmul.f32 %v1609, %v1601
    %v1612 = vadd.f32 %v1570, %v1610
    %v1613 = vadd.f32 %v1571, %v1611
    %s1614 = sld [smem:[#allocation8 + $0x66]]
    %v1615 = vstv %s1614
    %v1616 = vmul.f32 %v1615, %v1600
    %v1617 = vmul.f32 %v1615, %v1601
    %v1618 = vadd.f32 %v1584, %v1616
    %v1619 = vadd.f32 %v1585, %v1617
    %s1620 = sld [smem:[#allocation8 + $0x8a]]
    %v1621 = vstv %s1620
    %v1622 = vmul.f32 %v1621, %v1600
    %v1623 = vmul.f32 %v1621, %v1601
    %v1624 = vadd.f32 %v1598, %v1622
    %v1625 = vadd.f32 %v1599, %v1623
    %s1626 = sld [smem:[#allocation8 + $0x1f]]
    %v1627 = vstv %s1626
    %v1628 = vmul.f32 %v1627, %v1600
    %v1629 = vmul.f32 %v1627, %v1601
    %1632 = vrot.lane.b32.xlu0 %v1628, 127
    %v1633 = vpop.permute.xlu0 %1632
    %1634 = vrot.lane.b32.xlu0 %v1629, 127
    %v1635 = vpop.permute.xlu0 %1634
    %v1638 = vadd.f32 %v1606, %v1633
    %v1639 = vadd.f32 %v1607, %v1635
    %s1640 = sld [smem:[#allocation8 + $0x43]]
    %v1641 = vstv %s1640
    %v1642 = vmul.f32 %v1641, %v1600
    %v1643 = vmul.f32 %v1641, %v1601
    %1646 = vrot.lane.b32.xlu0 %v1642, 127
    %v1647 = vpop.permute.xlu0 %1646
    %1648 = vrot.lane.b32.xlu0 %v1643, 127
    %v1649 = vpop.permute.xlu0 %1648
    %v1652 = vadd.f32 %v1612, %v1647
    %v1653 = vadd.f32 %v1613, %v1649
    %s1654 = sld [smem:[#allocation8 + $0x67]]
    %v1655 = vstv %s1654
    %v1656 = vmul.f32 %v1655, %v1600
    %v1657 = vmul.f32 %v1655, %v1601
    %1660 = vrot.lane.b32.xlu0 %v1656, 127
    %v1661 = vpop.permute.xlu0 %1660
    %1662 = vrot.lane.b32.xlu0 %v1657, 127
    %v1663 = vpop.permute.xlu0 %1662
    %v1666 = vadd.f32 %v1618, %v1661
    %v1667 = vadd.f32 %v1619, %v1663
    %s1668 = sld [smem:[#allocation8 + $0x8b]]
    %v1669 = vstv %s1668
    %v1670 = vmul.f32 %v1669, %v1600
    %v1671 = vmul.f32 %v1669, %v1601
    %1674 = vrot.lane.b32.xlu0 %v1670, 127
    %v1675 = vpop.permute.xlu0 %1674
    %1676 = vrot.lane.b32.xlu0 %v1671, 127
    %v1677 = vpop.permute.xlu0 %1676
    %v1680 = vadd.f32 %v1624, %v1675
    %v1681 = vadd.f32 %v1625, %v1677
    %s1682 = sld [smem:[#allocation8 + $0x20]]
    %v1683 = vstv %s1682
    %v1684 = vmul.f32 %v1683, %v1600
    %v1685 = vmul.f32 %v1683, %v1601
    %1688 = vrot.lane.b32.xlu0 %v1684, 126
    %v1689 = vpop.permute.xlu0 %1688
    %1690 = vrot.lane.b32.xlu0 %v1685, 126
    %v1691 = vpop.permute.xlu0 %1690
    %v1694 = vadd.f32 %v1638, %v1689
    %v1695 = vadd.f32 %v1639, %v1691
    %s1696 = sld [smem:[#allocation8 + $0x44]]
    %v1697 = vstv %s1696
    %v1698 = vmul.f32 %v1697, %v1600
    %v1699 = vmul.f32 %v1697, %v1601
    %1702 = vrot.lane.b32.xlu0 %v1698, 126
    %v1703 = vpop.permute.xlu0 %1702
    %1704 = vrot.lane.b32.xlu0 %v1699, 126
    %v1705 = vpop.permute.xlu0 %1704
    %v1708 = vadd.f32 %v1652, %v1703
    %v1709 = vadd.f32 %v1653, %v1705
    %s1710 = sld [smem:[#allocation8 + $0x68]]
    %v1711 = vstv %s1710
    %v1712 = vmul.f32 %v1711, %v1600
    %v1713 = vmul.f32 %v1711, %v1601
    %1716 = vrot.lane.b32.xlu0 %v1712, 126
    %v1717 = vpop.permute.xlu0 %1716
    %1718 = vrot.lane.b32.xlu0 %v1713, 126
    %v1719 = vpop.permute.xlu0 %1718
    %v1722 = vadd.f32 %v1666, %v1717
    %v1723 = vadd.f32 %v1667, %v1719
    %s1724 = sld [smem:[#allocation8 + $0x8c]]
    %v1725 = vstv %s1724
    %v1726 = vmul.f32 %v1725, %v1600
    %v1727 = vmul.f32 %v1725, %v1601
    %1730 = vrot.lane.b32.xlu0 %v1726, 126
    %v1731 = vpop.permute.xlu0 %1730
    %1732 = vrot.lane.b32.xlu0 %v1727, 126
    %v1733 = vpop.permute.xlu0 %1732
    %v1736 = vadd.f32 %v1680, %v1731
    %v1737 = vadd.f32 %v1681, %v1733
    %v1738 = vld [vmem:[%s1461 + $0x2] sm:$0xff]
    %v1739 = vld [vmem:[%s1461 + $0xa] sm:$0xff]
    %s1740 = sld [smem:[#allocation8 + $0x21]]
    %v1741 = vstv %s1740
    %v1742 = vmul.f32 %v1741, %v1738
    %v1743 = vmul.f32 %v1741, %v1739
    %v1744 = vadd.f32 %v1694, %v1742
    %v1745 = vadd.f32 %v1695, %v1743
    %s1746 = sld [smem:[#allocation8 + $0x45]]
    %v1747 = vstv %s1746
    %v1748 = vmul.f32 %v1747, %v1738
    %v1749 = vmul.f32 %v1747, %v1739
    %v1750 = vadd.f32 %v1708, %v1748
    %v1751 = vadd.f32 %v1709, %v1749
    %s1752 = sld [smem:[#allocation8 + $0x69]]
    %v1753 = vstv %s1752
    %v1754 = vmul.f32 %v1753, %v1738
    %v1755 = vmul.f32 %v1753, %v1739
    %v1756 = vadd.f32 %v1722, %v1754
    %v1757 = vadd.f32 %v1723, %v1755
    %s1758 = sld [smem:[#allocation8 + $0x8d]]
    %v1759 = vstv %s1758
    %v1760 = vmul.f32 %v1759, %v1738
    %v1761 = vmul.f32 %v1759, %v1739
    %v1762 = vadd.f32 %v1736, %v1760
    %v1763 = vadd.f32 %v1737, %v1761
    %s1764 = sld [smem:[#allocation8 + $0x22]]
    %v1765 = vstv %s1764
    %v1766 = vmul.f32 %v1765, %v1738
    %v1767 = vmul.f32 %v1765, %v1739
    %1770 = vrot.lane.b32.xlu0 %v1766, 127
    %v1771 = vpop.permute.xlu0 %1770
    %1772 = vrot.lane.b32.xlu0 %v1767, 127
    %v1773 = vpop.permute.xlu0 %1772
    %v1776 = vadd.f32 %v1744, %v1771
    %v1777 = vadd.f32 %v1745, %v1773
    %s1778 = sld [smem:[#allocation8 + $0x46]]
    %v1779 = vstv %s1778
    %v1780 = vmul.f32 %v1779, %v1738
    %v1781 = vmul.f32 %v1779, %v1739
    %1784 = vrot.lane.b32.xlu0 %v1780, 127
    %v1785 = vpop.permute.xlu0 %1784
    %1786 = vrot.lane.b32.xlu0 %v1781, 127
    %v1787 = vpop.permute.xlu0 %1786
    %v1790 = vadd.f32 %v1750, %v1785
    %v1791 = vadd.f32 %v1751, %v1787
    %s1792 = sld [smem:[#allocation8 + $0x6a]]
    %v1793 = vstv %s1792
    %v1794 = vmul.f32 %v1793, %v1738
    %v1795 = vmul.f32 %v1793, %v1739
    %1798 = vrot.lane.b32.xlu0 %v1794, 127
    %v1799 = vpop.permute.xlu0 %1798
    %1800 = vrot.lane.b32.xlu0 %v1795, 127
    %v1801 = vpop.permute.xlu0 %1800
    %v1804 = vadd.f32 %v1756, %v1799
    %v1805 = vadd.f32 %v1757, %v1801
    %s1806 = sld [smem:[#allocation8 + $0x8e]]
    %v1807 = vstv %s1806
    %v1808 = vmul.f32 %v1807, %v1738
    %v1809 = vmul.f32 %v1807, %v1739
    %1812 = vrot.lane.b32.xlu0 %v1808, 127
    %v1813 = vpop.permute.xlu0 %1812
    %1814 = vrot.lane.b32.xlu0 %v1809, 127
    %v1815 = vpop.permute.xlu0 %1814
    %v1818 = vadd.f32 %v1762, %v1813
    %v1819 = vadd.f32 %v1763, %v1815
    %s1820 = sld [smem:[#allocation8 + $0x23]]
    %v1821 = vstv %s1820
    %v1822 = vmul.f32 %v1821, %v1738
    %v1823 = vmul.f32 %v1821, %v1739
    %1826 = vrot.lane.b32.xlu0 %v1822, 126
    %v1827 = vpop.permute.xlu0 %1826
    %1828 = vrot.lane.b32.xlu0 %v1823, 126
    %v1829 = vpop.permute.xlu0 %1828
    %v1832 = vadd.f32 %v1776, %v1827
    %v1833 = vadd.f32 %v1777, %v1829
    %s1834 = sld [smem:[#allocation8 + $0x47]]
    %v1835 = vstv %s1834
    %v1836 = vmul.f32 %v1835, %v1738
    %v1837 = vmul.f32 %v1835, %v1739
    %1840 = vrot.lane.b32.xlu0 %v1836, 126
    %v1841 = vpop.permute.xlu0 %1840
    %1842 = vrot.lane.b32.xlu0 %v1837, 126
    %v1843 = vpop.permute.xlu0 %1842
    %v1846 = vadd.f32 %v1790, %v1841
    %v1847 = vadd.f32 %v1791, %v1843
    %s1848 = sld [smem:[#allocation8 + $0x6b]]
    %v1849 = vstv %s1848
    %v1850 = vmul.f32 %v1849, %v1738
    %v1851 = vmul.f32 %v1849, %v1739
    %1854 = vrot.lane.b32.xlu0 %v1850, 126
    %v1855 = vpop.permute.xlu0 %1854
    %1856 = vrot.lane.b32.xlu0 %v1851, 126
    %v1857 = vpop.permute.xlu0 %1856
    %v1860 = vadd.f32 %v1804, %v1855
    %v1861 = vadd.f32 %v1805, %v1857
    %s1862 = sld [smem:[#allocation8 + $0x8f]]
    %v1863 = vstv %s1862
    %v1864 = vmul.f32 %v1863, %v1738
    %v1865 = vmul.f32 %v1863, %v1739
    %1868 = vrot.lane.b32.xlu0 %v1864, 126
    %v1869 = vpop.permute.xlu0 %1868
    %1870 = vrot.lane.b32.xlu0 %v1865, 126
    %v1871 = vpop.permute.xlu0 %1870
    %v1874 = vadd.f32 %v1818, %v1869
    %v1875 = vadd.f32 %v1819, %v1871
    %s1876 = sld [smem:[#allocation9]]
    %v1877 = vstv %s1876
    %v1878 = vadd.f32 %v1832, %v1877
    %v1879 = vadd.f32 %v1833, %v1877
    %vm1880 = vcmp.ge.f32.partialorder %v1878, 0.0
    %vm1881 = vcmp.ge.f32.partialorder %v1879, 0.0
    %v1882 = vmul.f32 %v1878, 0.01
    %v1883 = vmul.f32 %v1879, 0.01
    %v1884 = vsel %vm1880, %v1878, %v1882
    %v1885 = vsel %vm1881, %v1879, %v1883
    %v1886 = vsel %vm91, 1, 0
    %vm1887 = vcmp.eq.s32.totalorder %v1886, 1
    %v1888 = vsel %vm1887, %v1884, 0.0
    %v1889 = vsel %vm1887, %v1885, 0.0
    %1892 = vrot.lane.b32.xlu0 %v1888, 1
    %v1893 = vpop.permute.xlu0 %1892
    %1894 = vrot.lane.b32.xlu0 %v1889, 1
    %v1895 = vpop.permute.xlu0 %1894
    %vm1898 = vcmask 302088
    %1899 = vst.msk [vmem:[#allocation3 + $0x1] sm:$0xff] %vm1898, %v1893
    %1900 = vst.msk [vmem:[#allocation3 + $0x9] sm:$0xff] %vm1898, %v1895
    %s1901 = sld [smem:[#allocation9 + $0x1]]
    %v1902 = vstv %s1901
    %v1903 = vadd.f32 %v1846, %v1902
    %v1904 = vadd.f32 %v1847, %v1902
    %vm1905 = vcmp.ge.f32.partialorder %v1903, 0.0
    %vm1906 = vcmp.ge.f32.partialorder %v1904, 0.0
    %v1907 = vmul.f32 %v1903, 0.01
    %v1908 = vmul.f32 %v1904, 0.01
    %v1909 = vsel %vm1905, %v1903, %v1907
    %v1910 = vsel %vm1906, %v1904, %v1908
    %v1911 = vsel %vm1887, %v1909, 0.0
    %v1912 = vsel %vm1887, %v1910, 0.0
    %1915 = vrot.lane.b32.xlu0 %v1911, 1
    %v1916 = vpop.permute.xlu0 %1915
    %1917 = vrot.lane.b32.xlu0 %v1912, 1
    %v1918 = vpop.permute.xlu0 %1917
    %s1921 = scalar_lea.vmem [#allocation3], 24
    %1922 = vst.msk [vmem:[%s1921 + $0x1] sm:$0xff] %vm1898, %v1916
    %1923 = vst.msk [vmem:[%s1921 + $0x9] sm:$0xff] %vm1898, %v1918
    %s1924 = sld [smem:[#allocation9 + $0x2]]
    %v1925 = vstv %s1924
    %v1926 = vadd.f32 %v1860, %v1925
    %v1927 = vadd.f32 %v1861, %v1925
    %vm1928 = vcmp.ge.f32.partialorder %v1926, 0.0
    %vm1929 = vcmp.ge.f32.partialorder %v1927, 0.0
    %v1930 = vmul.f32 %v1926, 0.01
    %v1931 = vmul.f32 %v1927, 0.01
    %v1932 = vsel %vm1928, %v1926, %v1930
    %v1933 = vsel %vm1929, %v1927, %v1931
    %v1934 = vsel %vm1887, %v1932, 0.0
    %v1935 = vsel %vm1887, %v1933, 0.0
    %1938 = vrot.lane.b32.xlu0 %v1934, 1
    %v1939 = vpop.permute.xlu0 %1938
    %1940 = vrot.lane.b32.xlu0 %v1935, 1
    %v1941 = vpop.permute.xlu0 %1940
    %s1944 = scalar_lea.vmem [#allocation3], 48
    %1945 = vst.msk [vmem:[%s1944 + $0x1] sm:$0xff] %vm1898, %v1939
    %1946 = vst.msk [vmem:[%s1944 + $0x9] sm:$0xff] %vm1898, %v1941
    %s1947 = sld [smem:[#allocation9 + $0x3]]
    %v1948 = vstv %s1947
    %v1949 = vadd.f32 %v1874, %v1948
    %v1950 = vadd.f32 %v1875, %v1948
    %vm1951 = vcmp.ge.f32.partialorder %v1949, 0.0
    %vm1952 = vcmp.ge.f32.partialorder %v1950, 0.0
    %v1953 = vmul.f32 %v1949, 0.01
    %v1954 = vmul.f32 %v1950, 0.01
    %v1955 = vsel %vm1951, %v1949, %v1953
    %v1956 = vsel %vm1952, %v1950, %v1954
    %v1957 = vsel %vm1887, %v1955, 0.0
    %v1958 = vsel %vm1887, %v1956, 0.0
    %1961 = vrot.lane.b32.xlu0 %v1957, 1
    %v1962 = vpop.permute.xlu0 %1961
    %1963 = vrot.lane.b32.xlu0 %v1958, 1
    %v1964 = vpop.permute.xlu0 %1963
    %s1967 = scalar_lea.vmem [#allocation3], 72
    %1968 = vst.msk [vmem:[%s1967 + $0x1] sm:$0xff] %vm1898, %v1962
    %1969 = vst.msk [vmem:[%s1967 + $0x9] sm:$0xff] %vm1898, %v1964
    %v1970 = vld [vmem:[#allocation3] sm:$0xff]
    %v1971 = vld [vmem:[#allocation3 + $0x8] sm:$0xff]
    %s1972 = sld [smem:[#allocation11]]
    %v1973 = vstv %s1972
    %v1974 = vmul.f32 %v1973, %v1970
    %v1975 = vmul.f32 %v1973, %v1971
    %v1976 = vadd.f32 %v1974, 0.0
    %v1977 = vadd.f32 %v1975, 0.0
    %s1978 = sld [smem:[#allocation11 + $0x24]]
    %v1979 = vstv %s1978
    %v1980 = vmul.f32 %v1979, %v1970
    %v1981 = vmul.f32 %v1979, %v1971
    %v1982 = vadd.f32 %v1980, 0.0
    %v1983 = vadd.f32 %v1981, 0.0
    %s1984 = sld [smem:[#allocation11 + $0x48]]
    %v1985 = vstv %s1984
    %v1986 = vmul.f32 %v1985, %v1970
    %v1987 = vmul.f32 %v1985, %v1971
    %v1988 = vadd.f32 %v1986, 0.0
    %v1989 = vadd.f32 %v1987, 0.0
    %s1990 = sld [smem:[#allocation11 + $0x6c]]
    %v1991 = vstv %s1990
    %v1992 = vmul.f32 %v1991, %v1970
    %v1993 = vmul.f32 %v1991, %v1971
    %v1994 = vadd.f32 %v1992, 0.0
    %v1995 = vadd.f32 %v1993, 0.0
    %s1996 = sld [smem:[#allocation11 + $0x1]]
    %v1997 = vstv %s1996
    %v1998 = vmul.f32 %v1997, %v1970
    %v1999 = vmul.f32 %v1997, %v1971
    %2002 = vrot.lane.b32.xlu0 %v1998, 127
    %v2003 = vpop.permute.xlu0 %2002
    %2004 = vrot.lane.b32.xlu0 %v1999, 127
    %v2005 = vpop.permute.xlu0 %2004
    %v2008 = vadd.f32 %v1976, %v2003
    %v2009 = vadd.f32 %v1977, %v2005
    %s2010 = sld [smem:[#allocation11 + $0x25]]
    %v2011 = vstv %s2010
    %v2012 = vmul.f32 %v2011, %v1970
    %v2013 = vmul.f32 %v2011, %v1971
    %2016 = vrot.lane.b32.xlu0 %v2012, 127
    %v2017 = vpop.permute.xlu0 %2016
    %2018 = vrot.lane.b32.xlu0 %v2013, 127
    %v2019 = vpop.permute.xlu0 %2018
    %v2022 = vadd.f32 %v1982, %v2017
    %v2023 = vadd.f32 %v1983, %v2019
    %s2024 = sld [smem:[#allocation11 + $0x49]]
    %v2025 = vstv %s2024
    %v2026 = vmul.f32 %v2025, %v1970
    %v2027 = vmul.f32 %v2025, %v1971
    %2030 = vrot.lane.b32.xlu0 %v2026, 127
    %v2031 = vpop.permute.xlu0 %2030
    %2032 = vrot.lane.b32.xlu0 %v2027, 127
    %v2033 = vpop.permute.xlu0 %2032
    %v2036 = vadd.f32 %v1988, %v2031
    %v2037 = vadd.f32 %v1989, %v2033
    %s2038 = sld [smem:[#allocation11 + $0x6d]]
    %v2039 = vstv %s2038
    %v2040 = vmul.f32 %v2039, %v1970
    %v2041 = vmul.f32 %v2039, %v1971
    %2044 = vrot.lane.b32.xlu0 %v2040, 127
    %v2045 = vpop.permute.xlu0 %2044
    %2046 = vrot.lane.b32.xlu0 %v2041, 127
    %v2047 = vpop.permute.xlu0 %2046
    %v2050 = vadd.f32 %v1994, %v2045
    %v2051 = vadd.f32 %v1995, %v2047
    %s2052 = sld [smem:[#allocation11 + $0x2]]
    %v2053 = vstv %s2052
    %v2054 = vmul.f32 %v2053, %v1970
    %v2055 = vmul.f32 %v2053, %v1971
    %2058 = vrot.lane.b32.xlu0 %v2054, 126
    %v2059 = vpop.permute.xlu0 %2058
    %2060 = vrot.lane.b32.xlu0 %v2055, 126
    %v2061 = vpop.permute.xlu0 %2060
    %v2064 = vadd.f32 %v2008, %v2059
    %v2065 = vadd.f32 %v2009, %v2061
    %s2066 = sld [smem:[#allocation11 + $0x26]]
    %v2067 = vstv %s2066
    %v2068 = vmul.f32 %v2067, %v1970
    %v2069 = vmul.f32 %v2067, %v1971
    %2072 = vrot.lane.b32.xlu0 %v2068, 126
    %v2073 = vpop.permute.xlu0 %2072
    %2074 = vrot.lane.b32.xlu0 %v2069, 126
    %v2075 = vpop.permute.xlu0 %2074
    %v2078 = vadd.f32 %v2022, %v2073
    %v2079 = vadd.f32 %v2023, %v2075
    %s2080 = sld [smem:[#allocation11 + $0x4a]]
    %v2081 = vstv %s2080
    %v2082 = vmul.f32 %v2081, %v1970
    %v2083 = vmul.f32 %v2081, %v1971
    %2086 = vrot.lane.b32.xlu0 %v2082, 126
    %v2087 = vpop.permute.xlu0 %2086
    %2088 = vrot.lane.b32.xlu0 %v2083, 126
    %v2089 = vpop.permute.xlu0 %2088
    %v2092 = vadd.f32 %v2036, %v2087
    %v2093 = vadd.f32 %v2037, %v2089
    %s2094 = sld [smem:[#allocation11 + $0x6e]]
    %v2095 = vstv %s2094
    %v2096 = vmul.f32 %v2095, %v1970
    %v2097 = vmul.f32 %v2095, %v1971
    %2100 = vrot.lane.b32.xlu0 %v2096, 126
    %v2101 = vpop.permute.xlu0 %2100
    %2102 = vrot.lane.b32.xlu0 %v2097, 126
    %v2103 = vpop.permute.xlu0 %2102
    %v2106 = vadd.f32 %v2050, %v2101
    %v2107 = vadd.f32 %v2051, %v2103
    %v2108 = vld [vmem:[#allocation3 + $0x1] sm:$0xff]
    %v2109 = vld [vmem:[#allocation3 + $0x9] sm:$0xff]
    %s2110 = sld [smem:[#allocation11 + $0x3]]
    %v2111 = vstv %s2110
    %v2112 = vmul.f32 %v2111, %v2108
    %v2113 = vmul.f32 %v2111, %v2109
    %v2114 = vadd.f32 %v2064, %v2112
    %v2115 = vadd.f32 %v2065, %v2113
    %s2116 = sld [smem:[#allocation11 + $0x27]]
    %v2117 = vstv %s2116
    %v2118 = vmul.f32 %v2117, %v2108
    %v2119 = vmul.f32 %v2117, %v2109
    %v2120 = vadd.f32 %v2078, %v2118
    %v2121 = vadd.f32 %v2079, %v2119
    %s2122 = sld [smem:[#allocation11 + $0x4b]]
    %v2123 = vstv %s2122
    %v2124 = vmul.f32 %v2123, %v2108
    %v2125 = vmul.f32 %v2123, %v2109
    %v2126 = vadd.f32 %v2092, %v2124
    %v2127 = vadd.f32 %v2093, %v2125
    %s2128 = sld [smem:[#allocation11 + $0x6f]]
    %v2129 = vstv %s2128
    %v2130 = vmul.f32 %v2129, %v2108
    %v2131 = vmul.f32 %v2129, %v2109
    %v2132 = vadd.f32 %v2106, %v2130
    %v2133 = vadd.f32 %v2107, %v2131
    %s2134 = sld [smem:[#allocation11 + $0x4]]
    %v2135 = vstv %s2134
    %v2136 = vmul.f32 %v2135, %v2108
    %v2137 = vmul.f32 %v2135, %v2109
    %2140 = vrot.lane.b32.xlu0 %v2136, 127
    %v2141 = vpop.permute.xlu0 %2140
    %2142 = vrot.lane.b32.xlu0 %v2137, 127
    %v2143 = vpop.permute.xlu0 %2142
    %v2146 = vadd.f32 %v2114, %v2141
    %v2147 = vadd.f32 %v2115, %v2143
    %s2148 = sld [smem:[#allocation11 + $0x28]]
    %v2149 = vstv %s2148
    %v2150 = vmul.f32 %v2149, %v2108
    %v2151 = vmul.f32 %v2149, %v2109
    %2154 = vrot.lane.b32.xlu0 %v2150, 127
    %v2155 = vpop.permute.xlu0 %2154
    %2156 = vrot.lane.b32.xlu0 %v2151, 127
    %v2157 = vpop.permute.xlu0 %2156
    %v2160 = vadd.f32 %v2120, %v2155
    %v2161 = vadd.f32 %v2121, %v2157
    %s2162 = sld [smem:[#allocation11 + $0x4c]]
    %v2163 = vstv %s2162
    %v2164 = vmul.f32 %v2163, %v2108
    %v2165 = vmul.f32 %v2163, %v2109
    %2168 = vrot.lane.b32.xlu0 %v2164, 127
    %v2169 = vpop.permute.xlu0 %2168
    %2170 = vrot.lane.b32.xlu0 %v2165, 127
    %v2171 = vpop.permute.xlu0 %2170
    %v2174 = vadd.f32 %v2126, %v2169
    %v2175 = vadd.f32 %v2127, %v2171
    %s2176 = sld [smem:[#allocation11 + $0x70]]
    %v2177 = vstv %s2176
    %v2178 = vmul.f32 %v2177, %v2108
    %v2179 = vmul.f32 %v2177, %v2109
    %2182 = vrot.lane.b32.xlu0 %v2178, 127
    %v2183 = vpop.permute.xlu0 %2182
    %2184 = vrot.lane.b32.xlu0 %v2179, 127
    %v2185 = vpop.permute.xlu0 %2184
    %v2188 = vadd.f32 %v2132, %v2183
    %v2189 = vadd.f32 %v2133, %v2185
    %s2190 = sld [smem:[#allocation11 + $0x5]]
    %v2191 = vstv %s2190
    %v2192 = vmul.f32 %v2191, %v2108
    %v2193 = vmul.f32 %v2191, %v2109
    %2196 = vrot.lane.b32.xlu0 %v2192, 126
    %v2197 = vpop.permute.xlu0 %2196
    %2198 = vrot.lane.b32.xlu0 %v2193, 126
    %v2199 = vpop.permute.xlu0 %2198
    %v2202 = vadd.f32 %v2146, %v2197
    %v2203 = vadd.f32 %v2147, %v2199
    %s2204 = sld [smem:[#allocation11 + $0x29]]
    %v2205 = vstv %s2204
    %v2206 = vmul.f32 %v2205, %v2108
    %v2207 = vmul.f32 %v2205, %v2109
    %2210 = vrot.lane.b32.xlu0 %v2206, 126
    %v2211 = vpop.permute.xlu0 %2210
    %2212 = vrot.lane.b32.xlu0 %v2207, 126
    %v2213 = vpop.permute.xlu0 %2212
    %v2216 = vadd.f32 %v2160, %v2211
    %v2217 = vadd.f32 %v2161, %v2213
    %s2218 = sld [smem:[#allocation11 + $0x4d]]
    %v2219 = vstv %s2218
    %v2220 = vmul.f32 %v2219, %v2108
    %v2221 = vmul.f32 %v2219, %v2109
    %2224 = vrot.lane.b32.xlu0 %v2220, 126
    %v2225 = vpop.permute.xlu0 %2224
    %2226 = vrot.lane.b32.xlu0 %v2221, 126
    %v2227 = vpop.permute.xlu0 %2226
    %v2230 = vadd.f32 %v2174, %v2225
    %v2231 = vadd.f32 %v2175, %v2227
    %s2232 = sld [smem:[#allocation11 + $0x71]]
    %v2233 = vstv %s2232
    %v2234 = vmul.f32 %v2233, %v2108
    %v2235 = vmul.f32 %v2233, %v2109
    %2238 = vrot.lane.b32.xlu0 %v2234, 126
    %v2239 = vpop.permute.xlu0 %2238
    %2240 = vrot.lane.b32.xlu0 %v2235, 126
    %v2241 = vpop.permute.xlu0 %2240
    %v2244 = vadd.f32 %v2188, %v2239
    %v2245 = vadd.f32 %v2189, %v2241
    %v2246 = vld [vmem:[#allocation3 + $0x2] sm:$0xff]
    %v2247 = vld [vmem:[#allocation3 + $0xa] sm:$0xff]
    %s2248 = sld [smem:[#allocation11 + $0x6]]
    %v2249 = vstv %s2248
    %v2250 = vmul.f32 %v2249, %v2246
    %v2251 = vmul.f32 %v2249, %v2247
    %v2252 = vadd.f32 %v2202, %v2250
    %v2253 = vadd.f32 %v2203, %v2251
    %s2254 = sld [smem:[#allocation11 + $0x2a]]
    %v2255 = vstv %s2254
    %v2256 = vmul.f32 %v2255, %v2246
    %v2257 = vmul.f32 %v2255, %v2247
    %v2258 = vadd.f32 %v2216, %v2256
    %v2259 = vadd.f32 %v2217, %v2257
    %s2260 = sld [smem:[#allocation11 + $0x4e]]
    %v2261 = vstv %s2260
    %v2262 = vmul.f32 %v2261, %v2246
    %v2263 = vmul.f32 %v2261, %v2247
    %v2264 = vadd.f32 %v2230, %v2262
    %v2265 = vadd.f32 %v2231, %v2263
    %s2266 = sld [smem:[#allocation11 + $0x72]]
    %v2267 = vstv %s2266
    %v2268 = vmul.f32 %v2267, %v2246
    %v2269 = vmul.f32 %v2267, %v2247
    %v2270 = vadd.f32 %v2244, %v2268
    %v2271 = vadd.f32 %v2245, %v2269
    %s2272 = sld [smem:[#allocation11 + $0x7]]
    %v2273 = vstv %s2272
    %v2274 = vmul.f32 %v2273, %v2246
    %v2275 = vmul.f32 %v2273, %v2247
    %2278 = vrot.lane.b32.xlu0 %v2274, 127
    %v2279 = vpop.permute.xlu0 %2278
    %2280 = vrot.lane.b32.xlu0 %v2275, 127
    %v2281 = vpop.permute.xlu0 %2280
    %v2284 = vadd.f32 %v2252, %v2279
    %v2285 = vadd.f32 %v2253, %v2281
    %s2286 = sld [smem:[#allocation11 + $0x2b]]
    %v2287 = vstv %s2286
    %v2288 = vmul.f32 %v2287, %v2246
    %v2289 = vmul.f32 %v2287, %v2247
    %2292 = vrot.lane.b32.xlu0 %v2288, 127
    %v2293 = vpop.permute.xlu0 %2292
    %2294 = vrot.lane.b32.xlu0 %v2289, 127
    %v2295 = vpop.permute.xlu0 %2294
    %v2298 = vadd.f32 %v2258, %v2293
    %v2299 = vadd.f32 %v2259, %v2295
    %s2300 = sld [smem:[#allocation11 + $0x4f]]
    %v2301 = vstv %s2300
    %v2302 = vmul.f32 %v2301, %v2246
    %v2303 = vmul.f32 %v2301, %v2247
    %2306 = vrot.lane.b32.xlu0 %v2302, 127
    %v2307 = vpop.permute.xlu0 %2306
    %2308 = vrot.lane.b32.xlu0 %v2303, 127
    %v2309 = vpop.permute.xlu0 %2308
    %v2312 = vadd.f32 %v2264, %v2307
    %v2313 = vadd.f32 %v2265, %v2309
    %s2314 = sld [smem:[#allocation11 + $0x73]]
    %v2315 = vstv %s2314
    %v2316 = vmul.f32 %v2315, %v2246
    %v2317 = vmul.f32 %v2315, %v2247
    %2320 = vrot.lane.b32.xlu0 %v2316, 127
    %v2321 = vpop.permute.xlu0 %2320
    %2322 = vrot.lane.b32.xlu0 %v2317, 127
    %v2323 = vpop.permute.xlu0 %2322
    %v2326 = vadd.f32 %v2270, %v2321
    %v2327 = vadd.f32 %v2271, %v2323
    %s2328 = sld [smem:[#allocation11 + $0x8]]
    %v2329 = vstv %s2328
    %v2330 = vmul.f32 %v2329, %v2246
    %v2331 = vmul.f32 %v2329, %v2247
    %2334 = vrot.lane.b32.xlu0 %v2330, 126
    %v2335 = vpop.permute.xlu0 %2334
    %2336 = vrot.lane.b32.xlu0 %v2331, 126
    %v2337 = vpop.permute.xlu0 %2336
    %v2340 = vadd.f32 %v2284, %v2335
    %v2341 = vadd.f32 %v2285, %v2337
    %s2342 = sld [smem:[#allocation11 + $0x2c]]
    %v2343 = vstv %s2342
    %v2344 = vmul.f32 %v2343, %v2246
    %v2345 = vmul.f32 %v2343, %v2247
    %2348 = vrot.lane.b32.xlu0 %v2344, 126
    %v2349 = vpop.permute.xlu0 %2348
    %2350 = vrot.lane.b32.xlu0 %v2345, 126
    %v2351 = vpop.permute.xlu0 %2350
    %v2354 = vadd.f32 %v2298, %v2349
    %v2355 = vadd.f32 %v2299, %v2351
    %s2356 = sld [smem:[#allocation11 + $0x50]]
    %v2357 = vstv %s2356
    %v2358 = vmul.f32 %v2357, %v2246
    %v2359 = vmul.f32 %v2357, %v2247
    %2362 = vrot.lane.b32.xlu0 %v2358, 126
    %v2363 = vpop.permute.xlu0 %2362
    %2364 = vrot.lane.b32.xlu0 %v2359, 126
    %v2365 = vpop.permute.xlu0 %2364
    %v2368 = vadd.f32 %v2312, %v2363
    %v2369 = vadd.f32 %v2313, %v2365
    %s2370 = sld [smem:[#allocation11 + $0x74]]
    %v2371 = vstv %s2370
    %v2372 = vmul.f32 %v2371, %v2246
    %v2373 = vmul.f32 %v2371, %v2247
    %2376 = vrot.lane.b32.xlu0 %v2372, 126
    %v2377 = vpop.permute.xlu0 %2376
    %2378 = vrot.lane.b32.xlu0 %v2373, 126
    %v2379 = vpop.permute.xlu0 %2378
    %v2382 = vadd.f32 %v2326, %v2377
    %v2383 = vadd.f32 %v2327, %v2379
    %v2384 = vld [vmem:[%s1921] sm:$0xff]
    %v2385 = vld [vmem:[%s1921 + $0x8] sm:$0xff]
    %s2386 = sld [smem:[#allocation11 + $0x9]]
    %v2387 = vstv %s2386
    %v2388 = vmul.f32 %v2387, %v2384
    %v2389 = vmul.f32 %v2387, %v2385
    %v2390 = vadd.f32 %v2340, %v2388
    %v2391 = vadd.f32 %v2341, %v2389
    %s2392 = sld [smem:[#allocation11 + $0x2d]]
    %v2393 = vstv %s2392
    %v2394 = vmul.f32 %v2393, %v2384
    %v2395 = vmul.f32 %v2393, %v2385
    %v2396 = vadd.f32 %v2354, %v2394
    %v2397 = vadd.f32 %v2355, %v2395
    %s2398 = sld [smem:[#allocation11 + $0x51]]
    %v2399 = vstv %s2398
    %v2400 = vmul.f32 %v2399, %v2384
    %v2401 = vmul.f32 %v2399, %v2385
    %v2402 = vadd.f32 %v2368, %v2400
    %v2403 = vadd.f32 %v2369, %v2401
    %s2404 = sld [smem:[#allocation11 + $0x75]]
    %v2405 = vstv %s2404
    %v2406 = vmul.f32 %v2405, %v2384
    %v2407 = vmul.f32 %v2405, %v2385
    %v2408 = vadd.f32 %v2382, %v2406
    %v2409 = vadd.f32 %v2383, %v2407
    %s2410 = sld [smem:[#allocation11 + $0xa]]
    %v2411 = vstv %s2410
    %v2412 = vmul.f32 %v2411, %v2384
    %v2413 = vmul.f32 %v2411, %v2385
    %2416 = vrot.lane.b32.xlu0 %v2412, 127
    %v2417 = vpop.permute.xlu0 %2416
    %2418 = vrot.lane.b32.xlu0 %v2413, 127
    %v2419 = vpop.permute.xlu0 %2418
    %v2422 = vadd.f32 %v2390, %v2417
    %v2423 = vadd.f32 %v2391, %v2419
    %s2424 = sld [smem:[#allocation11 + $0x2e]]
    %v2425 = vstv %s2424
    %v2426 = vmul.f32 %v2425, %v2384
    %v2427 = vmul.f32 %v2425, %v2385
    %2430 = vrot.lane.b32.xlu0 %v2426, 127
    %v2431 = vpop.permute.xlu0 %2430
    %2432 = vrot.lane.b32.xlu0 %v2427, 127
    %v2433 = vpop.permute.xlu0 %2432
    %v2436 = vadd.f32 %v2396, %v2431
    %v2437 = vadd.f32 %v2397, %v2433
    %s2438 = sld [smem:[#allocation11 + $0x52]]
    %v2439 = vstv %s2438
    %v2440 = vmul.f32 %v2439, %v2384
    %v2441 = vmul.f32 %v2439, %v2385
    %2444 = vrot.lane.b32.xlu0 %v2440, 127
    %v2445 = vpop.permute.xlu0 %2444
    %2446 = vrot.lane.b32.xlu0 %v2441, 127
    %v2447 = vpop.permute.xlu0 %2446
    %v2450 = vadd.f32 %v2402, %v2445
    %v2451 = vadd.f32 %v2403, %v2447
    %s2452 = sld [smem:[#allocation11 + $0x76]]
    %v2453 = vstv %s2452
    %v2454 = vmul.f32 %v2453, %v2384
    %v2455 = vmul.f32 %v2453, %v2385
    %2458 = vrot.lane.b32.xlu0 %v2454, 127
    %v2459 = vpop.permute.xlu0 %2458
    %2460 = vrot.lane.b32.xlu0 %v2455, 127
    %v2461 = vpop.permute.xlu0 %2460
    %v2464 = vadd.f32 %v2408, %v2459
    %v2465 = vadd.f32 %v2409, %v2461
    %s2466 = sld [smem:[#allocation11 + $0xb]]
    %v2467 = vstv %s2466
    %v2468 = vmul.f32 %v2467, %v2384
    %v2469 = vmul.f32 %v2467, %v2385
    %2472 = vrot.lane.b32.xlu0 %v2468, 126
    %v2473 = vpop.permute.xlu0 %2472
    %2474 = vrot.lane.b32.xlu0 %v2469, 126
    %v2475 = vpop.permute.xlu0 %2474
    %v2478 = vadd.f32 %v2422, %v2473
    %v2479 = vadd.f32 %v2423, %v2475
    %s2480 = sld [smem:[#allocation11 + $0x2f]]
    %v2481 = vstv %s2480
    %v2482 = vmul.f32 %v2481, %v2384
    %v2483 = vmul.f32 %v2481, %v2385
    %2486 = vrot.lane.b32.xlu0 %v2482, 126
    %v2487 = vpop.permute.xlu0 %2486
    %2488 = vrot.lane.b32.xlu0 %v2483, 126
    %v2489 = vpop.permute.xlu0 %2488
    %v2492 = vadd.f32 %v2436, %v2487
    %v2493 = vadd.f32 %v2437, %v2489
    %s2494 = sld [smem:[#allocation11 + $0x53]]
    %v2495 = vstv %s2494
    %v2496 = vmul.f32 %v2495, %v2384
    %v2497 = vmul.f32 %v2495, %v2385
    %2500 = vrot.lane.b32.xlu0 %v2496, 126
    %v2501 = vpop.permute.xlu0 %2500
    %2502 = vrot.lane.b32.xlu0 %v2497, 126
    %v2503 = vpop.permute.xlu0 %2502
    %v2506 = vadd.f32 %v2450, %v2501
    %v2507 = vadd.f32 %v2451, %v2503
    %s2508 = sld [smem:[#allocation11 + $0x77]]
    %v2509 = vstv %s2508
    %v2510 = vmul.f32 %v2509, %v2384
    %v2511 = vmul.f32 %v2509, %v2385
    %2514 = vrot.lane.b32.xlu0 %v2510, 126
    %v2515 = vpop.permute.xlu0 %2514
    %2516 = vrot.lane.b32.xlu0 %v2511, 126
    %v2517 = vpop.permute.xlu0 %2516
    %v2520 = vadd.f32 %v2464, %v2515
    %v2521 = vadd.f32 %v2465, %v2517
    %v2522 = vld [vmem:[%s1921 + $0x1] sm:$0xff]
    %v2523 = vld [vmem:[%s1921 + $0x9] sm:$0xff]
    %s2524 = sld [smem:[#allocation11 + $0xc]]
    %v2525 = vstv %s2524
    %v2526 = vmul.f32 %v2525, %v2522
    %v2527 = vmul.f32 %v2525, %v2523
    %v2528 = vadd.f32 %v2478, %v2526
    %v2529 = vadd.f32 %v2479, %v2527
    %s2530 = sld [smem:[#allocation11 + $0x30]]
    %v2531 = vstv %s2530
    %v2532 = vmul.f32 %v2531, %v2522
    %v2533 = vmul.f32 %v2531, %v2523
    %v2534 = vadd.f32 %v2492, %v2532
    %v2535 = vadd.f32 %v2493, %v2533
    %s2536 = sld [smem:[#allocation11 + $0x54]]
    %v2537 = vstv %s2536
    %v2538 = vmul.f32 %v2537, %v2522
    %v2539 = vmul.f32 %v2537, %v2523
    %v2540 = vadd.f32 %v2506, %v2538
    %v2541 = vadd.f32 %v2507, %v2539
    %s2542 = sld [smem:[#allocation11 + $0x78]]
    %v2543 = vstv %s2542
    %v2544 = vmul.f32 %v2543, %v2522
    %v2545 = vmul.f32 %v2543, %v2523
    %v2546 = vadd.f32 %v2520, %v2544
    %v2547 = vadd.f32 %v2521, %v2545
    %s2548 = sld [smem:[#allocation11 + $0xd]]
    %v2549 = vstv %s2548
    %v2550 = vmul.f32 %v2549, %v2522
    %v2551 = vmul.f32 %v2549, %v2523
    %2554 = vrot.lane.b32.xlu0 %v2550, 127
    %v2555 = vpop.permute.xlu0 %2554
    %2556 = vrot.lane.b32.xlu0 %v2551, 127
    %v2557 = vpop.permute.xlu0 %2556
    %v2560 = vadd.f32 %v2528, %v2555
    %v2561 = vadd.f32 %v2529, %v2557
    %s2562 = sld [smem:[#allocation11 + $0x31]]
    %v2563 = vstv %s2562
    %v2564 = vmul.f32 %v2563, %v2522
    %v2565 = vmul.f32 %v2563, %v2523
    %2568 = vrot.lane.b32.xlu0 %v2564, 127
    %v2569 = vpop.permute.xlu0 %2568
    %2570 = vrot.lane.b32.xlu0 %v2565, 127
    %v2571 = vpop.permute.xlu0 %2570
    %v2574 = vadd.f32 %v2534, %v2569
    %v2575 = vadd.f32 %v2535, %v2571
    %s2576 = sld [smem:[#allocation11 + $0x55]]
    %v2577 = vstv %s2576
    %v2578 = vmul.f32 %v2577, %v2522
    %v2579 = vmul.f32 %v2577, %v2523
    %2582 = vrot.lane.b32.xlu0 %v2578, 127
    %v2583 = vpop.permute.xlu0 %2582
    %2584 = vrot.lane.b32.xlu0 %v2579, 127
    %v2585 = vpop.permute.xlu0 %2584
    %v2588 = vadd.f32 %v2540, %v2583
    %v2589 = vadd.f32 %v2541, %v2585
    %s2590 = sld [smem:[#allocation11 + $0x79]]
    %v2591 = vstv %s2590
    %v2592 = vmul.f32 %v2591, %v2522
    %v2593 = vmul.f32 %v2591, %v2523
    %2596 = vrot.lane.b32.xlu0 %v2592, 127
    %v2597 = vpop.permute.xlu0 %2596
    %2598 = vrot.lane.b32.xlu0 %v2593, 127
    %v2599 = vpop.permute.xlu0 %2598
    %v2602 = vadd.f32 %v2546, %v2597
    %v2603 = vadd.f32 %v2547, %v2599
    %s2604 = sld [smem:[#allocation11 + $0xe]]
    %v2605 = vstv %s2604
    %v2606 = vmul.f32 %v2605, %v2522
    %v2607 = vmul.f32 %v2605, %v2523
    %2610 = vrot.lane.b32.xlu0 %v2606, 126
    %v2611 = vpop.permute.xlu0 %2610
    %2612 = vrot.lane.b32.xlu0 %v2607, 126
    %v2613 = vpop.permute.xlu0 %2612
    %v2616 = vadd.f32 %v2560, %v2611
    %v2617 = vadd.f32 %v2561, %v2613
    %s2618 = sld [smem:[#allocation11 + $0x32]]
    %v2619 = vstv %s2618
    %v2620 = vmul.f32 %v2619, %v2522
    %v2621 = vmul.f32 %v2619, %v2523
    %2624 = vrot.lane.b32.xlu0 %v2620, 126
    %v2625 = vpop.permute.xlu0 %2624
    %2626 = vrot.lane.b32.xlu0 %v2621, 126
    %v2627 = vpop.permute.xlu0 %2626
    %v2630 = vadd.f32 %v2574, %v2625
    %v2631 = vadd.f32 %v2575, %v2627
    %s2632 = sld [smem:[#allocation11 + $0x56]]
    %v2633 = vstv %s2632
    %v2634 = vmul.f32 %v2633, %v2522
    %v2635 = vmul.f32 %v2633, %v2523
    %2638 = vrot.lane.b32.xlu0 %v2634, 126
    %v2639 = vpop.permute.xlu0 %2638
    %2640 = vrot.lane.b32.xlu0 %v2635, 126
    %v2641 = vpop.permute.xlu0 %2640
    %v2644 = vadd.f32 %v2588, %v2639
    %v2645 = vadd.f32 %v2589, %v2641
    %s2646 = sld [smem:[#allocation11 + $0x7a]]
    %v2647 = vstv %s2646
    %v2648 = vmul.f32 %v2647, %v2522
    %v2649 = vmul.f32 %v2647, %v2523
    %2652 = vrot.lane.b32.xlu0 %v2648, 126
    %v2653 = vpop.permute.xlu0 %2652
    %2654 = vrot.lane.b32.xlu0 %v2649, 126
    %v2655 = vpop.permute.xlu0 %2654
    %v2658 = vadd.f32 %v2602, %v2653
    %v2659 = vadd.f32 %v2603, %v2655
    %v2660 = vld [vmem:[%s1921 + $0x2] sm:$0xff]
    %v2661 = vld [vmem:[%s1921 + $0xa] sm:$0xff]
    %s2662 = sld [smem:[#allocation11 + $0xf]]
    %v2663 = vstv %s2662
    %v2664 = vmul.f32 %v2663, %v2660
    %v2665 = vmul.f32 %v2663, %v2661
    %v2666 = vadd.f32 %v2616, %v2664
    %v2667 = vadd.f32 %v2617, %v2665
    %s2668 = sld [smem:[#allocation11 + $0x33]]
    %v2669 = vstv %s2668
    %v2670 = vmul.f32 %v2669, %v2660
    %v2671 = vmul.f32 %v2669, %v2661
    %v2672 = vadd.f32 %v2630, %v2670
    %v2673 = vadd.f32 %v2631, %v2671
    %s2674 = sld [smem:[#allocation11 + $0x57]]
    %v2675 = vstv %s2674
    %v2676 = vmul.f32 %v2675, %v2660
    %v2677 = vmul.f32 %v2675, %v2661
    %v2678 = vadd.f32 %v2644, %v2676
    %v2679 = vadd.f32 %v2645, %v2677
    %s2680 = sld [smem:[#allocation11 + $0x7b]]
    %v2681 = vstv %s2680
    %v2682 = vmul.f32 %v2681, %v2660
    %v2683 = vmul.f32 %v2681, %v2661
    %v2684 = vadd.f32 %v2658, %v2682
    %v2685 = vadd.f32 %v2659, %v2683
    %s2686 = sld [smem:[#allocation11 + $0x10]]
    %v2687 = vstv %s2686
    %v2688 = vmul.f32 %v2687, %v2660
    %v2689 = vmul.f32 %v2687, %v2661
    %2692 = vrot.lane.b32.xlu0 %v2688, 127
    %v2693 = vpop.permute.xlu0 %2692
    %2694 = vrot.lane.b32.xlu0 %v2689, 127
    %v2695 = vpop.permute.xlu0 %2694
    %v2698 = vadd.f32 %v2666, %v2693
    %v2699 = vadd.f32 %v2667, %v2695
    %s2700 = sld [smem:[#allocation11 + $0x34]]
    %v2701 = vstv %s2700
    %v2702 = vmul.f32 %v2701, %v2660
    %v2703 = vmul.f32 %v2701, %v2661
    %2706 = vrot.lane.b32.xlu0 %v2702, 127
    %v2707 = vpop.permute.xlu0 %2706
    %2708 = vrot.lane.b32.xlu0 %v2703, 127
    %v2709 = vpop.permute.xlu0 %2708
    %v2712 = vadd.f32 %v2672, %v2707
    %v2713 = vadd.f32 %v2673, %v2709
    %s2714 = sld [smem:[#allocation11 + $0x58]]
    %v2715 = vstv %s2714
    %v2716 = vmul.f32 %v2715, %v2660
    %v2717 = vmul.f32 %v2715, %v2661
    %2720 = vrot.lane.b32.xlu0 %v2716, 127
    %v2721 = vpop.permute.xlu0 %2720
    %2722 = vrot.lane.b32.xlu0 %v2717, 127
    %v2723 = vpop.permute.xlu0 %2722
    %v2726 = vadd.f32 %v2678, %v2721
    %v2727 = vadd.f32 %v2679, %v2723
    %s2728 = sld [smem:[#allocation11 + $0x7c]]
    %v2729 = vstv %s2728
    %v2730 = vmul.f32 %v2729, %v2660
    %v2731 = vmul.f32 %v2729, %v2661
    %2734 = vrot.lane.b32.xlu0 %v2730, 127
    %v2735 = vpop.permute.xlu0 %2734
    %2736 = vrot.lane.b32.xlu0 %v2731, 127
    %v2737 = vpop.permute.xlu0 %2736
    %v2740 = vadd.f32 %v2684, %v2735
    %v2741 = vadd.f32 %v2685, %v2737
    %s2742 = sld [smem:[#allocation11 + $0x11]]
    %v2743 = vstv %s2742
    %v2744 = vmul.f32 %v2743, %v2660
    %v2745 = vmul.f32 %v2743, %v2661
    %2748 = vrot.lane.b32.xlu0 %v2744, 126
    %v2749 = vpop.permute.xlu0 %2748
    %2750 = vrot.lane.b32.xlu0 %v2745, 126
    %v2751 = vpop.permute.xlu0 %2750
    %v2754 = vadd.f32 %v2698, %v2749
    %v2755 = vadd.f32 %v2699, %v2751
    %s2756 = sld [smem:[#allocation11 + $0x35]]
    %v2757 = vstv %s2756
    %v2758 = vmul.f32 %v2757, %v2660
    %v2759 = vmul.f32 %v2757, %v2661
    %2762 = vrot.lane.b32.xlu0 %v2758, 126
    %v2763 = vpop.permute.xlu0 %2762
    %2764 = vrot.lane.b32.xlu0 %v2759, 126
    %v2765 = vpop.permute.xlu0 %2764
    %v2768 = vadd.f32 %v2712, %v2763
    %v2769 = vadd.f32 %v2713, %v2765
    %s2770 = sld [smem:[#allocation11 + $0x59]]
    %v2771 = vstv %s2770
    %v2772 = vmul.f32 %v2771, %v2660
    %v2773 = vmul.f32 %v2771, %v2661
    %2776 = vrot.lane.b32.xlu0 %v2772, 126
    %v2777 = vpop.permute.xlu0 %2776
    %2778 = vrot.lane.b32.xlu0 %v2773, 126
    %v2779 = vpop.permute.xlu0 %2778
    %v2782 = vadd.f32 %v2726, %v2777
    %v2783 = vadd.f32 %v2727, %v2779
    %s2784 = sld [smem:[#allocation11 + $0x7d]]
    %v2785 = vstv %s2784
    %v2786 = vmul.f32 %v2785, %v2660
    %v2787 = vmul.f32 %v2785, %v2661
    %2790 = vrot.lane.b32.xlu0 %v2786, 126
    %v2791 = vpop.permute.xlu0 %2790
    %2792 = vrot.lane.b32.xlu0 %v2787, 126
    %v2793 = vpop.permute.xlu0 %2792
    %v2796 = vadd.f32 %v2740, %v2791
    %v2797 = vadd.f32 %v2741, %v2793
    %v2798 = vld [vmem:[%s1944] sm:$0xff]
    %v2799 = vld [vmem:[%s1944 + $0x8] sm:$0xff]
    %s2800 = sld [smem:[#allocation11 + $0x12]]
    %v2801 = vstv %s2800
    %v2802 = vmul.f32 %v2801, %v2798
    %v2803 = vmul.f32 %v2801, %v2799
    %v2804 = vadd.f32 %v2754, %v2802
    %v2805 = vadd.f32 %v2755, %v2803
    %s2806 = sld [smem:[#allocation11 + $0x36]]
    %v2807 = vstv %s2806
    %v2808 = vmul.f32 %v2807, %v2798
    %v2809 = vmul.f32 %v2807, %v2799
    %v2810 = vadd.f32 %v2768, %v2808
    %v2811 = vadd.f32 %v2769, %v2809
    %s2812 = sld [smem:[#allocation11 + $0x5a]]
    %v2813 = vstv %s2812
    %v2814 = vmul.f32 %v2813, %v2798
    %v2815 = vmul.f32 %v2813, %v2799
    %v2816 = vadd.f32 %v2782, %v2814
    %v2817 = vadd.f32 %v2783, %v2815
    %s2818 = sld [smem:[#allocation11 + $0x7e]]
    %v2819 = vstv %s2818
    %v2820 = vmul.f32 %v2819, %v2798
    %v2821 = vmul.f32 %v2819, %v2799
    %v2822 = vadd.f32 %v2796, %v2820
    %v2823 = vadd.f32 %v2797, %v2821
    %s2824 = sld [smem:[#allocation11 + $0x13]]
    %v2825 = vstv %s2824
    %v2826 = vmul.f32 %v2825, %v2798
    %v2827 = vmul.f32 %v2825, %v2799
    %2830 = vrot.lane.b32.xlu0 %v2826, 127
    %v2831 = vpop.permute.xlu0 %2830
    %2832 = vrot.lane.b32.xlu0 %v2827, 127
    %v2833 = vpop.permute.xlu0 %2832
    %v2836 = vadd.f32 %v2804, %v2831
    %v2837 = vadd.f32 %v2805, %v2833
    %s2838 = sld [smem:[#allocation11 + $0x37]]
    %v2839 = vstv %s2838
    %v2840 = vmul.f32 %v2839, %v2798
    %v2841 = vmul.f32 %v2839, %v2799
    %2844 = vrot.lane.b32.xlu0 %v2840, 127
    %v2845 = vpop.permute.xlu0 %2844
    %2846 = vrot.lane.b32.xlu0 %v2841, 127
    %v2847 = vpop.permute.xlu0 %2846
    %v2850 = vadd.f32 %v2810, %v2845
    %v2851 = vadd.f32 %v2811, %v2847
    %s2852 = sld [smem:[#allocation11 + $0x5b]]
    %v2853 = vstv %s2852
    %v2854 = vmul.f32 %v2853, %v2798
    %v2855 = vmul.f32 %v2853, %v2799
    %2858 = vrot.lane.b32.xlu0 %v2854, 127
    %v2859 = vpop.permute.xlu0 %2858
    %2860 = vrot.lane.b32.xlu0 %v2855, 127
    %v2861 = vpop.permute.xlu0 %2860
    %v2864 = vadd.f32 %v2816, %v2859
    %v2865 = vadd.f32 %v2817, %v2861
    %s2866 = sld [smem:[#allocation11 + $0x7f]]
    %v2867 = vstv %s2866
    %v2868 = vmul.f32 %v2867, %v2798
    %v2869 = vmul.f32 %v2867, %v2799
    %2872 = vrot.lane.b32.xlu0 %v2868, 127
    %v2873 = vpop.permute.xlu0 %2872
    %2874 = vrot.lane.b32.xlu0 %v2869, 127
    %v2875 = vpop.permute.xlu0 %2874
    %v2878 = vadd.f32 %v2822, %v2873
    %v2879 = vadd.f32 %v2823, %v2875
    %s2880 = sld [smem:[#allocation11 + $0x14]]
    %v2881 = vstv %s2880
    %v2882 = vmul.f32 %v2881, %v2798
    %v2883 = vmul.f32 %v2881, %v2799
    %2886 = vrot.lane.b32.xlu0 %v2882, 126
    %v2887 = vpop.permute.xlu0 %2886
    %2888 = vrot.lane.b32.xlu0 %v2883, 126
    %v2889 = vpop.permute.xlu0 %2888
    %v2892 = vadd.f32 %v2836, %v2887
    %v2893 = vadd.f32 %v2837, %v2889
    %s2894 = sld [smem:[#allocation11 + $0x38]]
    %v2895 = vstv %s2894
    %v2896 = vmul.f32 %v2895, %v2798
    %v2897 = vmul.f32 %v2895, %v2799
    %2900 = vrot.lane.b32.xlu0 %v2896, 126
    %v2901 = vpop.permute.xlu0 %2900
    %2902 = vrot.lane.b32.xlu0 %v2897, 126
    %v2903 = vpop.permute.xlu0 %2902
    %v2906 = vadd.f32 %v2850, %v2901
    %v2907 = vadd.f32 %v2851, %v2903
    %s2908 = sld [smem:[#allocation11 + $0x5c]]
    %v2909 = vstv %s2908
    %v2910 = vmul.f32 %v2909, %v2798
    %v2911 = vmul.f32 %v2909, %v2799
    %2914 = vrot.lane.b32.xlu0 %v2910, 126
    %v2915 = vpop.permute.xlu0 %2914
    %2916 = vrot.lane.b32.xlu0 %v2911, 126
    %v2917 = vpop.permute.xlu0 %2916
    %v2920 = vadd.f32 %v2864, %v2915
    %v2921 = vadd.f32 %v2865, %v2917
    %s2922 = sld [smem:[#allocation11 + $0x80]]
    %v2923 = vstv %s2922
    %v2924 = vmul.f32 %v2923, %v2798
    %v2925 = vmul.f32 %v2923, %v2799
    %2928 = vrot.lane.b32.xlu0 %v2924, 126
    %v2929 = vpop.permute.xlu0 %2928
    %2930 = vrot.lane.b32.xlu0 %v2925, 126
    %v2931 = vpop.permute.xlu0 %2930
    %v2934 = vadd.f32 %v2878, %v2929
    %v2935 = vadd.f32 %v2879, %v2931
    %v2936 = vld [vmem:[%s1944 + $0x1] sm:$0xff]
    %v2937 = vld [vmem:[%s1944 + $0x9] sm:$0xff]
    %s2938 = sld [smem:[#allocation11 + $0x15]]
    %v2939 = vstv %s2938
    %v2940 = vmul.f32 %v2939, %v2936
    %v2941 = vmul.f32 %v2939, %v2937
    %v2942 = vadd.f32 %v2892, %v2940
    %v2943 = vadd.f32 %v2893, %v2941
    %s2944 = sld [smem:[#allocation11 + $0x39]]
    %v2945 = vstv %s2944
    %v2946 = vmul.f32 %v2945, %v2936
    %v2947 = vmul.f32 %v2945, %v2937
    %v2948 = vadd.f32 %v2906, %v2946
    %v2949 = vadd.f32 %v2907, %v2947
    %s2950 = sld [smem:[#allocation11 + $0x5d]]
    %v2951 = vstv %s2950
    %v2952 = vmul.f32 %v2951, %v2936
    %v2953 = vmul.f32 %v2951, %v2937
    %v2954 = vadd.f32 %v2920, %v2952
    %v2955 = vadd.f32 %v2921, %v2953
    %s2956 = sld [smem:[#allocation11 + $0x81]]
    %v2957 = vstv %s2956
    %v2958 = vmul.f32 %v2957, %v2936
    %v2959 = vmul.f32 %v2957, %v2937
    %v2960 = vadd.f32 %v2934, %v2958
    %v2961 = vadd.f32 %v2935, %v2959
    %s2962 = sld [smem:[#allocation11 + $0x16]]
    %v2963 = vstv %s2962
    %v2964 = vmul.f32 %v2963, %v2936
    %v2965 = vmul.f32 %v2963, %v2937
    %2968 = vrot.lane.b32.xlu0 %v2964, 127
    %v2969 = vpop.permute.xlu0 %2968
    %2970 = vrot.lane.b32.xlu0 %v2965, 127
    %v2971 = vpop.permute.xlu0 %2970
    %v2974 = vadd.f32 %v2942, %v2969
    %v2975 = vadd.f32 %v2943, %v2971
    %s2976 = sld [smem:[#allocation11 + $0x3a]]
    %v2977 = vstv %s2976
    %v2978 = vmul.f32 %v2977, %v2936
    %v2979 = vmul.f32 %v2977, %v2937
    %2982 = vrot.lane.b32.xlu0 %v2978, 127
    %v2983 = vpop.permute.xlu0 %2982
    %2984 = vrot.lane.b32.xlu0 %v2979, 127
    %v2985 = vpop.permute.xlu0 %2984
    %v2988 = vadd.f32 %v2948, %v2983
    %v2989 = vadd.f32 %v2949, %v2985
    %s2990 = sld [smem:[#allocation11 + $0x5e]]
    %v2991 = vstv %s2990
    %v2992 = vmul.f32 %v2991, %v2936
    %v2993 = vmul.f32 %v2991, %v2937
    %2996 = vrot.lane.b32.xlu0 %v2992, 127
    %v2997 = vpop.permute.xlu0 %2996
    %2998 = vrot.lane.b32.xlu0 %v2993, 127
    %v2999 = vpop.permute.xlu0 %2998
    %v3002 = vadd.f32 %v2954, %v2997
    %v3003 = vadd.f32 %v2955, %v2999
    %s3004 = sld [smem:[#allocation11 + $0x82]]
    %v3005 = vstv %s3004
    %v3006 = vmul.f32 %v3005, %v2936
    %v3007 = vmul.f32 %v3005, %v2937
    %3010 = vrot.lane.b32.xlu0 %v3006, 127
    %v3011 = vpop.permute.xlu0 %3010
    %3012 = vrot.lane.b32.xlu0 %v3007, 127
    %v3013 = vpop.permute.xlu0 %3012
    %v3016 = vadd.f32 %v2960, %v3011
    %v3017 = vadd.f32 %v2961, %v3013
    %s3018 = sld [smem:[#allocation11 + $0x17]]
    %v3019 = vstv %s3018
    %v3020 = vmul.f32 %v3019, %v2936
    %v3021 = vmul.f32 %v3019, %v2937
    %3024 = vrot.lane.b32.xlu0 %v3020, 126
    %v3025 = vpop.permute.xlu0 %3024
    %3026 = vrot.lane.b32.xlu0 %v3021, 126
    %v3027 = vpop.permute.xlu0 %3026
    %v3030 = vadd.f32 %v2974, %v3025
    %v3031 = vadd.f32 %v2975, %v3027
    %s3032 = sld [smem:[#allocation11 + $0x3b]]
    %v3033 = vstv %s3032
    %v3034 = vmul.f32 %v3033, %v2936
    %v3035 = vmul.f32 %v3033, %v2937
    %3038 = vrot.lane.b32.xlu0 %v3034, 126
    %v3039 = vpop.permute.xlu0 %3038
    %3040 = vrot.lane.b32.xlu0 %v3035, 126
    %v3041 = vpop.permute.xlu0 %3040
    %v3044 = vadd.f32 %v2988, %v3039
    %v3045 = vadd.f32 %v2989, %v3041
    %s3046 = sld [smem:[#allocation11 + $0x5f]]
    %v3047 = vstv %s3046
    %v3048 = vmul.f32 %v3047, %v2936
    %v3049 = vmul.f32 %v3047, %v2937
    %3052 = vrot.lane.b32.xlu0 %v3048, 126
    %v3053 = vpop.permute.xlu0 %3052
    %3054 = vrot.lane.b32.xlu0 %v3049, 126
    %v3055 = vpop.permute.xlu0 %3054
    %v3058 = vadd.f32 %v3002, %v3053
    %v3059 = vadd.f32 %v3003, %v3055
    %s3060 = sld [smem:[#allocation11 + $0x83]]
    %v3061 = vstv %s3060
    %v3062 = vmul.f32 %v3061, %v2936
    %v3063 = vmul.f32 %v3061, %v2937
    %3066 = vrot.lane.b32.xlu0 %v3062, 126
    %v3067 = vpop.permute.xlu0 %3066
    %3068 = vrot.lane.b32.xlu0 %v3063, 126
    %v3069 = vpop.permute.xlu0 %3068
    %v3072 = vadd.f32 %v3016, %v3067
    %v3073 = vadd.f32 %v3017, %v3069
    %v3074 = vld [vmem:[%s1944 + $0x2] sm:$0xff]
    %v3075 = vld [vmem:[%s1944 + $0xa] sm:$0xff]
    %s3076 = sld [smem:[#allocation11 + $0x18]]
    %v3077 = vstv %s3076
    %v3078 = vmul.f32 %v3077, %v3074
    %v3079 = vmul.f32 %v3077, %v3075
    %v3080 = vadd.f32 %v3030, %v3078
    %v3081 = vadd.f32 %v3031, %v3079
    %s3082 = sld [smem:[#allocation11 + $0x3c]]
    %v3083 = vstv %s3082
    %v3084 = vmul.f32 %v3083, %v3074
    %v3085 = vmul.f32 %v3083, %v3075
    %v3086 = vadd.f32 %v3044, %v3084
    %v3087 = vadd.f32 %v3045, %v3085
    %s3088 = sld [smem:[#allocation11 + $0x60]]
    %v3089 = vstv %s3088
    %v3090 = vmul.f32 %v3089, %v3074
    %v3091 = vmul.f32 %v3089, %v3075
    %v3092 = vadd.f32 %v3058, %v3090
    %v3093 = vadd.f32 %v3059, %v3091
    %s3094 = sld [smem:[#allocation11 + $0x84]]
    %v3095 = vstv %s3094
    %v3096 = vmul.f32 %v3095, %v3074
    %v3097 = vmul.f32 %v3095, %v3075
    %v3098 = vadd.f32 %v3072, %v3096
    %v3099 = vadd.f32 %v3073, %v3097
    %s3100 = sld [smem:[#allocation11 + $0x19]]
    %v3101 = vstv %s3100
    %v3102 = vmul.f32 %v3101, %v3074
    %v3103 = vmul.f32 %v3101, %v3075
    %3106 = vrot.lane.b32.xlu0 %v3102, 127
    %v3107 = vpop.permute.xlu0 %3106
    %3108 = vrot.lane.b32.xlu0 %v3103, 127
    %v3109 = vpop.permute.xlu0 %3108
    %v3112 = vadd.f32 %v3080, %v3107
    %v3113 = vadd.f32 %v3081, %v3109
    %s3114 = sld [smem:[#allocation11 + $0x3d]]
    %v3115 = vstv %s3114
    %v3116 = vmul.f32 %v3115, %v3074
    %v3117 = vmul.f32 %v3115, %v3075
    %3120 = vrot.lane.b32.xlu0 %v3116, 127
    %v3121 = vpop.permute.xlu0 %3120
    %3122 = vrot.lane.b32.xlu0 %v3117, 127
    %v3123 = vpop.permute.xlu0 %3122
    %v3126 = vadd.f32 %v3086, %v3121
    %v3127 = vadd.f32 %v3087, %v3123
    %s3128 = sld [smem:[#allocation11 + $0x61]]
    %v3129 = vstv %s3128
    %v3130 = vmul.f32 %v3129, %v3074
    %v3131 = vmul.f32 %v3129, %v3075
    %3134 = vrot.lane.b32.xlu0 %v3130, 127
    %v3135 = vpop.permute.xlu0 %3134
    %3136 = vrot.lane.b32.xlu0 %v3131, 127
    %v3137 = vpop.permute.xlu0 %3136
    %v3140 = vadd.f32 %v3092, %v3135
    %v3141 = vadd.f32 %v3093, %v3137
    %s3142 = sld [smem:[#allocation11 + $0x85]]
    %v3143 = vstv %s3142
    %v3144 = vmul.f32 %v3143, %v3074
    %v3145 = vmul.f32 %v3143, %v3075
    %3148 = vrot.lane.b32.xlu0 %v3144, 127
    %v3149 = vpop.permute.xlu0 %3148
    %3150 = vrot.lane.b32.xlu0 %v3145, 127
    %v3151 = vpop.permute.xlu0 %3150
    %v3154 = vadd.f32 %v3098, %v3149
    %v3155 = vadd.f32 %v3099, %v3151
    %s3156 = sld [smem:[#allocation11 + $0x1a]]
    %v3157 = vstv %s3156
    %v3158 = vmul.f32 %v3157, %v3074
    %v3159 = vmul.f32 %v3157, %v3075
    %3162 = vrot.lane.b32.xlu0 %v3158, 126
    %v3163 = vpop.permute.xlu0 %3162
    %3164 = vrot.lane.b32.xlu0 %v3159, 126
    %v3165 = vpop.permute.xlu0 %3164
    %v3168 = vadd.f32 %v3112, %v3163
    %v3169 = vadd.f32 %v3113, %v3165
    %s3170 = sld [smem:[#allocation11 + $0x3e]]
    %v3171 = vstv %s3170
    %v3172 = vmul.f32 %v3171, %v3074
    %v3173 = vmul.f32 %v3171, %v3075
    %3176 = vrot.lane.b32.xlu0 %v3172, 126
    %v3177 = vpop.permute.xlu0 %3176
    %3178 = vrot.lane.b32.xlu0 %v3173, 126
    %v3179 = vpop.permute.xlu0 %3178
    %v3182 = vadd.f32 %v3126, %v3177
    %v3183 = vadd.f32 %v3127, %v3179
    %s3184 = sld [smem:[#allocation11 + $0x62]]
    %v3185 = vstv %s3184
    %v3186 = vmul.f32 %v3185, %v3074
    %v3187 = vmul.f32 %v3185, %v3075
    %3190 = vrot.lane.b32.xlu0 %v3186, 126
    %v3191 = vpop.permute.xlu0 %3190
    %3192 = vrot.lane.b32.xlu0 %v3187, 126
    %v3193 = vpop.permute.xlu0 %3192
    %v3196 = vadd.f32 %v3140, %v3191
    %v3197 = vadd.f32 %v3141, %v3193
    %s3198 = sld [smem:[#allocation11 + $0x86]]
    %v3199 = vstv %s3198
    %v3200 = vmul.f32 %v3199, %v3074
    %v3201 = vmul.f32 %v3199, %v3075
    %3204 = vrot.lane.b32.xlu0 %v3200, 126
    %v3205 = vpop.permute.xlu0 %3204
    %3206 = vrot.lane.b32.xlu0 %v3201, 126
    %v3207 = vpop.permute.xlu0 %3206
    %v3210 = vadd.f32 %v3154, %v3205
    %v3211 = vadd.f32 %v3155, %v3207
    %v3212 = vld [vmem:[%s1967] sm:$0xff]
    %v3213 = vld [vmem:[%s1967 + $0x8] sm:$0xff]
    %s3214 = sld [smem:[#allocation11 + $0x1b]]
    %v3215 = vstv %s3214
    %v3216 = vmul.f32 %v3215, %v3212
    %v3217 = vmul.f32 %v3215, %v3213
    %v3218 = vadd.f32 %v3168, %v3216
    %v3219 = vadd.f32 %v3169, %v3217
    %s3220 = sld [smem:[#allocation11 + $0x3f]]
    %v3221 = vstv %s3220
    %v3222 = vmul.f32 %v3221, %v3212
    %v3223 = vmul.f32 %v3221, %v3213
    %v3224 = vadd.f32 %v3182, %v3222
    %v3225 = vadd.f32 %v3183, %v3223
    %s3226 = sld [smem:[#allocation11 + $0x63]]
    %v3227 = vstv %s3226
    %v3228 = vmul.f32 %v3227, %v3212
    %v3229 = vmul.f32 %v3227, %v3213
    %v3230 = vadd.f32 %v3196, %v3228
    %v3231 = vadd.f32 %v3197, %v3229
    %s3232 = sld [smem:[#allocation11 + $0x87]]
    %v3233 = vstv %s3232
    %v3234 = vmul.f32 %v3233, %v3212
    %v3235 = vmul.f32 %v3233, %v3213
    %v3236 = vadd.f32 %v3210, %v3234
    %v3237 = vadd.f32 %v3211, %v3235
    %s3238 = sld [smem:[#allocation11 + $0x1c]]
    %v3239 = vstv %s3238
    %v3240 = vmul.f32 %v3239, %v3212
    %v3241 = vmul.f32 %v3239, %v3213
    %3244 = vrot.lane.b32.xlu0 %v3240, 127
    %v3245 = vpop.permute.xlu0 %3244
    %3246 = vrot.lane.b32.xlu0 %v3241, 127
    %v3247 = vpop.permute.xlu0 %3246
    %v3250 = vadd.f32 %v3218, %v3245
    %v3251 = vadd.f32 %v3219, %v3247
    %s3252 = sld [smem:[#allocation11 + $0x40]]
    %v3253 = vstv %s3252
    %v3254 = vmul.f32 %v3253, %v3212
    %v3255 = vmul.f32 %v3253, %v3213
    %3258 = vrot.lane.b32.xlu0 %v3254, 127
    %v3259 = vpop.permute.xlu0 %3258
    %3260 = vrot.lane.b32.xlu0 %v3255, 127
    %v3261 = vpop.permute.xlu0 %3260
    %v3264 = vadd.f32 %v3224, %v3259
    %v3265 = vadd.f32 %v3225, %v3261
    %s3266 = sld [smem:[#allocation11 + $0x64]]
    %v3267 = vstv %s3266
    %v3268 = vmul.f32 %v3267, %v3212
    %v3269 = vmul.f32 %v3267, %v3213
    %3272 = vrot.lane.b32.xlu0 %v3268, 127
    %v3273 = vpop.permute.xlu0 %3272
    %3274 = vrot.lane.b32.xlu0 %v3269, 127
    %v3275 = vpop.permute.xlu0 %3274
    %v3278 = vadd.f32 %v3230, %v3273
    %v3279 = vadd.f32 %v3231, %v3275
    %s3280 = sld [smem:[#allocation11 + $0x88]]
    %v3281 = vstv %s3280
    %v3282 = vmul.f32 %v3281, %v3212
    %v3283 = vmul.f32 %v3281, %v3213
    %3286 = vrot.lane.b32.xlu0 %v3282, 127
    %v3287 = vpop.permute.xlu0 %3286
    %3288 = vrot.lane.b32.xlu0 %v3283, 127
    %v3289 = vpop.permute.xlu0 %3288
    %v3292 = vadd.f32 %v3236, %v3287
    %v3293 = vadd.f32 %v3237, %v3289
    %s3294 = sld [smem:[#allocation11 + $0x1d]]
    %v3295 = vstv %s3294
    %v3296 = vmul.f32 %v3295, %v3212
    %v3297 = vmul.f32 %v3295, %v3213
    %3300 = vrot.lane.b32.xlu0 %v3296, 126
    %v3301 = vpop.permute.xlu0 %3300
    %3302 = vrot.lane.b32.xlu0 %v3297, 126
    %v3303 = vpop.permute.xlu0 %3302
    %v3306 = vadd.f32 %v3250, %v3301
    %v3307 = vadd.f32 %v3251, %v3303
    %s3308 = sld [smem:[#allocation11 + $0x41]]
    %v3309 = vstv %s3308
    %v3310 = vmul.f32 %v3309, %v3212
    %v3311 = vmul.f32 %v3309, %v3213
    %3314 = vrot.lane.b32.xlu0 %v3310, 126
    %v3315 = vpop.permute.xlu0 %3314
    %3316 = vrot.lane.b32.xlu0 %v3311, 126
    %v3317 = vpop.permute.xlu0 %3316
    %v3320 = vadd.f32 %v3264, %v3315
    %v3321 = vadd.f32 %v3265, %v3317
    %s3322 = sld [smem:[#allocation11 + $0x65]]
    %v3323 = vstv %s3322
    %v3324 = vmul.f32 %v3323, %v3212
    %v3325 = vmul.f32 %v3323, %v3213
    %3328 = vrot.lane.b32.xlu0 %v3324, 126
    %v3329 = vpop.permute.xlu0 %3328
    %3330 = vrot.lane.b32.xlu0 %v3325, 126
    %v3331 = vpop.permute.xlu0 %3330
    %v3334 = vadd.f32 %v3278, %v3329
    %v3335 = vadd.f32 %v3279, %v3331
    %s3336 = sld [smem:[#allocation11 + $0x89]]
    %v3337 = vstv %s3336
    %v3338 = vmul.f32 %v3337, %v3212
    %v3339 = vmul.f32 %v3337, %v3213
    %3342 = vrot.lane.b32.xlu0 %v3338, 126
    %v3343 = vpop.permute.xlu0 %3342
    %3344 = vrot.lane.b32.xlu0 %v3339, 126
    %v3345 = vpop.permute.xlu0 %3344
    %v3348 = vadd.f32 %v3292, %v3343
    %v3349 = vadd.f32 %v3293, %v3345
    %v3350 = vld [vmem:[%s1967 + $0x1] sm:$0xff]
    %v3351 = vld [vmem:[%s1967 + $0x9] sm:$0xff]
    %s3352 = sld [smem:[#allocation11 + $0x1e]]
    %v3353 = vstv %s3352
    %v3354 = vmul.f32 %v3353, %v3350
    %v3355 = vmul.f32 %v3353, %v3351
    %v3356 = vadd.f32 %v3306, %v3354
    %v3357 = vadd.f32 %v3307, %v3355
    %s3358 = sld [smem:[#allocation11 + $0x42]]
    %v3359 = vstv %s3358
    %v3360 = vmul.f32 %v3359, %v3350
    %v3361 = vmul.f32 %v3359, %v3351
    %v3362 = vadd.f32 %v3320, %v3360
    %v3363 = vadd.f32 %v3321, %v3361
    %s3364 = sld [smem:[#allocation11 + $0x66]]
    %v3365 = vstv %s3364
    %v3366 = vmul.f32 %v3365, %v3350
    %v3367 = vmul.f32 %v3365, %v3351
    %v3368 = vadd.f32 %v3334, %v3366
    %v3369 = vadd.f32 %v3335, %v3367
    %s3370 = sld [smem:[#allocation11 + $0x8a]]
    %v3371 = vstv %s3370
    %v3372 = vmul.f32 %v3371, %v3350
    %v3373 = vmul.f32 %v3371, %v3351
    %v3374 = vadd.f32 %v3348, %v3372
    %v3375 = vadd.f32 %v3349, %v3373
    %s3376 = sld [smem:[#allocation11 + $0x1f]]
    %v3377 = vstv %s3376
    %v3378 = vmul.f32 %v3377, %v3350
    %v3379 = vmul.f32 %v3377, %v3351
    %3382 = vrot.lane.b32.xlu0 %v3378, 127
    %v3383 = vpop.permute.xlu0 %3382
    %3384 = vrot.lane.b32.xlu0 %v3379, 127
    %v3385 = vpop.permute.xlu0 %3384
    %v3388 = vadd.f32 %v3356, %v3383
    %v3389 = vadd.f32 %v3357, %v3385
    %s3390 = sld [smem:[#allocation11 + $0x43]]
    %v3391 = vstv %s3390
    %v3392 = vmul.f32 %v3391, %v3350
    %v3393 = vmul.f32 %v3391, %v3351
    %3396 = vrot.lane.b32.xlu0 %v3392, 127
    %v3397 = vpop.permute.xlu0 %3396
    %3398 = vrot.lane.b32.xlu0 %v3393, 127
    %v3399 = vpop.permute.xlu0 %3398
    %v3402 = vadd.f32 %v3362, %v3397
    %v3403 = vadd.f32 %v3363, %v3399
    %s3404 = sld [smem:[#allocation11 + $0x67]]
    %v3405 = vstv %s3404
    %v3406 = vmul.f32 %v3405, %v3350
    %v3407 = vmul.f32 %v3405, %v3351
    %3410 = vrot.lane.b32.xlu0 %v3406, 127
    %v3411 = vpop.permute.xlu0 %3410
    %3412 = vrot.lane.b32.xlu0 %v3407, 127
    %v3413 = vpop.permute.xlu0 %3412
    %v3416 = vadd.f32 %v3368, %v3411
    %v3417 = vadd.f32 %v3369, %v3413
    %s3418 = sld [smem:[#allocation11 + $0x8b]]
    %v3419 = vstv %s3418
    %v3420 = vmul.f32 %v3419, %v3350
    %v3421 = vmul.f32 %v3419, %v3351
    %3424 = vrot.lane.b32.xlu0 %v3420, 127
    %v3425 = vpop.permute.xlu0 %3424
    %3426 = vrot.lane.b32.xlu0 %v3421, 127
    %v3427 = vpop.permute.xlu0 %3426
    %v3430 = vadd.f32 %v3374, %v3425
    %v3431 = vadd.f32 %v3375, %v3427
    %s3432 = sld [smem:[#allocation11 + $0x20]]
    %v3433 = vstv %s3432
    %v3434 = vmul.f32 %v3433, %v3350
    %v3435 = vmul.f32 %v3433, %v3351
    %3438 = vrot.lane.b32.xlu0 %v3434, 126
    %v3439 = vpop.permute.xlu0 %3438
    %3440 = vrot.lane.b32.xlu0 %v3435, 126
    %v3441 = vpop.permute.xlu0 %3440
    %v3444 = vadd.f32 %v3388, %v3439
    %v3445 = vadd.f32 %v3389, %v3441
    %s3446 = sld [smem:[#allocation11 + $0x44]]
    %v3447 = vstv %s3446
    %v3448 = vmul.f32 %v3447, %v3350
    %v3449 = vmul.f32 %v3447, %v3351
    %3452 = vrot.lane.b32.xlu0 %v3448, 126
    %v3453 = vpop.permute.xlu0 %3452
    %3454 = vrot.lane.b32.xlu0 %v3449, 126
    %v3455 = vpop.permute.xlu0 %3454
    %v3458 = vadd.f32 %v3402, %v3453
    %v3459 = vadd.f32 %v3403, %v3455
    %s3460 = sld [smem:[#allocation11 + $0x68]]
    %v3461 = vstv %s3460
    %v3462 = vmul.f32 %v3461, %v3350
    %v3463 = vmul.f32 %v3461, %v3351
    %3466 = vrot.lane.b32.xlu0 %v3462, 126
    %v3467 = vpop.permute.xlu0 %3466
    %3468 = vrot.lane.b32.xlu0 %v3463, 126
    %v3469 = vpop.permute.xlu0 %3468
    %v3472 = vadd.f32 %v3416, %v3467
    %v3473 = vadd.f32 %v3417, %v3469
    %s3474 = sld [smem:[#allocation11 + $0x8c]]
    %v3475 = vstv %s3474
    %v3476 = vmul.f32 %v3475, %v3350
    %v3477 = vmul.f32 %v3475, %v3351
    %3480 = vrot.lane.b32.xlu0 %v3476, 126
    %v3481 = vpop.permute.xlu0 %3480
    %3482 = vrot.lane.b32.xlu0 %v3477, 126
    %v3483 = vpop.permute.xlu0 %3482
    %v3486 = vadd.f32 %v3430, %v3481
    %v3487 = vadd.f32 %v3431, %v3483
    %v3488 = vld [vmem:[%s1967 + $0x2] sm:$0xff]
    %v3489 = vld [vmem:[%s1967 + $0xa] sm:$0xff]
    %s3490 = sld [smem:[#allocation11 + $0x21]]
    %v3491 = vstv %s3490
    %v3492 = vmul.f32 %v3491, %v3488
    %v3493 = vmul.f32 %v3491, %v3489
    %v3494 = vadd.f32 %v3444, %v3492
    %v3495 = vadd.f32 %v3445, %v3493
    %s3496 = sld [smem:[#allocation11 + $0x45]]
    %v3497 = vstv %s3496
    %v3498 = vmul.f32 %v3497, %v3488
    %v3499 = vmul.f32 %v3497, %v3489
    %v3500 = vadd.f32 %v3458, %v3498
    %v3501 = vadd.f32 %v3459, %v3499
    %s3502 = sld [smem:[#allocation11 + $0x69]]
    %v3503 = vstv %s3502
    %v3504 = vmul.f32 %v3503, %v3488
    %v3505 = vmul.f32 %v3503, %v3489
    %v3506 = vadd.f32 %v3472, %v3504
    %v3507 = vadd.f32 %v3473, %v3505
    %s3508 = sld [smem:[#allocation11 + $0x8d]]
    %v3509 = vstv %s3508
    %v3510 = vmul.f32 %v3509, %v3488
    %v3511 = vmul.f32 %v3509, %v3489
    %v3512 = vadd.f32 %v3486, %v3510
    %v3513 = vadd.f32 %v3487, %v3511
    %s3514 = sld [smem:[#allocation11 + $0x22]]
    %v3515 = vstv %s3514
    %v3516 = vmul.f32 %v3515, %v3488
    %v3517 = vmul.f32 %v3515, %v3489
    %3520 = vrot.lane.b32.xlu0 %v3516, 127
    %v3521 = vpop.permute.xlu0 %3520
    %3522 = vrot.lane.b32.xlu0 %v3517, 127
    %v3523 = vpop.permute.xlu0 %3522
    %v3526 = vadd.f32 %v3494, %v3521
    %v3527 = vadd.f32 %v3495, %v3523
    %s3528 = sld [smem:[#allocation11 + $0x46]]
    %v3529 = vstv %s3528
    %v3530 = vmul.f32 %v3529, %v3488
    %v3531 = vmul.f32 %v3529, %v3489
    %3534 = vrot.lane.b32.xlu0 %v3530, 127
    %v3535 = vpop.permute.xlu0 %3534
    %3536 = vrot.lane.b32.xlu0 %v3531, 127
    %v3537 = vpop.permute.xlu0 %3536
    %v3540 = vadd.f32 %v3500, %v3535
    %v3541 = vadd.f32 %v3501, %v3537
    %s3542 = sld [smem:[#allocation11 + $0x6a]]
    %v3543 = vstv %s3542
    %v3544 = vmul.f32 %v3543, %v3488
    %v3545 = vmul.f32 %v3543, %v3489
    %3548 = vrot.lane.b32.xlu0 %v3544, 127
    %v3549 = vpop.permute.xlu0 %3548
    %3550 = vrot.lane.b32.xlu0 %v3545, 127
    %v3551 = vpop.permute.xlu0 %3550
    %v3554 = vadd.f32 %v3506, %v3549
    %v3555 = vadd.f32 %v3507, %v3551
    %s3556 = sld [smem:[#allocation11 + $0x8e]]
    %v3557 = vstv %s3556
    %v3558 = vmul.f32 %v3557, %v3488
    %v3559 = vmul.f32 %v3557, %v3489
    %3562 = vrot.lane.b32.xlu0 %v3558, 127
    %v3563 = vpop.permute.xlu0 %3562
    %3564 = vrot.lane.b32.xlu0 %v3559, 127
    %v3565 = vpop.permute.xlu0 %3564
    %v3568 = vadd.f32 %v3512, %v3563
    %v3569 = vadd.f32 %v3513, %v3565
    %s3570 = sld [smem:[#allocation11 + $0x23]]
    %v3571 = vstv %s3570
    %v3572 = vmul.f32 %v3571, %v3488
    %v3573 = vmul.f32 %v3571, %v3489
    %3576 = vrot.lane.b32.xlu0 %v3572, 126
    %v3577 = vpop.permute.xlu0 %3576
    %3578 = vrot.lane.b32.xlu0 %v3573, 126
    %v3579 = vpop.permute.xlu0 %3578
    %v3582 = vadd.f32 %v3526, %v3577
    %v3583 = vadd.f32 %v3527, %v3579
    %s3584 = sld [smem:[#allocation11 + $0x47]]
    %v3585 = vstv %s3584
    %v3586 = vmul.f32 %v3585, %v3488
    %v3587 = vmul.f32 %v3585, %v3489
    %3590 = vrot.lane.b32.xlu0 %v3586, 126
    %v3591 = vpop.permute.xlu0 %3590
    %3592 = vrot.lane.b32.xlu0 %v3587, 126
    %v3593 = vpop.permute.xlu0 %3592
    %v3596 = vadd.f32 %v3540, %v3591
    %v3597 = vadd.f32 %v3541, %v3593
    %s3598 = sld [smem:[#allocation11 + $0x6b]]
    %v3599 = vstv %s3598
    %v3600 = vmul.f32 %v3599, %v3488
    %v3601 = vmul.f32 %v3599, %v3489
    %3604 = vrot.lane.b32.xlu0 %v3600, 126
    %v3605 = vpop.permute.xlu0 %3604
    %3606 = vrot.lane.b32.xlu0 %v3601, 126
    %v3607 = vpop.permute.xlu0 %3606
    %v3610 = vadd.f32 %v3554, %v3605
    %v3611 = vadd.f32 %v3555, %v3607
    %s3612 = sld [smem:[#allocation11 + $0x8f]]
    %v3613 = vstv %s3612
    %v3614 = vmul.f32 %v3613, %v3488
    %v3615 = vmul.f32 %v3613, %v3489
    %3618 = vrot.lane.b32.xlu0 %v3614, 126
    %v3619 = vpop.permute.xlu0 %3618
    %3620 = vrot.lane.b32.xlu0 %v3615, 126
    %v3621 = vpop.permute.xlu0 %3620
    %v3624 = vadd.f32 %v3568, %v3619
    %v3625 = vadd.f32 %v3569, %v3621
    %v3626 = vld [vmem:[#allocation2 + $0x1] sm:$0xff]
    %v3627 = vld [vmem:[#allocation2 + $0x9] sm:$0xff]
    %s3628 = sld [smem:[#allocation12]]
    %v3629 = vstv %s3628
    %v3630 = vadd.f32 %v3582, %v3629
    %v3631 = vadd.f32 %v3583, %v3629
    %3634 = vrot.lane.b32.xlu0 %v3626, 127
    %v3635 = vpop.permute.xlu0 %3634
    %3636 = vrot.lane.b32.xlu0 %v3627, 127
    %v3637 = vpop.permute.xlu0 %3636
    %v3640 = vadd.f32 %v3630, %v3635
    %v3641 = vadd.f32 %v3631, %v3637
    %vm3642 = vcmp.ge.f32.partialorder %v3640, 0.0
    %vm3643 = vcmp.ge.f32.partialorder %v3641, 0.0
    %v3644 = vmul.f32 %v3640, 0.01
    %v3645 = vmul.f32 %v3641, 0.01
    %v3646 = vsel %vm3642, %v3640, %v3644
    %v3647 = vsel %vm3643, %v3641, %v3645
    %3650 = vrot.lane.b32.xlu0 %v3646, 127
    %v3651 = vpop.permute.xlu0 %3650
    %3652 = vrot.lane.b32.xlu0 %v3647, 127
    %v3653 = vpop.permute.xlu0 %3652
    %vm3656 = vcmask 130048
    %3657 = vst.msk [vmem:[#allocation14] sm:$0xff] %vm3656, %v3651
    %3658 = vst.msk [vmem:[#allocation14 + $0x8] sm:$0xff] %vm3656, %v3653
    %3659 = vrot.lane.b32.xlu0 %v3646, 109
    %v3660 = vpop.permute.xlu0 %3659
    %3661 = vrot.lane.b32.xlu0 %v3647, 109
    %v3662 = vpop.permute.xlu0 %3661
    %s3665 = scalar_lea.vmem [#allocation14], 64
    %3666 = vst.msk [vmem:[%s3665] sm:$0xff] %vm3656, %v3660
    %3667 = vst.msk [vmem:[%s3665 + $0x8] sm:$0xff] %vm3656, %v3662
    %v3668 = vld [vmem:[%s631 + $0x1] sm:$0xff]
    %v3669 = vld [vmem:[%s631 + $0x9] sm:$0xff]
    %s3670 = sld [smem:[#allocation12 + $0x1]]
    %v3671 = vstv %s3670
    %v3672 = vadd.f32 %v3596, %v3671
    %v3673 = vadd.f32 %v3597, %v3671
    %3676 = vrot.lane.b32.xlu0 %v3668, 127
    %v3677 = vpop.permute.xlu0 %3676
    %3678 = vrot.lane.b32.xlu0 %v3669, 127
    %v3679 = vpop.permute.xlu0 %3678
    %v3682 = vadd.f32 %v3672, %v3677
    %v3683 = vadd.f32 %v3673, %v3679
    %vm3684 = vcmp.ge.f32.partialorder %v3682, 0.0
    %vm3685 = vcmp.ge.f32.partialorder %v3683, 0.0
    %v3686 = vmul.f32 %v3682, 0.01
    %v3687 = vmul.f32 %v3683, 0.01
    %v3688 = vsel %vm3684, %v3682, %v3686
    %v3689 = vsel %vm3685, %v3683, %v3687
    %3692 = vrot.lane.b32.xlu0 %v3688, 127
    %v3693 = vpop.permute.xlu0 %3692
    %3694 = vrot.lane.b32.xlu0 %v3689, 127
    %v3695 = vpop.permute.xlu0 %3694
    %s3698 = scalar_lea.vmem [#allocation14], 16
    %3699 = vst.msk [vmem:[%s3698] sm:$0xff] %vm3656, %v3693
    %3700 = vst.msk [vmem:[%s3698 + $0x8] sm:$0xff] %vm3656, %v3695
    %3701 = vrot.lane.b32.xlu0 %v3688, 109
    %v3702 = vpop.permute.xlu0 %3701
    %3703 = vrot.lane.b32.xlu0 %v3689, 109
    %v3704 = vpop.permute.xlu0 %3703
    %s3707 = scalar_lea.vmem [#allocation14], 80
    %3708 = vst.msk [vmem:[%s3707] sm:$0xff] %vm3656, %v3702
    %3709 = vst.msk [vmem:[%s3707 + $0x8] sm:$0xff] %vm3656, %v3704
    %v3710 = vld [vmem:[%s1046 + $0x1] sm:$0xff]
    %v3711 = vld [vmem:[%s1046 + $0x9] sm:$0xff]
    %s3712 = sld [smem:[#allocation12 + $0x2]]
    %v3713 = vstv %s3712
    %v3714 = vadd.f32 %v3610, %v3713
    %v3715 = vadd.f32 %v3611, %v3713
    %3718 = vrot.lane.b32.xlu0 %v3710, 127
    %v3719 = vpop.permute.xlu0 %3718
    %3720 = vrot.lane.b32.xlu0 %v3711, 127
    %v3721 = vpop.permute.xlu0 %3720
    %v3724 = vadd.f32 %v3714, %v3719
    %v3725 = vadd.f32 %v3715, %v3721
    %vm3726 = vcmp.ge.f32.partialorder %v3724, 0.0
    %vm3727 = vcmp.ge.f32.partialorder %v3725, 0.0
    %v3728 = vmul.f32 %v3724, 0.01
    %v3729 = vmul.f32 %v3725, 0.01
    %v3730 = vsel %vm3726, %v3724, %v3728
    %v3731 = vsel %vm3727, %v3725, %v3729
    %3734 = vrot.lane.b32.xlu0 %v3730, 127
    %v3735 = vpop.permute.xlu0 %3734
    %3736 = vrot.lane.b32.xlu0 %v3731, 127
    %v3737 = vpop.permute.xlu0 %3736
    %s3740 = scalar_lea.vmem [#allocation14], 32
    %3741 = vst.msk [vmem:[%s3740] sm:$0xff] %vm3656, %v3735
    %3742 = vst.msk [vmem:[%s3740 + $0x8] sm:$0xff] %vm3656, %v3737
    %3743 = vrot.lane.b32.xlu0 %v3730, 109
    %v3744 = vpop.permute.xlu0 %3743
    %3745 = vrot.lane.b32.xlu0 %v3731, 109
    %v3746 = vpop.permute.xlu0 %3745
    %s3749 = scalar_lea.vmem [#allocation14], 96
    %3750 = vst.msk [vmem:[%s3749] sm:$0xff] %vm3656, %v3744
    %3751 = vst.msk [vmem:[%s3749 + $0x8] sm:$0xff] %vm3656, %v3746
    %v3752 = vld [vmem:[%s1461 + $0x1] sm:$0xff]
    %v3753 = vld [vmem:[%s1461 + $0x9] sm:$0xff]
    %s3754 = sld [smem:[#allocation12 + $0x3]]
    %v3755 = vstv %s3754
    %v3756 = vadd.f32 %v3624, %v3755
    %v3757 = vadd.f32 %v3625, %v3755
    %3760 = vrot.lane.b32.xlu0 %v3752, 127
    %v3761 = vpop.permute.xlu0 %3760
    %3762 = vrot.lane.b32.xlu0 %v3753, 127
    %v3763 = vpop.permute.xlu0 %3762
    %v3766 = vadd.f32 %v3756, %v3761
    %v3767 = vadd.f32 %v3757, %v3763
    %vm3768 = vcmp.ge.f32.partialorder %v3766, 0.0
    %vm3769 = vcmp.ge.f32.partialorder %v3767, 0.0
    %v3770 = vmul.f32 %v3766, 0.01
    %v3771 = vmul.f32 %v3767, 0.01
    %v3772 = vsel %vm3768, %v3766, %v3770
    %v3773 = vsel %vm3769, %v3767, %v3771
    %3776 = vrot.lane.b32.xlu0 %v3772, 127
    %v3777 = vpop.permute.xlu0 %3776
    %3778 = vrot.lane.b32.xlu0 %v3773, 127
    %v3779 = vpop.permute.xlu0 %3778
    %s3782 = scalar_lea.vmem [#allocation14], 48
    %3783 = vst.msk [vmem:[%s3782] sm:$0xff] %vm3656, %v3777
    %3784 = vst.msk [vmem:[%s3782 + $0x8] sm:$0xff] %vm3656, %v3779
    %3785 = vrot.lane.b32.xlu0 %v3772, 109
    %v3786 = vpop.permute.xlu0 %3785
    %3787 = vrot.lane.b32.xlu0 %v3773, 109
    %v3788 = vpop.permute.xlu0 %3787
    %s3791 = scalar_lea.vmem [#allocation14], 112
    %3792 = vst.msk [vmem:[%s3791] sm:$0xff] %vm3656, %v3786
    %3793 = vst.msk [vmem:[%s3791 + $0x8] sm:$0xff] %vm3656, %v3788
    // Predicated region
    $region42: #{tpu_custom_call.1} parent=1 // pred_check
      _
    $region43: #{tpu_custom_call.1} parent=1 // pred_check_branch
      %3795 = sbr.rel (0) target = $region45
    $region44: #{tpu_custom_call.1} parent=1 // pred_region
      %s3797 = ssub.s32 2048, 2048
      %3798 = vsyncadd [#allocation6], %s3797
      %s3799 = sshll.u32 [#allocation14], 4
      %s3800 = int_to_ptr.vmem [resolvable:$true] %s3799
      %3805 = dma.vmem_to_hbm [thread:$0]  %s3800, 2048, %s5, [#allocation6], 128, 128, 8
    $region45: #{tpu_custom_call.1} parent=1 // pred_fallthru
      _
    // Predicated region
    $region46: #{tpu_custom_call.1} parent=1 // pred_check
      _
    $region47: #{tpu_custom_call.1} parent=1 // pred_check_branch
      %3807 = sbr.rel (0) target = $region49
    $region48: #{tpu_custom_call.1} parent=1 // pred_region
      %3808 = dma.done [#allocation6], 2048
    $region49: #{tpu_custom_call.1} parent=1 // pred_fallthru
      _
    %3809 = vsyncpa [#allocation5], 1
    %3810 = vsyncpa [#allocation6], 1
    %3811 = vsyncpa [#allocation7], 1
    %3812 = vsyncpa [#allocation10], 1
    %3813 = vsyncpa [#allocation13], 1

</llo_original>
